<compile_context>
chip_gen: v6e
topology: v6e:2x2x1
jax: 0.10.0
libtpu: 0.0.40
codegen_flags: <defaults>
</compile_context>

<pallas_src>
import functools
import math

import jax
import jax.numpy as jnp
from jax import lax
from jax.experimental import pallas as pl
from jax.experimental.pallas import tpu as pltpu

_SQRT_HALF = 0.7071067811865476
_HIGH = jax.lax.Precision.HIGHEST   # wrapper/reference-side matmul precision


# ----------------------------- in-kernel helpers -----------------------------
def _layernorm(x, g, b, eps=1e-5):
    mu = jnp.mean(x, axis=-1, keepdims=True)
    xc = x - mu
    var = jnp.mean(xc * xc, axis=-1, keepdims=True)
    return xc * lax.rsqrt(var + eps) * g + b


def _erf(x):
    # Abramowitz & Stegun 7.1.26 (|err| < 1.5e-7); exp + polynomial only.
    a1, a2, a3, a4, a5 = 0.254829592, -0.284496736, 1.421413741, -1.453152027, 1.061405429
    p = 0.3275911
    sgn = jnp.where(x >= 0.0, 1.0, -1.0)
    ax = jnp.abs(x)
    t = 1.0 / (1.0 + p * ax)
    poly = ((((a5 * t + a4) * t + a3) * t + a2) * t + a1) * t
    return sgn * (1.0 - poly * jnp.exp(-ax * ax))


def _gelu(x):
    return 0.5 * x * (1.0 + _erf(x * _SQRT_HALF))


# ----------------------------- fused whole-forward kernel -----------------------------
def make_translator_kernel(n_dec_layers, n_heads, scale):
    def kernel(x_ref, ln0_ref, ctx_ref, wq_ref, wk_ref, wv_ref, wfc_ref,
               mcrs_ref, ln_ref, w1_ref, b1_ref, w2_ref, b2_ref,
               y_ref, h_ref):
        bb, seq, _ = x_ref.shape
        ln0 = ln0_ref[...]                               # (2, D): [gamma, beta]
        for b in range(bb):                              # static; bb == 1 per grid step here
            # ln0 on this batch element's full (S, D) slab.
            x = _layernorm(x_ref[b], ln0[0:1], ln0[1:2])

            for L in range(n_dec_layers):                # static unroll over decoder blocks
                ln = ln_ref[L]                           # (8, D)

                # sub-block 1: conv1 + single-key context attention (softmax == 1),
                # folded offline into one (D, D) map; hn is inert.
                x1 = _layernorm(
                    jnp.dot(x, ctx_ref[L], preferred_element_type=jnp.float32) + x,
                    ln[0:1], ln[1:2])

                # sub-block 2: global multi-head attention. Q from conv2(x1) (conv2
                # folded into the Q projection offline); K = x @ W_K, V = x @ W_Q
                # (reference quirk). Head weights are head-stacked -> leading-axis
                # indexing only, no lane sub-slicing.
                head_outs = []
                for hd in range(n_heads):
                    q = jnp.dot(x1, wq_ref[L, hd], preferred_element_type=jnp.float32)
                    k = jnp.dot(x, wk_ref[L, hd], preferred_element_type=jnp.float32)
                    v = jnp.dot(x, wv_ref[L, hd], preferred_element_type=jnp.float32)
                    s = jnp.einsum('qd,kd->qk', q, k,
                                   preferred_element_type=jnp.float32) * scale
                    s = s - jnp.max(s, axis=-1, keepdims=True)
                    e = jnp.exp(s)
                    p = e / jnp.sum(e, axis=-1, keepdims=True)   # dropout == 0 -> no mask
                    head_outs.append(jnp.dot(p, v, preferred_element_type=jnp.float32))
                # one K = H*dv output projection instead of H tiny K = dv matmuls.
                att = jnp.dot(jnp.concatenate(head_outs, axis=-1), wfc_ref[L],
                              preferred_element_type=jnp.float32)
                x2 = _layernorm(att + x1, ln[2:3], ln[3:4])

                # sub-block 3: single-key cross attention -> x2 @ (W_Q @ W_fc);
                # encoder_x is inert.
                hc = jnp.dot(x2, mcrs_ref[L], preferred_element_type=jnp.float32)
                x3 = _layernorm(hc + x2, ln[4:5], ln[5:6])

                # sub-block 4: MLP (Linear -> GELU -> Linear) + residual + LN4.
                hid = _gelu(jnp.dot(x3, w1_ref[L], preferred_element_type=jnp.float32)
                            + b1_ref[L])
                yy = jnp.dot(hid, w2_ref[L], preferred_element_type=jnp.float32) + b2_ref[L]
                x = _layernorm(yy + x3, ln[6:7], ln[7:8])

                if L == n_dec_layers - 1:
                    # last_hidden_state == cross-attn output at the last timestep
                    # of the last decoder block (pre-residual, pre-LN3).
                    h_ref[b] = hc[seq - 1:seq, :]

            y_ref[b] = x
    return kernel


# ----------------------------- pallas_call wrapper -----------------------------
def translator_forward(kp, x, cfg):
    bs, S, D = x.shape
    H, dq, dv, F = cfg['n_heads'], cfg['d_qk'], cfg['d_v'], cfg['d_ff']
    Ld = kp['ctx_fold'].shape[0]

    # 2-way batch split across the grid: v7x runs the two steps on its two
    # TensorCores ("parallel"); on v5e/v6e it is two cheap serial steps.
    G = 2 if (bs % 2 == 0 and bs >= 2) else 1
    Bb = bs // G

    def cmap(n):
        return lambda g: (0,) * n

    kern = make_translator_kernel(Ld, H, 1.0 / math.sqrt(dq))
    # NOTE: weight blocks are tiny (<100 KB total); constant index_maps keep them
    # resident. If d_model/d_ff scale up, add pipeline_mode=pl.Buffered(1) (or
    # untiled VMEM specs) to drop the second buffer, and tile the MLP over d_ff.
    y, h = pl.pallas_call(
        kern,
        out_shape=(jax.ShapeDtypeStruct((bs, S, D), jnp.float32),
                   jax.ShapeDtypeStruct((bs, 1, D), jnp.float32)),
        grid=(G,),
        in_specs=[
            pl.BlockSpec((Bb, S, D), lambda g: (g, 0, 0)),   # input slab
            pl.BlockSpec((2, D), cmap(2)),                   # ln0 [gamma; beta]
            pl.BlockSpec((Ld, D, D), cmap(3)),               # folded conv1 + ctx attn
            pl.BlockSpec((Ld, H, D, dq), cmap(4)),           # global Q proj (conv2 folded), head-stacked
            pl.BlockSpec((Ld, H, D, dq), cmap(4)),           # global K proj, head-stacked
            pl.BlockSpec((Ld, H, D, dv), cmap(4)),           # global V proj (= W_Q cols), head-stacked
            pl.BlockSpec((Ld, H * dv, D), cmap(3)),          # global output proj
            pl.BlockSpec((Ld, D, D), cmap(3)),               # folded cross attention
            pl.BlockSpec((Ld, 8, D), cmap(3)),               # packed LayerNorm params
            pl.BlockSpec((Ld, D, F), cmap(3)),               # mlp w1
            pl.BlockSpec((Ld, 1, F), cmap(3)),               # mlp b1
            pl.BlockSpec((Ld, F, D), cmap(3)),               # mlp w2
            pl.BlockSpec((Ld, 1, D), cmap(3)),               # mlp b2
        ],
        out_specs=(pl.BlockSpec((Bb, S, D), lambda g: (g, 0, 0)),
                   pl.BlockSpec((Bb, 1, D), lambda g: (g, 0, 0))),
        compiler_params=pltpu.CompilerParams(dimension_semantics=("parallel",)),
    )(x, kp['ln0'], kp['ctx_fold'], kp['glb_wq'], kp['glb_wk'], kp['glb_wv'],
      kp['glb_wfc'], kp['m_crs'], kp['ln_pack'], kp['mlp_w1'], kp['mlp_b1'],
      kp['mlp_w2'], kp['mlp_b2'])
    return y, h


def build_forward(cfg):
    assert cfg['dropout'] == 0.0, \
        "bernoulli attention dropout (non-deterministic) unsupported"

    @jax.jit
    def fwd(kp, x):
        return translator_forward(kp, x, cfg)
    return fwd


# ----------------------------- offline parameter folding -----------------------------
def _conv_band(w, d_model, pad):
    # nn.Conv1d(1, 1, k, padding=pad, bias=False) along d_model as a banded matmul:
    # out = x @ band with band[i, j] = w[i - j + pad]  (torch cross-correlation).
    k = w.shape[0]
    i = jnp.arange(d_model)[:, None]
    j = jnp.arange(d_model)[None, :]
    tap = i - j + pad
    valid = (tap >= 0) & (tap < k)
    return jnp.where(valid, w[jnp.clip(tap, 0, k - 1)], 0.0).astype(jnp.float32)


def prepare_params(raw, cfg):
    D, K = cfg['d_model'], cfg['kernel_size']
    H, dq, dv = cfg['n_heads'], cfg['d_qk'], cfg['d_v']
    assert dq == dv, "the reference's W_Q-for-V projection requires d_qk == d_v"
    pad = (K - 1) // 2
    mm = functools.partial(jnp.matmul, precision=_HIGH)

    def head_split(w):                    # (D, H*dh) -> (H, D, dh)
        dh = w.shape[1] // H
        return jnp.transpose(w.reshape(D, H, dh), (1, 0, 2))

    ctx_fold, wq_hd, wk_hd, wv_hd, wfc, m_crs, ln_pack = [], [], [], [], [], [], []
    w1, b1, w2, b2 = [], [], [], []
    for p in raw['dec_layers']:
        band1 = _conv_band(p['conv1_w'], D, pad)
        band2 = _conv_band(p['conv2_w'], D, pad)
        ctx_fold.append(mm(band1, mm(p['ctx_wq'], p['ctx_wfc'])))   # conv1 + ctx attn fold
        wq_hd.append(head_split(mm(band2, p['glb_wq'])))            # conv2 folded into Q
        wk_hd.append(head_split(p['glb_wk']))
        wv_hd.append(head_split(p['glb_wq']))                       # reference quirk: V <- W_Q
        wfc.append(p['glb_wfc'])
        m_crs.append(mm(p['crs_wq'], p['crs_wfc']))                 # cross attn fold
        ln_pack.append(jnp.concatenate(
            [p['ln1_g'], p['ln1_b'], p['ln2_g'], p['ln2_b'],
             p['ln3_g'], p['ln3_b'], p['ln4_g'], p['ln4_b']], axis=0))
        w1.append(p['mlp_w1']); b1.append(p['mlp_b1'])
        w2.append(p['mlp_w2']); b2.append(p['mlp_b2'])

    st = jnp.stack
    return {'ln0': jnp.concatenate([raw['ln0_g'], raw['ln0_b']], axis=0),
            'ctx_fold': st(ctx_fold), 'glb_wq': st(wq_hd), 'glb_wk': st(wk_hd),
            'glb_wv': st(wv_hd), 'glb_wfc': st(wfc), 'm_crs': st(m_crs),
            'ln_pack': st(ln_pack), 'mlp_w1': st(w1), 'mlp_b1': st(b1),
            'mlp_w2': st(w2), 'mlp_b2': st(b2)}


# ----------------------------- deterministic parameter init -----------------------------
def init_params(key, cfg):
    D, F, K = cfg['d_model'], cfg['d_ff'], cfg['kernel_size']
    H, dq, dv = cfg['n_heads'], cfg['d_qk'], cfg['d_v']
    keys = iter(jax.random.split(key, 128))

    def uni(shape, fan_in):
        s = 1.0 / math.sqrt(fan_in)
        return jax.random.uniform(next(keys), shape, jnp.float32, -s, s)

    def ln(prefix):
        return {prefix + '_g': jnp.ones((1, D), jnp.float32),
                prefix + '_b': jnp.zeros((1, D), jnp.float32)}

    def dec_layer():
        # Linear weights stored pre-transposed as (in, out). W_V of every attention
        # never influences the forward (V uses W_Q in the reference) -> omitted.
        p = {'conv1_w': uni((K,), K), 'conv2_w': uni((K,), K),
             'ctx_wq': uni((D, H * dq), D), 'ctx_wk': uni((D, H * dq), D),
             'ctx_wfc': uni((H * dv, D), H * dv),
             'glb_wq': uni((D, H * dq), D), 'glb_wk': uni((D, H * dq), D),
             'glb_wfc': uni((H * dv, D), H * dv),
             'crs_wq': uni((D, H * dq), D), 'crs_wk': uni((D, H * dq), D),
             'crs_wfc': uni((H * dv, D), H * dv),
             'mlp_w1': uni((D, F), D), 'mlp_b1': uni((1, F), D),
             'mlp_w2': uni((F, D), F), 'mlp_b2': uni((1, D), F)}
        for pre in ('ln1', 'ln2', 'ln3', 'ln4'):
            p.update(ln(pre))
        return p

    return {'ln0_g': jnp.ones((1, D), jnp.float32),
            'ln0_b': jnp.zeros((1, D), jnp.float32),
            'dec_layers': [dec_layer() for _ in range(2)]}   # Translator uses 2 decoder blocks


# ----------------------------- literal (un-folded) reference for parity -----------------------------
def _reference_forward(raw, x, cfg, h0, fake_encoder_out):
    """Direct per-timestep jnp port of the torch decoder stack (no folding).

    The random h0 / encoder stream arguments double as a check that those inputs
    are inert for the two returned outputs (single-key softmax == 1)."""
    D, K_sz = cfg['d_model'], cfg['kernel_size']
    H, dq, dv = cfg['n_heads'], cfg['d_qk'], cfg['d_v']
    pad = (K_sz - 1) // 2
    mm = functools.partial(jnp.matmul, precision=_HIGH)

    def layer_norm(v, g, b, eps=1e-5):
        mu = jnp.mean(v, axis=-1, keepdims=True)
        var = jnp.mean((v - mu) ** 2, axis=-1, keepdims=True)
        return (v - mu) / jnp.sqrt(var + eps) * g + b

    def conv1d(v, w):                                   # v: (bs, 1, D)
        vp = jnp.pad(v, ((0, 0), (0, 0), (pad, pad)))
        return sum(w[j] * vp[..., j:j + D] for j in range(K_sz))

    def mhca(wq, wk, wfc, in_q, in_k, in_v):            # literal Multi_Head_CrossAttention
        bs = in_q.shape[0]
        Q = mm(in_q, wq).reshape(bs, -1, H, dq).transpose(0, 2, 1, 3)
        Km = mm(in_k, wk).reshape(bs, -1, H, dq).transpose(0, 2, 1, 3)
        V = mm(in_v, wq).reshape(bs, -1, H, dv).transpose(0, 2, 1, 3)   # W_Q on V (ref)
        s = mm(Q, Km.transpose(0, 1, 3, 2)) / math.sqrt(dq)
        p = jax.nn.softmax(s, axis=-1)                  # dropout == 0
        o = mm(p, V).transpose(0, 2, 1, 3).reshape(bs, -1, H * dv)
        return mm(o, wfc)

    def block_forward(p, x_t, enc_t, hn, inp):
        xx, ee = x_t[:, None, :], enc_t[:, None, :]
        res = xx
        xx = conv1d(xx, p['conv1_w'])
        xc = mhca(p['ctx_wq'], p['ctx_wk'], p['ctx_wfc'], hn, xx, xx)
        xx = layer_norm(xc + res, p['ln1_g'], p['ln1_b'])
        res = xx
        xx = conv1d(xx, p['conv2_w'])
        xx = mhca(p['glb_wq'], p['glb_wk'], p['glb_wfc'], xx, inp, inp)
        xx = layer_norm(xx + res, p['ln2_g'], p['ln2_b'])
        res = xx
        h = mhca(p['crs_wq'], p['crs_wk'], p['crs_wfc'], ee, xx, xx)
        xx = layer_norm(h + res, p['ln3_g'], p['ln3_b'])
        res = xx
        y = mm(jax.nn.gelu(mm(xx, p['mlp_w1']) + p['mlp_b1'], approximate=False),
               p['mlp_w2']) + p['mlp_b2']
        y = layer_norm(y + res, p['ln4_g'], p['ln4_b'])
        return y, h

    def tl_decoder(p, inp, enc_out, h0_):
        S = inp.shape[1]
        hn = h0_
        xcat = jnp.concatenate([h0_, inp], axis=1)
        ecat = jnp.concatenate([h0_, enc_out], axis=1)
        ys = []
        for i in range(S + 1):
            y, hn = block_forward(p, xcat[:, i, :], ecat[:, i, :], hn, inp)
            ys.append(y)
        return jnp.concatenate(ys[1:], axis=1), hn      # == output[:, 2:, :] in torch

    stream = layer_norm(x, raw['ln0_g'], raw['ln0_b'])
    hn = h0
    for p in raw['dec_layers']:
        stream, hn = tl_decoder(p, stream, fake_encoder_out, hn)
    return stream, hn


# ----------------------------- demo -----------------------------
if __name__ == "__main__":
    cfg = dict(num_layers=2, d_model=32, d_qk=8, d_v=8, n_heads=4,
               d_ff=64, kernel_size=3, dropout=0.0)

    bs, seq = 2, 8
    key = jax.random.PRNGKey(0)
    pkey, xkey, hkey, ekey = jax.random.split(key, 4)
    raw_params = init_params(pkey, cfg)
    kparams = prepare_params(raw_params, cfg)
    x = jax.random.normal(xkey, (bs, seq, cfg['d_model']), jnp.float32)

    fwd = build_forward(cfg)
    dec_out, last_hidden = fwd(kparams, x)
    jax.block_until_ready((dec_out, last_hidden))

    assert dec_out.shape == (bs, seq, cfg['d_model'])
    assert last_hidden.shape == (bs, 1, cfg['d_model'])
    assert bool(jnp.all(jnp.isfinite(dec_out)))
    assert bool(jnp.all(jnp.isfinite(last_hidden)))

    # Numeric parity vs. a literal per-timestep port of the torch reference.
    # Random h0 / encoder stream validate that those inputs are inert for the
    # two returned outputs exactly as the fused kernel assumes.
    h0 = jax.random.normal(hkey, (bs, 1, cfg['d_model']), jnp.float32)
    fake_enc = jax.random.normal(ekey, (bs, seq, cfg['d_model']), jnp.float32)
    ref_dec, ref_h = jax.jit(
        lambda r, xx, h, e: _reference_forward(r, xx, cfg, h, e)
    )(raw_params, x, h0, fake_enc)
    assert bool(jnp.allclose(dec_out, ref_dec, atol=2e-3, rtol=2e-3)), \
        "decoder output parity vs reference failed"
    assert bool(jnp.allclose(last_hidden, ref_h, atol=2e-3, rtol=2e-3)), \
        "last hidden state parity vs reference failed"

    print("KERNEL_OK")
</pallas_src>

<mosaic_0001>
module attributes {stable_mosaic.version = 11 : i64} {
  func.func @kernel(%arg0: i32, %arg1: memref<1x8x32xf32, #tpu.memory_space<vmem>>, %arg2: memref<2x32xf32, #tpu.memory_space<vmem>>, %arg3: memref<2x32x32xf32, #tpu.memory_space<vmem>>, %arg4: memref<2x4x32x8xf32, #tpu.memory_space<vmem>>, %arg5: memref<2x4x32x8xf32, #tpu.memory_space<vmem>>, %arg6: memref<2x4x32x8xf32, #tpu.memory_space<vmem>>, %arg7: memref<2x32x32xf32, #tpu.memory_space<vmem>>, %arg8: memref<2x32x32xf32, #tpu.memory_space<vmem>>, %arg9: memref<2x8x32xf32, #tpu.memory_space<vmem>>, %arg10: memref<2x32x64xf32, #tpu.memory_space<vmem>>, %arg11: memref<2x1x64xf32, #tpu.memory_space<vmem>>, %arg12: memref<2x64x32xf32, #tpu.memory_space<vmem>>, %arg13: memref<2x1x32xf32, #tpu.memory_space<vmem>>, %arg14: memref<1x8x32xf32, #tpu.memory_space<vmem>>, %arg15: memref<1x1x32xf32, #tpu.memory_space<vmem>>) attributes {dimension_semantics = [#tpu.dimension_semantics<parallel>], iteration_bounds = array<i64: 2>, scalar_prefetch = 0 : i64, scratch_operands = 0 : i64, tpu.core_type = #tpu.core_type<tc>, window_params = [{transform_indices = @transform_0, window_bounds = array<i64: 1, 8, 32>}, {pipeline_mode = #tpu.pipeline_mode<synchronous>, transform_indices = @transform_1, window_bounds = array<i64: 2, 32>}, {pipeline_mode = #tpu.pipeline_mode<synchronous>, transform_indices = @transform_2, window_bounds = array<i64: 2, 32, 32>}, {pipeline_mode = #tpu.pipeline_mode<synchronous>, transform_indices = @transform_3, window_bounds = array<i64: 2, 4, 32, 8>}, {pipeline_mode = #tpu.pipeline_mode<synchronous>, transform_indices = @transform_4, window_bounds = array<i64: 2, 4, 32, 8>}, {pipeline_mode = #tpu.pipeline_mode<synchronous>, transform_indices = @transform_5, window_bounds = array<i64: 2, 4, 32, 8>}, {pipeline_mode = #tpu.pipeline_mode<synchronous>, transform_indices = @transform_6, window_bounds = array<i64: 2, 32, 32>}, {pipeline_mode = #tpu.pipeline_mode<synchronous>, transform_indices = @transform_7, window_bounds = array<i64: 2, 32, 32>}, {pipeline_mode = #tpu.pipeline_mode<synchronous>, transform_indices = @transform_8, window_bounds = array<i64: 2, 8, 32>}, {pipeline_mode = #tpu.pipeline_mode<synchronous>, transform_indices = @transform_9, window_bounds = array<i64: 2, 32, 64>}, {pipeline_mode = #tpu.pipeline_mode<synchronous>, transform_indices = @transform_10, window_bounds = array<i64: 2, 1, 64>}, {pipeline_mode = #tpu.pipeline_mode<synchronous>, transform_indices = @transform_11, window_bounds = array<i64: 2, 64, 32>}, {pipeline_mode = #tpu.pipeline_mode<synchronous>, transform_indices = @transform_12, window_bounds = array<i64: 2, 1, 32>}, {transform_indices = @transform_13, window_bounds = array<i64: 1, 8, 32>}, {transform_indices = @transform_14, window_bounds = array<i64: 1, 1, 32>}]} {
    %c0 = arith.constant 0 : index
    %c0_0 = arith.constant 0 : index
    %0 = vector.load %arg2[%c0, %c0_0] : memref<2x32xf32, #tpu.memory_space<vmem>>, vector<2x32xf32>
    %c0_1 = arith.constant 0 : index
    %c0_2 = arith.constant 0 : index
    %c0_3 = arith.constant 0 : index
    %1 = vector.load %arg1[%c0_1, %c0_2, %c0_3] : memref<1x8x32xf32, #tpu.memory_space<vmem>>, vector<1x8x32xf32>
    %2 = vector.shape_cast %1 : vector<1x8x32xf32> to vector<8x32xf32>
    %3 = vector.extract_strided_slice %0 {offsets = [0, 0], sizes = [1, 32], strides = [1, 1]} : vector<2x32xf32> to vector<1x32xf32>
    %4 = vector.extract_strided_slice %0 {offsets = [1, 0], sizes = [1, 32], strides = [1, 1]} : vector<2x32xf32> to vector<1x32xf32>
    %cst = arith.constant dense<0.000000e+00> : vector<8xf32>
    %5 = vector.multi_reduction <add>, %2, %cst [1] : vector<8x32xf32> to vector<8xf32>
    %6 = vector.shape_cast %5 : vector<8xf32> to vector<8x1xf32>
    %cst_4 = arith.constant 3.200000e+01 : f32
    %7 = vector.broadcast %cst_4 : f32 to vector<8x1xf32>
    %8 = arith.divf %6, %7 : vector<8x1xf32>
    %9 = vector.broadcast %8 : vector<8x1xf32> to vector<8x32xf32>
    %10 = arith.subf %2, %9 : vector<8x32xf32>
    %11 = arith.mulf %10, %10 : vector<8x32xf32>
    %cst_5 = arith.constant dense<0.000000e+00> : vector<8xf32>
    %12 = vector.multi_reduction <add>, %11, %cst_5 [1] : vector<8x32xf32> to vector<8xf32>
    %13 = vector.shape_cast %12 : vector<8xf32> to vector<8x1xf32>
    %cst_6 = arith.constant 3.200000e+01 : f32
    %14 = vector.broadcast %cst_6 : f32 to vector<8x1xf32>
    %15 = arith.divf %13, %14 : vector<8x1xf32>
    %cst_7 = arith.constant 9.99999974E-6 : f32
    %16 = vector.broadcast %cst_7 : f32 to vector<8x1xf32>
    %17 = arith.addf %15, %16 : vector<8x1xf32>
    %18 = math.rsqrt %17 : vector<8x1xf32>
    %19 = vector.broadcast %18 : vector<8x1xf32> to vector<8x32xf32>
    %20 = arith.mulf %10, %19 : vector<8x32xf32>
    %21 = vector.broadcast %3 : vector<1x32xf32> to vector<8x32xf32>
    %22 = arith.mulf %20, %21 : vector<8x32xf32>
    %23 = vector.broadcast %4 : vector<1x32xf32> to vector<8x32xf32>
    %24 = arith.addf %22, %23 : vector<8x32xf32>
    %c0_8 = arith.constant 0 : index
    %c0_9 = arith.constant 0 : index
    %c0_10 = arith.constant 0 : index
    %25 = vector.load %arg9[%c0_8, %c0_9, %c0_10] : memref<2x8x32xf32, #tpu.memory_space<vmem>>, vector<1x8x32xf32>
    %26 = vector.shape_cast %25 : vector<1x8x32xf32> to vector<8x32xf32>
    %c0_11 = arith.constant 0 : index
    %c0_12 = arith.constant 0 : index
    %c0_13 = arith.constant 0 : index
    %27 = vector.load %arg3[%c0_11, %c0_12, %c0_13] : memref<2x32x32xf32, #tpu.memory_space<vmem>>, vector<1x32x32xf32>
    %28 = vector.shape_cast %27 : vector<1x32x32xf32> to vector<32x32xf32>
    %cst_14 = arith.constant dense<0.000000e+00> : vector<8x32xf32>
    %29 = tpu.matmul %24, %28, %cst_14 {dimension_numbers = #tpu.dot_dimension_numbers<[1], [0], [0], [1], [0, 0, 1, 1], [], []>} : vector<8x32xf32>, vector<32x32xf32>, vector<8x32xf32> -> vector<8x32xf32>
    %30 = arith.addf %29, %24 : vector<8x32xf32>
    %31 = vector.extract_strided_slice %26 {offsets = [0, 0], sizes = [1, 32], strides = [1, 1]} : vector<8x32xf32> to vector<1x32xf32>
    %32 = vector.extract_strided_slice %26 {offsets = [1, 0], sizes = [1, 32], strides = [1, 1]} : vector<8x32xf32> to vector<1x32xf32>
    %cst_15 = arith.constant dense<0.000000e+00> : vector<8xf32>
    %33 = vector.multi_reduction <add>, %30, %cst_15 [1] : vector<8x32xf32> to vector<8xf32>
    %34 = vector.shape_cast %33 : vector<8xf32> to vector<8x1xf32>
    %cst_16 = arith.constant 3.200000e+01 : f32
    %35 = vector.broadcast %cst_16 : f32 to vector<8x1xf32>
    %36 = arith.divf %34, %35 : vector<8x1xf32>
    %37 = vector.broadcast %36 : vector<8x1xf32> to vector<8x32xf32>
    %38 = arith.subf %30, %37 : vector<8x32xf32>
    %39 = arith.mulf %38, %38 : vector<8x32xf32>
    %cst_17 = arith.constant dense<0.000000e+00> : vector<8xf32>
    %40 = vector.multi_reduction <add>, %39, %cst_17 [1] : vector<8x32xf32> to vector<8xf32>
    %41 = vector.shape_cast %40 : vector<8xf32> to vector<8x1xf32>
    %cst_18 = arith.constant 3.200000e+01 : f32
    %42 = vector.broadcast %cst_18 : f32 to vector<8x1xf32>
    %43 = arith.divf %41, %42 : vector<8x1xf32>
    %cst_19 = arith.constant 9.99999974E-6 : f32
    %44 = vector.broadcast %cst_19 : f32 to vector<8x1xf32>
    %45 = arith.addf %43, %44 : vector<8x1xf32>
    %46 = math.rsqrt %45 : vector<8x1xf32>
    %47 = vector.broadcast %46 : vector<8x1xf32> to vector<8x32xf32>
    %48 = arith.mulf %38, %47 : vector<8x32xf32>
    %49 = vector.broadcast %31 : vector<1x32xf32> to vector<8x32xf32>
    %50 = arith.mulf %48, %49 : vector<8x32xf32>
    %51 = vector.broadcast %32 : vector<1x32xf32> to vector<8x32xf32>
    %52 = arith.addf %50, %51 : vector<8x32xf32>
    %c0_20 = arith.constant 0 : index
    %c0_21 = arith.constant 0 : index
    %c0_22 = arith.constant 0 : index
    %c0_23 = arith.constant 0 : index
    %53 = vector.load %arg4[%c0_20, %c0_21, %c0_22, %c0_23] : memref<2x4x32x8xf32, #tpu.memory_space<vmem>>, vector<1x1x32x8xf32>
    %54 = vector.shape_cast %53 : vector<1x1x32x8xf32> to vector<32x8xf32>
    %cst_24 = arith.constant dense<0.000000e+00> : vector<8x8xf32>
    %55 = tpu.matmul %52, %54, %cst_24 {dimension_numbers = #tpu.dot_dimension_numbers<[1], [0], [0], [1], [0, 0, 1, 1], [], []>} : vector<8x32xf32>, vector<32x8xf32>, vector<8x8xf32> -> vector<8x8xf32>
    %c0_25 = arith.constant 0 : index
    %c0_26 = arith.constant 0 : index
    %c0_27 = arith.constant 0 : index
    %c0_28 = arith.constant 0 : index
    %56 = vector.load %arg5[%c0_25, %c0_26, %c0_27, %c0_28] : memref<2x4x32x8xf32, #tpu.memory_space<vmem>>, vector<1x1x32x8xf32>
    %57 = vector.shape_cast %56 : vector<1x1x32x8xf32> to vector<32x8xf32>
    %cst_29 = arith.constant dense<0.000000e+00> : vector<8x8xf32>
    %58 = tpu.matmul %24, %57, %cst_29 {dimension_numbers = #tpu.dot_dimension_numbers<[1], [0], [0], [1], [0, 0, 1, 1], [], []>} : vector<8x32xf32>, vector<32x8xf32>, vector<8x8xf32> -> vector<8x8xf32>
    %c0_30 = arith.constant 0 : index
    %c0_31 = arith.constant 0 : index
    %c0_32 = arith.constant 0 : index
    %c0_33 = arith.constant 0 : index
    %59 = vector.load %arg6[%c0_30, %c0_31, %c0_32, %c0_33] : memref<2x4x32x8xf32, #tpu.memory_space<vmem>>, vector<1x1x32x8xf32>
    %60 = vector.shape_cast %59 : vector<1x1x32x8xf32> to vector<32x8xf32>
    %cst_34 = arith.constant dense<0.000000e+00> : vector<8x8xf32>
    %61 = tpu.matmul %24, %60, %cst_34 {dimension_numbers = #tpu.dot_dimension_numbers<[1], [0], [0], [1], [0, 0, 1, 1], [], []>} : vector<8x32xf32>, vector<32x8xf32>, vector<8x8xf32> -> vector<8x8xf32>
    "tpu.trace_start"() <{level = 10 : i32, message = "qd,kd->qk"}> : () -> ()
    %cst_35 = arith.constant dense<0.000000e+00> : vector<8x8xf32>
    %62 = tpu.matmul %55, %58, %cst_35 {dimension_numbers = #tpu.dot_dimension_numbers<[1], [1], [0], [0], [0, 0, 1, 0], [], []>} : vector<8x8xf32>, vector<8x8xf32>, vector<8x8xf32> -> vector<8x8xf32>
    "tpu.trace_stop"() : () -> ()
    %cst_36 = arith.constant 0.353553385 : f32
    %63 = vector.broadcast %cst_36 : f32 to vector<8x8xf32>
    %64 = arith.mulf %62, %63 : vector<8x8xf32>
    %cst_37 = arith.constant dense<0xFF800000> : vector<8xf32>
    %65 = vector.multi_reduction <maximumf>, %64, %cst_37 [1] : vector<8x8xf32> to vector<8xf32>
    %66 = vector.shape_cast %65 : vector<8xf32> to vector<8x1xf32>
    %67 = vector.broadcast %66 : vector<8x1xf32> to vector<8x8xf32>
    %68 = arith.subf %64, %67 : vector<8x8xf32>
    %69 = math.exp %68 : vector<8x8xf32>
    %cst_38 = arith.constant dense<0.000000e+00> : vector<8xf32>
    %70 = vector.multi_reduction <add>, %69, %cst_38 [1] : vector<8x8xf32> to vector<8xf32>
    %71 = vector.shape_cast %70 : vector<8xf32> to vector<8x1xf32>
    %72 = vector.broadcast %71 : vector<8x1xf32> to vector<8x8xf32>
    %73 = arith.divf %69, %72 : vector<8x8xf32>
    %cst_39 = arith.constant dense<0.000000e+00> : vector<8x8xf32>
    %74 = tpu.matmul %73, %61, %cst_39 {dimension_numbers = #tpu.dot_dimension_numbers<[1], [0], [0], [1], [0, 0, 1, 1], [], []>} : vector<8x8xf32>, vector<8x8xf32>, vector<8x8xf32> -> vector<8x8xf32>
    %c0_40 = arith.constant 0 : index
    %c1 = arith.constant 1 : index
    %c0_41 = arith.constant 0 : index
    %c0_42 = arith.constant 0 : index
    %75 = vector.load %arg4[%c0_40, %c1, %c0_41, %c0_42] : memref<2x4x32x8xf32, #tpu.memory_space<vmem>>, vector<1x1x32x8xf32>
    %76 = vector.shape_cast %75 : vector<1x1x32x8xf32> to vector<32x8xf32>
    %cst_43 = arith.constant dense<0.000000e+00> : vector<8x8xf32>
    %77 = tpu.matmul %52, %76, %cst_43 {dimension_numbers = #tpu.dot_dimension_numbers<[1], [0], [0], [1], [0, 0, 1, 1], [], []>} : vector<8x32xf32>, vector<32x8xf32>, vector<8x8xf32> -> vector<8x8xf32>
    %c0_44 = arith.constant 0 : index
    %c1_45 = arith.constant 1 : index
    %c0_46 = arith.constant 0 : index
    %c0_47 = arith.constant 0 : index
    %78 = vector.load %arg5[%c0_44, %c1_45, %c0_46, %c0_47] : memref<2x4x32x8xf32, #tpu.memory_space<vmem>>, vector<1x1x32x8xf32>
    %79 = vector.shape_cast %78 : vector<1x1x32x8xf32> to vector<32x8xf32>
    %cst_48 = arith.constant dense<0.000000e+00> : vector<8x8xf32>
    %80 = tpu.matmul %24, %79, %cst_48 {dimension_numbers = #tpu.dot_dimension_numbers<[1], [0], [0], [1], [0, 0, 1, 1], [], []>} : vector<8x32xf32>, vector<32x8xf32>, vector<8x8xf32> -> vector<8x8xf32>
    %c0_49 = arith.constant 0 : index
    %c1_50 = arith.constant 1 : index
    %c0_51 = arith.constant 0 : index
    %c0_52 = arith.constant 0 : index
    %81 = vector.load %arg6[%c0_49, %c1_50, %c0_51, %c0_52] : memref<2x4x32x8xf32, #tpu.memory_space<vmem>>, vector<1x1x32x8xf32>
    %82 = vector.shape_cast %81 : vector<1x1x32x8xf32> to vector<32x8xf32>
    %cst_53 = arith.constant dense<0.000000e+00> : vector<8x8xf32>
    %83 = tpu.matmul %24, %82, %cst_53 {dimension_numbers = #tpu.dot_dimension_numbers<[1], [0], [0], [1], [0, 0, 1, 1], [], []>} : vector<8x32xf32>, vector<32x8xf32>, vector<8x8xf32> -> vector<8x8xf32>
    "tpu.trace_start"() <{level = 10 : i32, message = "qd,kd->qk"}> : () -> ()
    %cst_54 = arith.constant dense<0.000000e+00> : vector<8x8xf32>
    %84 = tpu.matmul %77, %80, %cst_54 {dimension_numbers = #tpu.dot_dimension_numbers<[1], [1], [0], [0], [0, 0, 1, 0], [], []>} : vector<8x8xf32>, vector<8x8xf32>, vector<8x8xf32> -> vector<8x8xf32>
    "tpu.trace_stop"() : () -> ()
    %cst_55 = arith.constant 0.353553385 : f32
    %85 = vector.broadcast %cst_55 : f32 to vector<8x8xf32>
    %86 = arith.mulf %84, %85 : vector<8x8xf32>
    %cst_56 = arith.constant dense<0xFF800000> : vector<8xf32>
    %87 = vector.multi_reduction <maximumf>, %86, %cst_56 [1] : vector<8x8xf32> to vector<8xf32>
    %88 = vector.shape_cast %87 : vector<8xf32> to vector<8x1xf32>
    %89 = vector.broadcast %88 : vector<8x1xf32> to vector<8x8xf32>
    %90 = arith.subf %86, %89 : vector<8x8xf32>
    %91 = math.exp %90 : vector<8x8xf32>
    %cst_57 = arith.constant dense<0.000000e+00> : vector<8xf32>
    %92 = vector.multi_reduction <add>, %91, %cst_57 [1] : vector<8x8xf32> to vector<8xf32>
    %93 = vector.shape_cast %92 : vector<8xf32> to vector<8x1xf32>
    %94 = vector.broadcast %93 : vector<8x1xf32> to vector<8x8xf32>
    %95 = arith.divf %91, %94 : vector<8x8xf32>
    %cst_58 = arith.constant dense<0.000000e+00> : vector<8x8xf32>
    %96 = tpu.matmul %95, %83, %cst_58 {dimension_numbers = #tpu.dot_dimension_numbers<[1], [0], [0], [1], [0, 0, 1, 1], [], []>} : vector<8x8xf32>, vector<8x8xf32>, vector<8x8xf32> -> vector<8x8xf32>
    %c0_59 = arith.constant 0 : index
    %c2 = arith.constant 2 : index
    %c0_60 = arith.constant 0 : index
    %c0_61 = arith.constant 0 : index
    %97 = vector.load %arg4[%c0_59, %c2, %c0_60, %c0_61] : memref<2x4x32x8xf32, #tpu.memory_space<vmem>>, vector<1x1x32x8xf32>
    %98 = vector.shape_cast %97 : vector<1x1x32x8xf32> to vector<32x8xf32>
    %cst_62 = arith.constant dense<0.000000e+00> : vector<8x8xf32>
    %99 = tpu.matmul %52, %98, %cst_62 {dimension_numbers = #tpu.dot_dimension_numbers<[1], [0], [0], [1], [0, 0, 1, 1], [], []>} : vector<8x32xf32>, vector<32x8xf32>, vector<8x8xf32> -> vector<8x8xf32>
    %c0_63 = arith.constant 0 : index
    %c2_64 = arith.constant 2 : index
    %c0_65 = arith.constant 0 : index
    %c0_66 = arith.constant 0 : index
    %100 = vector.load %arg5[%c0_63, %c2_64, %c0_65, %c0_66] : memref<2x4x32x8xf32, #tpu.memory_space<vmem>>, vector<1x1x32x8xf32>
    %101 = vector.shape_cast %100 : vector<1x1x32x8xf32> to vector<32x8xf32>
    %cst_67 = arith.constant dense<0.000000e+00> : vector<8x8xf32>
    %102 = tpu.matmul %24, %101, %cst_67 {dimension_numbers = #tpu.dot_dimension_numbers<[1], [0], [0], [1], [0, 0, 1, 1], [], []>} : vector<8x32xf32>, vector<32x8xf32>, vector<8x8xf32> -> vector<8x8xf32>
    %c0_68 = arith.constant 0 : index
    %c2_69 = arith.constant 2 : index
    %c0_70 = arith.constant 0 : index
    %c0_71 = arith.constant 0 : index
    %103 = vector.load %arg6[%c0_68, %c2_69, %c0_70, %c0_71] : memref<2x4x32x8xf32, #tpu.memory_space<vmem>>, vector<1x1x32x8xf32>
    %104 = vector.shape_cast %103 : vector<1x1x32x8xf32> to vector<32x8xf32>
    %cst_72 = arith.constant dense<0.000000e+00> : vector<8x8xf32>
    %105 = tpu.matmul %24, %104, %cst_72 {dimension_numbers = #tpu.dot_dimension_numbers<[1], [0], [0], [1], [0, 0, 1, 1], [], []>} : vector<8x32xf32>, vector<32x8xf32>, vector<8x8xf32> -> vector<8x8xf32>
    "tpu.trace_start"() <{level = 10 : i32, message = "qd,kd->qk"}> : () -> ()
    %cst_73 = arith.constant dense<0.000000e+00> : vector<8x8xf32>
    %106 = tpu.matmul %99, %102, %cst_73 {dimension_numbers = #tpu.dot_dimension_numbers<[1], [1], [0], [0], [0, 0, 1, 0], [], []>} : vector<8x8xf32>, vector<8x8xf32>, vector<8x8xf32> -> vector<8x8xf32>
    "tpu.trace_stop"() : () -> ()
    %cst_74 = arith.constant 0.353553385 : f32
    %107 = vector.broadcast %cst_74 : f32 to vector<8x8xf32>
    %108 = arith.mulf %106, %107 : vector<8x8xf32>
    %cst_75 = arith.constant dense<0xFF800000> : vector<8xf32>
    %109 = vector.multi_reduction <maximumf>, %108, %cst_75 [1] : vector<8x8xf32> to vector<8xf32>
    %110 = vector.shape_cast %109 : vector<8xf32> to vector<8x1xf32>
    %111 = vector.broadcast %110 : vector<8x1xf32> to vector<8x8xf32>
    %112 = arith.subf %108, %111 : vector<8x8xf32>
    %113 = math.exp %112 : vector<8x8xf32>
    %cst_76 = arith.constant dense<0.000000e+00> : vector<8xf32>
    %114 = vector.multi_reduction <add>, %113, %cst_76 [1] : vector<8x8xf32> to vector<8xf32>
    %115 = vector.shape_cast %114 : vector<8xf32> to vector<8x1xf32>
    %116 = vector.broadcast %115 : vector<8x1xf32> to vector<8x8xf32>
    %117 = arith.divf %113, %116 : vector<8x8xf32>
    %cst_77 = arith.constant dense<0.000000e+00> : vector<8x8xf32>
    %118 = tpu.matmul %117, %105, %cst_77 {dimension_numbers = #tpu.dot_dimension_numbers<[1], [0], [0], [1], [0, 0, 1, 1], [], []>} : vector<8x8xf32>, vector<8x8xf32>, vector<8x8xf32> -> vector<8x8xf32>
    %c0_78 = arith.constant 0 : index
    %c3 = arith.constant 3 : index
    %c0_79 = arith.constant 0 : index
    %c0_80 = arith.constant 0 : index
    %119 = vector.load %arg4[%c0_78, %c3, %c0_79, %c0_80] : memref<2x4x32x8xf32, #tpu.memory_space<vmem>>, vector<1x1x32x8xf32>
    %120 = vector.shape_cast %119 : vector<1x1x32x8xf32> to vector<32x8xf32>
    %cst_81 = arith.constant dense<0.000000e+00> : vector<8x8xf32>
    %121 = tpu.matmul %52, %120, %cst_81 {dimension_numbers = #tpu.dot_dimension_numbers<[1], [0], [0], [1], [0, 0, 1, 1], [], []>} : vector<8x32xf32>, vector<32x8xf32>, vector<8x8xf32> -> vector<8x8xf32>
    %c0_82 = arith.constant 0 : index
    %c3_83 = arith.constant 3 : index
    %c0_84 = arith.constant 0 : index
    %c0_85 = arith.constant 0 : index
    %122 = vector.load %arg5[%c0_82, %c3_83, %c0_84, %c0_85] : memref<2x4x32x8xf32, #tpu.memory_space<vmem>>, vector<1x1x32x8xf32>
    %123 = vector.shape_cast %122 : vector<1x1x32x8xf32> to vector<32x8xf32>
    %cst_86 = arith.constant dense<0.000000e+00> : vector<8x8xf32>
    %124 = tpu.matmul %24, %123, %cst_86 {dimension_numbers = #tpu.dot_dimension_numbers<[1], [0], [0], [1], [0, 0, 1, 1], [], []>} : vector<8x32xf32>, vector<32x8xf32>, vector<8x8xf32> -> vector<8x8xf32>
    %c0_87 = arith.constant 0 : index
    %c3_88 = arith.constant 3 : index
    %c0_89 = arith.constant 0 : index
    %c0_90 = arith.constant 0 : index
    %125 = vector.load %arg6[%c0_87, %c3_88, %c0_89, %c0_90] : memref<2x4x32x8xf32, #tpu.memory_space<vmem>>, vector<1x1x32x8xf32>
    %126 = vector.shape_cast %125 : vector<1x1x32x8xf32> to vector<32x8xf32>
    %cst_91 = arith.constant dense<0.000000e+00> : vector<8x8xf32>
    %127 = tpu.matmul %24, %126, %cst_91 {dimension_numbers = #tpu.dot_dimension_numbers<[1], [0], [0], [1], [0, 0, 1, 1], [], []>} : vector<8x32xf32>, vector<32x8xf32>, vector<8x8xf32> -> vector<8x8xf32>
    "tpu.trace_start"() <{level = 10 : i32, message = "qd,kd->qk"}> : () -> ()
    %cst_92 = arith.constant dense<0.000000e+00> : vector<8x8xf32>
    %128 = tpu.matmul %121, %124, %cst_92 {dimension_numbers = #tpu.dot_dimension_numbers<[1], [1], [0], [0], [0, 0, 1, 0], [], []>} : vector<8x8xf32>, vector<8x8xf32>, vector<8x8xf32> -> vector<8x8xf32>
    "tpu.trace_stop"() : () -> ()
    %cst_93 = arith.constant 0.353553385 : f32
    %129 = vector.broadcast %cst_93 : f32 to vector<8x8xf32>
    %130 = arith.mulf %128, %129 : vector<8x8xf32>
    %cst_94 = arith.constant dense<0xFF800000> : vector<8xf32>
    %131 = vector.multi_reduction <maximumf>, %130, %cst_94 [1] : vector<8x8xf32> to vector<8xf32>
    %132 = vector.shape_cast %131 : vector<8xf32> to vector<8x1xf32>
    %133 = vector.broadcast %132 : vector<8x1xf32> to vector<8x8xf32>
    %134 = arith.subf %130, %133 : vector<8x8xf32>
    %135 = math.exp %134 : vector<8x8xf32>
    %cst_95 = arith.constant dense<0.000000e+00> : vector<8xf32>
    %136 = vector.multi_reduction <add>, %135, %cst_95 [1] : vector<8x8xf32> to vector<8xf32>
    %137 = vector.shape_cast %136 : vector<8xf32> to vector<8x1xf32>
    %138 = vector.broadcast %137 : vector<8x1xf32> to vector<8x8xf32>
    %139 = arith.divf %135, %138 : vector<8x8xf32>
    %cst_96 = arith.constant dense<0.000000e+00> : vector<8x8xf32>
    %140 = tpu.matmul %139, %127, %cst_96 {dimension_numbers = #tpu.dot_dimension_numbers<[1], [0], [0], [1], [0, 0, 1, 1], [], []>} : vector<8x8xf32>, vector<8x8xf32>, vector<8x8xf32> -> vector<8x8xf32>
    %141 = tpu.concatenate %74, %96, %118, %140 in 1 : vector<8x8xf32>, vector<8x8xf32>, vector<8x8xf32>, vector<8x8xf32> -> vector<8x32xf32>
    %c0_97 = arith.constant 0 : index
    %c0_98 = arith.constant 0 : index
    %c0_99 = arith.constant 0 : index
    %142 = vector.load %arg7[%c0_97, %c0_98, %c0_99] : memref<2x32x32xf32, #tpu.memory_space<vmem>>, vector<1x32x32xf32>
    %143 = vector.shape_cast %142 : vector<1x32x32xf32> to vector<32x32xf32>
    %cst_100 = arith.constant dense<0.000000e+00> : vector<8x32xf32>
    %144 = tpu.matmul %141, %143, %cst_100 {dimension_numbers = #tpu.dot_dimension_numbers<[1], [0], [0], [1], [0, 0, 1, 1], [], []>} : vector<8x32xf32>, vector<32x32xf32>, vector<8x32xf32> -> vector<8x32xf32>
    %145 = arith.addf %144, %52 : vector<8x32xf32>
    %146 = vector.extract_strided_slice %26 {offsets = [2, 0], sizes = [1, 32], strides = [1, 1]} : vector<8x32xf32> to vector<1x32xf32>
    %147 = vector.extract_strided_slice %26 {offsets = [3, 0], sizes = [1, 32], strides = [1, 1]} : vector<8x32xf32> to vector<1x32xf32>
    %cst_101 = arith.constant dense<0.000000e+00> : vector<8xf32>
    %148 = vector.multi_reduction <add>, %145, %cst_101 [1] : vector<8x32xf32> to vector<8xf32>
    %149 = vector.shape_cast %148 : vector<8xf32> to vector<8x1xf32>
    %cst_102 = arith.constant 3.200000e+01 : f32
    %150 = vector.broadcast %cst_102 : f32 to vector<8x1xf32>
    %151 = arith.divf %149, %150 : vector<8x1xf32>
    %152 = vector.broadcast %151 : vector<8x1xf32> to vector<8x32xf32>
    %153 = arith.subf %145, %152 : vector<8x32xf32>
    %154 = arith.mulf %153, %153 : vector<8x32xf32>
    %cst_103 = arith.constant dense<0.000000e+00> : vector<8xf32>
    %155 = vector.multi_reduction <add>, %154, %cst_103 [1] : vector<8x32xf32> to vector<8xf32>
    %156 = vector.shape_cast %155 : vector<8xf32> to vector<8x1xf32>
    %cst_104 = arith.constant 3.200000e+01 : f32
    %157 = vector.broadcast %cst_104 : f32 to vector<8x1xf32>
    %158 = arith.divf %156, %157 : vector<8x1xf32>
    %cst_105 = arith.constant 9.99999974E-6 : f32
    %159 = vector.broadcast %cst_105 : f32 to vector<8x1xf32>
    %160 = arith.addf %158, %159 : vector<8x1xf32>
    %161 = math.rsqrt %160 : vector<8x1xf32>
    %162 = vector.broadcast %161 : vector<8x1xf32> to vector<8x32xf32>
    %163 = arith.mulf %153, %162 : vector<8x32xf32>
    %164 = vector.broadcast %146 : vector<1x32xf32> to vector<8x32xf32>
    %165 = arith.mulf %163, %164 : vector<8x32xf32>
    %166 = vector.broadcast %147 : vector<1x32xf32> to vector<8x32xf32>
    %167 = arith.addf %165, %166 : vector<8x32xf32>
    %c0_106 = arith.constant 0 : index
    %c0_107 = arith.constant 0 : index
    %c0_108 = arith.constant 0 : index
    %168 = vector.load %arg8[%c0_106, %c0_107, %c0_108] : memref<2x32x32xf32, #tpu.memory_space<vmem>>, vector<1x32x32xf32>
    %169 = vector.shape_cast %168 : vector<1x32x32xf32> to vector<32x32xf32>
    %cst_109 = arith.constant dense<0.000000e+00> : vector<8x32xf32>
    %170 = tpu.matmul %167, %169, %cst_109 {dimension_numbers = #tpu.dot_dimension_numbers<[1], [0], [0], [1], [0, 0, 1, 1], [], []>} : vector<8x32xf32>, vector<32x32xf32>, vector<8x32xf32> -> vector<8x32xf32>
    %171 = arith.addf %170, %167 : vector<8x32xf32>
    %172 = vector.extract_strided_slice %26 {offsets = [4, 0], sizes = [1, 32], strides = [1, 1]} : vector<8x32xf32> to vector<1x32xf32>
    %173 = vector.extract_strided_slice %26 {offsets = [5, 0], sizes = [1, 32], strides = [1, 1]} : vector<8x32xf32> to vector<1x32xf32>
    %cst_110 = arith.constant dense<0.000000e+00> : vector<8xf32>
    %174 = vector.multi_reduction <add>, %171, %cst_110 [1] : vector<8x32xf32> to vector<8xf32>
    %175 = vector.shape_cast %174 : vector<8xf32> to vector<8x1xf32>
    %cst_111 = arith.constant 3.200000e+01 : f32
    %176 = vector.broadcast %cst_111 : f32 to vector<8x1xf32>
    %177 = arith.divf %175, %176 : vector<8x1xf32>
    %178 = vector.broadcast %177 : vector<8x1xf32> to vector<8x32xf32>
    %179 = arith.subf %171, %178 : vector<8x32xf32>
    %180 = arith.mulf %179, %179 : vector<8x32xf32>
    %cst_112 = arith.constant dense<0.000000e+00> : vector<8xf32>
    %181 = vector.multi_reduction <add>, %180, %cst_112 [1] : vector<8x32xf32> to vector<8xf32>
    %182 = vector.shape_cast %181 : vector<8xf32> to vector<8x1xf32>
    %cst_113 = arith.constant 3.200000e+01 : f32
    %183 = vector.broadcast %cst_113 : f32 to vector<8x1xf32>
    %184 = arith.divf %182, %183 : vector<8x1xf32>
    %cst_114 = arith.constant 9.99999974E-6 : f32
    %185 = vector.broadcast %cst_114 : f32 to vector<8x1xf32>
    %186 = arith.addf %184, %185 : vector<8x1xf32>
    %187 = math.rsqrt %186 : vector<8x1xf32>
    %188 = vector.broadcast %187 : vector<8x1xf32> to vector<8x32xf32>
    %189 = arith.mulf %179, %188 : vector<8x32xf32>
    %190 = vector.broadcast %172 : vector<1x32xf32> to vector<8x32xf32>
    %191 = arith.mulf %189, %190 : vector<8x32xf32>
    %192 = vector.broadcast %173 : vector<1x32xf32> to vector<8x32xf32>
    %193 = arith.addf %191, %192 : vector<8x32xf32>
    %c0_115 = arith.constant 0 : index
    %c0_116 = arith.constant 0 : index
    %c0_117 = arith.constant 0 : index
    %194 = vector.load %arg10[%c0_115, %c0_116, %c0_117] : memref<2x32x64xf32, #tpu.memory_space<vmem>>, vector<1x32x64xf32>
    %195 = vector.shape_cast %194 : vector<1x32x64xf32> to vector<32x64xf32>
    %cst_118 = arith.constant dense<0.000000e+00> : vector<8x64xf32>
    %196 = tpu.matmul %193, %195, %cst_118 {dimension_numbers = #tpu.dot_dimension_numbers<[1], [0], [0], [1], [0, 0, 1, 1], [], []>} : vector<8x32xf32>, vector<32x64xf32>, vector<8x64xf32> -> vector<8x64xf32>
    %c0_119 = arith.constant 0 : index
    %c0_120 = arith.constant 0 : index
    %c0_121 = arith.constant 0 : index
    %197 = vector.load %arg11[%c0_119, %c0_120, %c0_121] : memref<2x1x64xf32, #tpu.memory_space<vmem>>, vector<1x1x64xf32>
    %198 = vector.shape_cast %197 : vector<1x1x64xf32> to vector<1x64xf32>
    %199 = vector.broadcast %198 : vector<1x64xf32> to vector<8x64xf32>
    %200 = arith.addf %196, %199 : vector<8x64xf32>
    %cst_122 = arith.constant 5.000000e-01 : f32
    %201 = vector.broadcast %cst_122 : f32 to vector<8x64xf32>
    %202 = arith.mulf %201, %200 : vector<8x64xf32>
    %cst_123 = arith.constant 0.707106769 : f32
    %203 = vector.broadcast %cst_123 : f32 to vector<8x64xf32>
    %204 = arith.mulf %200, %203 : vector<8x64xf32>
    %cst_124 = arith.constant 0.000000e+00 : f32
    %205 = vector.broadcast %cst_124 : f32 to vector<8x64xf32>
    %206 = arith.cmpf oge, %204, %205 : vector<8x64xf32>
    %cst_125 = arith.constant 1.000000e+00 : f32
    %cst_126 = arith.constant -1.000000e+00 : f32
    %207 = vector.broadcast %cst_125 : f32 to vector<8x64xf32>
    %208 = vector.broadcast %cst_126 : f32 to vector<8x64xf32>
    %209 = arith.select %206, %207, %208 : vector<8x64xi1>, vector<8x64xf32>
    %210 = math.absf %204 : vector<8x64xf32>
    %cst_127 = arith.constant 0.327591091 : f32
    %211 = vector.broadcast %cst_127 : f32 to vector<8x64xf32>
    %212 = arith.mulf %211, %210 : vector<8x64xf32>
    %cst_128 = arith.constant 1.000000e+00 : f32
    %213 = vector.broadcast %cst_128 : f32 to vector<8x64xf32>
    %214 = arith.addf %213, %212 : vector<8x64xf32>
    %cst_129 = arith.constant 1.000000e+00 : f32
    %215 = vector.broadcast %cst_129 : f32 to vector<8x64xf32>
    %216 = arith.divf %215, %214 : vector<8x64xf32>
    %cst_130 = arith.constant 1.06140542 : f32
    %217 = vector.broadcast %cst_130 : f32 to vector<8x64xf32>
    %218 = arith.mulf %217, %216 : vector<8x64xf32>
    %cst_131 = arith.constant -1.45315206 : f32
    %219 = vector.broadcast %cst_131 : f32 to vector<8x64xf32>
    %220 = arith.addf %218, %219 : vector<8x64xf32>
    %221 = arith.mulf %220, %216 : vector<8x64xf32>
    %cst_132 = arith.constant 1.42141378 : f32
    %222 = vector.broadcast %cst_132 : f32 to vector<8x64xf32>
    %223 = arith.addf %221, %222 : vector<8x64xf32>
    %224 = arith.mulf %223, %216 : vector<8x64xf32>
    %cst_133 = arith.constant -0.284496725 : f32
    %225 = vector.broadcast %cst_133 : f32 to vector<8x64xf32>
    %226 = arith.addf %224, %225 : vector<8x64xf32>
    %227 = arith.mulf %226, %216 : vector<8x64xf32>
    %cst_134 = arith.constant 0.254829586 : f32
    %228 = vector.broadcast %cst_134 : f32 to vector<8x64xf32>
    %229 = arith.addf %227, %228 : vector<8x64xf32>
    %230 = arith.mulf %229, %216 : vector<8x64xf32>
    %cst_135 = arith.constant 0.000000e+00 : f32
    %231 = vector.broadcast %cst_135 : f32 to vector<8x64xf32>
    %232 = arith.subf %231, %210 : vector<8x64xf32>
    %233 = arith.mulf %232, %210 : vector<8x64xf32>
    %234 = math.exp %233 : vector<8x64xf32>
    %235 = arith.mulf %230, %234 : vector<8x64xf32>
    %cst_136 = arith.constant 1.000000e+00 : f32
    %236 = vector.broadcast %cst_136 : f32 to vector<8x64xf32>
    %237 = arith.subf %236, %235 : vector<8x64xf32>
    %238 = arith.mulf %209, %237 : vector<8x64xf32>
    %cst_137 = arith.constant 1.000000e+00 : f32
    %239 = vector.broadcast %cst_137 : f32 to vector<8x64xf32>
    %240 = arith.addf %239, %238 : vector<8x64xf32>
    %241 = arith.mulf %202, %240 : vector<8x64xf32>
    %c0_138 = arith.constant 0 : index
    %c0_139 = arith.constant 0 : index
    %c0_140 = arith.constant 0 : index
    %242 = vector.load %arg12[%c0_138, %c0_139, %c0_140] : memref<2x64x32xf32, #tpu.memory_space<vmem>>, vector<1x64x32xf32>
    %243 = vector.shape_cast %242 : vector<1x64x32xf32> to vector<64x32xf32>
    %cst_141 = arith.constant dense<0.000000e+00> : vector<8x32xf32>
    %244 = tpu.matmul %241, %243, %cst_141 {dimension_numbers = #tpu.dot_dimension_numbers<[1], [0], [0], [1], [0, 0, 1, 1], [], []>} : vector<8x64xf32>, vector<64x32xf32>, vector<8x32xf32> -> vector<8x32xf32>
    %c0_142 = arith.constant 0 : index
    %c0_143 = arith.constant 0 : index
    %c0_144 = arith.constant 0 : index
    %245 = vector.load %arg13[%c0_142, %c0_143, %c0_144] : memref<2x1x32xf32, #tpu.memory_space<vmem>>, vector<1x1x32xf32>
    %246 = vector.shape_cast %245 : vector<1x1x32xf32> to vector<1x32xf32>
    %247 = vector.broadcast %246 : vector<1x32xf32> to vector<8x32xf32>
    %248 = arith.addf %244, %247 : vector<8x32xf32>
    %249 = arith.addf %248, %193 : vector<8x32xf32>
    %250 = vector.extract_strided_slice %26 {offsets = [6, 0], sizes = [1, 32], strides = [1, 1]} : vector<8x32xf32> to vector<1x32xf32>
    %251 = vector.extract_strided_slice %26 {offsets = [7, 0], sizes = [1, 32], strides = [1, 1]} : vector<8x32xf32> to vector<1x32xf32>
    %cst_145 = arith.constant dense<0.000000e+00> : vector<8xf32>
    %252 = vector.multi_reduction <add>, %249, %cst_145 [1] : vector<8x32xf32> to vector<8xf32>
    %253 = vector.shape_cast %252 : vector<8xf32> to vector<8x1xf32>
    %cst_146 = arith.constant 3.200000e+01 : f32
    %254 = vector.broadcast %cst_146 : f32 to vector<8x1xf32>
    %255 = arith.divf %253, %254 : vector<8x1xf32>
    %256 = vector.broadcast %255 : vector<8x1xf32> to vector<8x32xf32>
    %257 = arith.subf %249, %256 : vector<8x32xf32>
    %258 = arith.mulf %257, %257 : vector<8x32xf32>
    %cst_147 = arith.constant dense<0.000000e+00> : vector<8xf32>
    %259 = vector.multi_reduction <add>, %258, %cst_147 [1] : vector<8x32xf32> to vector<8xf32>
    %260 = vector.shape_cast %259 : vector<8xf32> to vector<8x1xf32>
    %cst_148 = arith.constant 3.200000e+01 : f32
    %261 = vector.broadcast %cst_148 : f32 to vector<8x1xf32>
    %262 = arith.divf %260, %261 : vector<8x1xf32>
    %cst_149 = arith.constant 9.99999974E-6 : f32
    %263 = vector.broadcast %cst_149 : f32 to vector<8x1xf32>
    %264 = arith.addf %262, %263 : vector<8x1xf32>
    %265 = math.rsqrt %264 : vector<8x1xf32>
    %266 = vector.broadcast %265 : vector<8x1xf32> to vector<8x32xf32>
    %267 = arith.mulf %257, %266 : vector<8x32xf32>
    %268 = vector.broadcast %250 : vector<1x32xf32> to vector<8x32xf32>
    %269 = arith.mulf %267, %268 : vector<8x32xf32>
    %270 = vector.broadcast %251 : vector<1x32xf32> to vector<8x32xf32>
    %271 = arith.addf %269, %270 : vector<8x32xf32>
    %c1_150 = arith.constant 1 : index
    %c0_151 = arith.constant 0 : index
    %c0_152 = arith.constant 0 : index
    %272 = vector.load %arg9[%c1_150, %c0_151, %c0_152] : memref<2x8x32xf32, #tpu.memory_space<vmem>>, vector<1x8x32xf32>
    %273 = vector.shape_cast %272 : vector<1x8x32xf32> to vector<8x32xf32>
    %c1_153 = arith.constant 1 : index
    %c0_154 = arith.constant 0 : index
    %c0_155 = arith.constant 0 : index
    %274 = vector.load %arg3[%c1_153, %c0_154, %c0_155] : memref<2x32x32xf32, #tpu.memory_space<vmem>>, vector<1x32x32xf32>
    %275 = vector.shape_cast %274 : vector<1x32x32xf32> to vector<32x32xf32>
    %cst_156 = arith.constant dense<0.000000e+00> : vector<8x32xf32>
    %276 = tpu.matmul %271, %275, %cst_156 {dimension_numbers = #tpu.dot_dimension_numbers<[1], [0], [0], [1], [0, 0, 1, 1], [], []>} : vector<8x32xf32>, vector<32x32xf32>, vector<8x32xf32> -> vector<8x32xf32>
    %277 = arith.addf %276, %271 : vector<8x32xf32>
    %278 = vector.extract_strided_slice %273 {offsets = [0, 0], sizes = [1, 32], strides = [1, 1]} : vector<8x32xf32> to vector<1x32xf32>
    %279 = vector.extract_strided_slice %273 {offsets = [1, 0], sizes = [1, 32], strides = [1, 1]} : vector<8x32xf32> to vector<1x32xf32>
    %cst_157 = arith.constant dense<0.000000e+00> : vector<8xf32>
    %280 = vector.multi_reduction <add>, %277, %cst_157 [1] : vector<8x32xf32> to vector<8xf32>
    %281 = vector.shape_cast %280 : vector<8xf32> to vector<8x1xf32>
    %cst_158 = arith.constant 3.200000e+01 : f32
    %282 = vector.broadcast %cst_158 : f32 to vector<8x1xf32>
    %283 = arith.divf %281, %282 : vector<8x1xf32>
    %284 = vector.broadcast %283 : vector<8x1xf32> to vector<8x32xf32>
    %285 = arith.subf %277, %284 : vector<8x32xf32>
    %286 = arith.mulf %285, %285 : vector<8x32xf32>
    %cst_159 = arith.constant dense<0.000000e+00> : vector<8xf32>
    %287 = vector.multi_reduction <add>, %286, %cst_159 [1] : vector<8x32xf32> to vector<8xf32>
    %288 = vector.shape_cast %287 : vector<8xf32> to vector<8x1xf32>
    %cst_160 = arith.constant 3.200000e+01 : f32
    %289 = vector.broadcast %cst_160 : f32 to vector<8x1xf32>
    %290 = arith.divf %288, %289 : vector<8x1xf32>
    %cst_161 = arith.constant 9.99999974E-6 : f32
    %291 = vector.broadcast %cst_161 : f32 to vector<8x1xf32>
    %292 = arith.addf %290, %291 : vector<8x1xf32>
    %293 = math.rsqrt %292 : vector<8x1xf32>
    %294 = vector.broadcast %293 : vector<8x1xf32> to vector<8x32xf32>
    %295 = arith.mulf %285, %294 : vector<8x32xf32>
    %296 = vector.broadcast %278 : vector<1x32xf32> to vector<8x32xf32>
    %297 = arith.mulf %295, %296 : vector<8x32xf32>
    %298 = vector.broadcast %279 : vector<1x32xf32> to vector<8x32xf32>
    %299 = arith.addf %297, %298 : vector<8x32xf32>
    %c1_162 = arith.constant 1 : index
    %c0_163 = arith.constant 0 : index
    %c0_164 = arith.constant 0 : index
    %c0_165 = arith.constant 0 : index
    %300 = vector.load %arg4[%c1_162, %c0_163, %c0_164, %c0_165] : memref<2x4x32x8xf32, #tpu.memory_space<vmem>>, vector<1x1x32x8xf32>
    %301 = vector.shape_cast %300 : vector<1x1x32x8xf32> to vector<32x8xf32>
    %cst_166 = arith.constant dense<0.000000e+00> : vector<8x8xf32>
    %302 = tpu.matmul %299, %301, %cst_166 {dimension_numbers = #tpu.dot_dimension_numbers<[1], [0], [0], [1], [0, 0, 1, 1], [], []>} : vector<8x32xf32>, vector<32x8xf32>, vector<8x8xf32> -> vector<8x8xf32>
    %c1_167 = arith.constant 1 : index
    %c0_168 = arith.constant 0 : index
    %c0_169 = arith.constant 0 : index
    %c0_170 = arith.constant 0 : index
    %303 = vector.load %arg5[%c1_167, %c0_168, %c0_169, %c0_170] : memref<2x4x32x8xf32, #tpu.memory_space<vmem>>, vector<1x1x32x8xf32>
    %304 = vector.shape_cast %303 : vector<1x1x32x8xf32> to vector<32x8xf32>
    %cst_171 = arith.constant dense<0.000000e+00> : vector<8x8xf32>
    %305 = tpu.matmul %271, %304, %cst_171 {dimension_numbers = #tpu.dot_dimension_numbers<[1], [0], [0], [1], [0, 0, 1, 1], [], []>} : vector<8x32xf32>, vector<32x8xf32>, vector<8x8xf32> -> vector<8x8xf32>
    %c1_172 = arith.constant 1 : index
    %c0_173 = arith.constant 0 : index
    %c0_174 = arith.constant 0 : index
    %c0_175 = arith.constant 0 : index
    %306 = vector.load %arg6[%c1_172, %c0_173, %c0_174, %c0_175] : memref<2x4x32x8xf32, #tpu.memory_space<vmem>>, vector<1x1x32x8xf32>
    %307 = vector.shape_cast %306 : vector<1x1x32x8xf32> to vector<32x8xf32>
    %cst_176 = arith.constant dense<0.000000e+00> : vector<8x8xf32>
    %308 = tpu.matmul %271, %307, %cst_176 {dimension_numbers = #tpu.dot_dimension_numbers<[1], [0], [0], [1], [0, 0, 1, 1], [], []>} : vector<8x32xf32>, vector<32x8xf32>, vector<8x8xf32> -> vector<8x8xf32>
    "tpu.trace_start"() <{level = 10 : i32, message = "qd,kd->qk"}> : () -> ()
    %cst_177 = arith.constant dense<0.000000e+00> : vector<8x8xf32>
    %309 = tpu.matmul %302, %305, %cst_177 {dimension_numbers = #tpu.dot_dimension_numbers<[1], [1], [0], [0], [0, 0, 1, 0], [], []>} : vector<8x8xf32>, vector<8x8xf32>, vector<8x8xf32> -> vector<8x8xf32>
    "tpu.trace_stop"() : () -> ()
    %cst_178 = arith.constant 0.353553385 : f32
    %310 = vector.broadcast %cst_178 : f32 to vector<8x8xf32>
    %311 = arith.mulf %309, %310 : vector<8x8xf32>
    %cst_179 = arith.constant dense<0xFF800000> : vector<8xf32>
    %312 = vector.multi_reduction <maximumf>, %311, %cst_179 [1] : vector<8x8xf32> to vector<8xf32>
    %313 = vector.shape_cast %312 : vector<8xf32> to vector<8x1xf32>
    %314 = vector.broadcast %313 : vector<8x1xf32> to vector<8x8xf32>
    %315 = arith.subf %311, %314 : vector<8x8xf32>
    %316 = math.exp %315 : vector<8x8xf32>
    %cst_180 = arith.constant dense<0.000000e+00> : vector<8xf32>
    %317 = vector.multi_reduction <add>, %316, %cst_180 [1] : vector<8x8xf32> to vector<8xf32>
    %318 = vector.shape_cast %317 : vector<8xf32> to vector<8x1xf32>
    %319 = vector.broadcast %318 : vector<8x1xf32> to vector<8x8xf32>
    %320 = arith.divf %316, %319 : vector<8x8xf32>
    %cst_181 = arith.constant dense<0.000000e+00> : vector<8x8xf32>
    %321 = tpu.matmul %320, %308, %cst_181 {dimension_numbers = #tpu.dot_dimension_numbers<[1], [0], [0], [1], [0, 0, 1, 1], [], []>} : vector<8x8xf32>, vector<8x8xf32>, vector<8x8xf32> -> vector<8x8xf32>
    %c1_182 = arith.constant 1 : index
    %c1_183 = arith.constant 1 : index
    %c0_184 = arith.constant 0 : index
    %c0_185 = arith.constant 0 : index
    %322 = vector.load %arg4[%c1_182, %c1_183, %c0_184, %c0_185] : memref<2x4x32x8xf32, #tpu.memory_space<vmem>>, vector<1x1x32x8xf32>
    %323 = vector.shape_cast %322 : vector<1x1x32x8xf32> to vector<32x8xf32>
    %cst_186 = arith.constant dense<0.000000e+00> : vector<8x8xf32>
    %324 = tpu.matmul %299, %323, %cst_186 {dimension_numbers = #tpu.dot_dimension_numbers<[1], [0], [0], [1], [0, 0, 1, 1], [], []>} : vector<8x32xf32>, vector<32x8xf32>, vector<8x8xf32> -> vector<8x8xf32>
    %c1_187 = arith.constant 1 : index
    %c1_188 = arith.constant 1 : index
    %c0_189 = arith.constant 0 : index
    %c0_190 = arith.constant 0 : index
    %325 = vector.load %arg5[%c1_187, %c1_188, %c0_189, %c0_190] : memref<2x4x32x8xf32, #tpu.memory_space<vmem>>, vector<1x1x32x8xf32>
    %326 = vector.shape_cast %325 : vector<1x1x32x8xf32> to vector<32x8xf32>
    %cst_191 = arith.constant dense<0.000000e+00> : vector<8x8xf32>
    %327 = tpu.matmul %271, %326, %cst_191 {dimension_numbers = #tpu.dot_dimension_numbers<[1], [0], [0], [1], [0, 0, 1, 1], [], []>} : vector<8x32xf32>, vector<32x8xf32>, vector<8x8xf32> -> vector<8x8xf32>
    %c1_192 = arith.constant 1 : index
    %c1_193 = arith.constant 1 : index
    %c0_194 = arith.constant 0 : index
    %c0_195 = arith.constant 0 : index
    %328 = vector.load %arg6[%c1_192, %c1_193, %c0_194, %c0_195] : memref<2x4x32x8xf32, #tpu.memory_space<vmem>>, vector<1x1x32x8xf32>
    %329 = vector.shape_cast %328 : vector<1x1x32x8xf32> to vector<32x8xf32>
    %cst_196 = arith.constant dense<0.000000e+00> : vector<8x8xf32>
    %330 = tpu.matmul %271, %329, %cst_196 {dimension_numbers = #tpu.dot_dimension_numbers<[1], [0], [0], [1], [0, 0, 1, 1], [], []>} : vector<8x32xf32>, vector<32x8xf32>, vector<8x8xf32> -> vector<8x8xf32>
    "tpu.trace_start"() <{level = 10 : i32, message = "qd,kd->qk"}> : () -> ()
    %cst_197 = arith.constant dense<0.000000e+00> : vector<8x8xf32>
    %331 = tpu.matmul %324, %327, %cst_197 {dimension_numbers = #tpu.dot_dimension_numbers<[1], [1], [0], [0], [0, 0, 1, 0], [], []>} : vector<8x8xf32>, vector<8x8xf32>, vector<8x8xf32> -> vector<8x8xf32>
    "tpu.trace_stop"() : () -> ()
    %cst_198 = arith.constant 0.353553385 : f32
    %332 = vector.broadcast %cst_198 : f32 to vector<8x8xf32>
    %333 = arith.mulf %331, %332 : vector<8x8xf32>
    %cst_199 = arith.constant dense<0xFF800000> : vector<8xf32>
    %334 = vector.multi_reduction <maximumf>, %333, %cst_199 [1] : vector<8x8xf32> to vector<8xf32>
    %335 = vector.shape_cast %334 : vector<8xf32> to vector<8x1xf32>
    %336 = vector.broadcast %335 : vector<8x1xf32> to vector<8x8xf32>
    %337 = arith.subf %333, %336 : vector<8x8xf32>
    %338 = math.exp %337 : vector<8x8xf32>
    %cst_200 = arith.constant dense<0.000000e+00> : vector<8xf32>
    %339 = vector.multi_reduction <add>, %338, %cst_200 [1] : vector<8x8xf32> to vector<8xf32>
    %340 = vector.shape_cast %339 : vector<8xf32> to vector<8x1xf32>
    %341 = vector.broadcast %340 : vector<8x1xf32> to vector<8x8xf32>
    %342 = arith.divf %338, %341 : vector<8x8xf32>
    %cst_201 = arith.constant dense<0.000000e+00> : vector<8x8xf32>
    %343 = tpu.matmul %342, %330, %cst_201 {dimension_numbers = #tpu.dot_dimension_numbers<[1], [0], [0], [1], [0, 0, 1, 1], [], []>} : vector<8x8xf32>, vector<8x8xf32>, vector<8x8xf32> -> vector<8x8xf32>
    %c1_202 = arith.constant 1 : index
    %c2_203 = arith.constant 2 : index
    %c0_204 = arith.constant 0 : index
    %c0_205 = arith.constant 0 : index
    %344 = vector.load %arg4[%c1_202, %c2_203, %c0_204, %c0_205] : memref<2x4x32x8xf32, #tpu.memory_space<vmem>>, vector<1x1x32x8xf32>
    %345 = vector.shape_cast %344 : vector<1x1x32x8xf32> to vector<32x8xf32>
    %cst_206 = arith.constant dense<0.000000e+00> : vector<8x8xf32>
    %346 = tpu.matmul %299, %345, %cst_206 {dimension_numbers = #tpu.dot_dimension_numbers<[1], [0], [0], [1], [0, 0, 1, 1], [], []>} : vector<8x32xf32>, vector<32x8xf32>, vector<8x8xf32> -> vector<8x8xf32>
    %c1_207 = arith.constant 1 : index
    %c2_208 = arith.constant 2 : index
    %c0_209 = arith.constant 0 : index
    %c0_210 = arith.constant 0 : index
    %347 = vector.load %arg5[%c1_207, %c2_208, %c0_209, %c0_210] : memref<2x4x32x8xf32, #tpu.memory_space<vmem>>, vector<1x1x32x8xf32>
    %348 = vector.shape_cast %347 : vector<1x1x32x8xf32> to vector<32x8xf32>
    %cst_211 = arith.constant dense<0.000000e+00> : vector<8x8xf32>
    %349 = tpu.matmul %271, %348, %cst_211 {dimension_numbers = #tpu.dot_dimension_numbers<[1], [0], [0], [1], [0, 0, 1, 1], [], []>} : vector<8x32xf32>, vector<32x8xf32>, vector<8x8xf32> -> vector<8x8xf32>
    %c1_212 = arith.constant 1 : index
    %c2_213 = arith.constant 2 : index
    %c0_214 = arith.constant 0 : index
    %c0_215 = arith.constant 0 : index
    %350 = vector.load %arg6[%c1_212, %c2_213, %c0_214, %c0_215] : memref<2x4x32x8xf32, #tpu.memory_space<vmem>>, vector<1x1x32x8xf32>
    %351 = vector.shape_cast %350 : vector<1x1x32x8xf32> to vector<32x8xf32>
    %cst_216 = arith.constant dense<0.000000e+00> : vector<8x8xf32>
    %352 = tpu.matmul %271, %351, %cst_216 {dimension_numbers = #tpu.dot_dimension_numbers<[1], [0], [0], [1], [0, 0, 1, 1], [], []>} : vector<8x32xf32>, vector<32x8xf32>, vector<8x8xf32> -> vector<8x8xf32>
    "tpu.trace_start"() <{level = 10 : i32, message = "qd,kd->qk"}> : () -> ()
    %cst_217 = arith.constant dense<0.000000e+00> : vector<8x8xf32>
    %353 = tpu.matmul %346, %349, %cst_217 {dimension_numbers = #tpu.dot_dimension_numbers<[1], [1], [0], [0], [0, 0, 1, 0], [], []>} : vector<8x8xf32>, vector<8x8xf32>, vector<8x8xf32> -> vector<8x8xf32>
    "tpu.trace_stop"() : () -> ()
    %cst_218 = arith.constant 0.353553385 : f32
    %354 = vector.broadcast %cst_218 : f32 to vector<8x8xf32>
    %355 = arith.mulf %353, %354 : vector<8x8xf32>
    %cst_219 = arith.constant dense<0xFF800000> : vector<8xf32>
    %356 = vector.multi_reduction <maximumf>, %355, %cst_219 [1] : vector<8x8xf32> to vector<8xf32>
    %357 = vector.shape_cast %356 : vector<8xf32> to vector<8x1xf32>
    %358 = vector.broadcast %357 : vector<8x1xf32> to vector<8x8xf32>
    %359 = arith.subf %355, %358 : vector<8x8xf32>
    %360 = math.exp %359 : vector<8x8xf32>
    %cst_220 = arith.constant dense<0.000000e+00> : vector<8xf32>
    %361 = vector.multi_reduction <add>, %360, %cst_220 [1] : vector<8x8xf32> to vector<8xf32>
    %362 = vector.shape_cast %361 : vector<8xf32> to vector<8x1xf32>
    %363 = vector.broadcast %362 : vector<8x1xf32> to vector<8x8xf32>
    %364 = arith.divf %360, %363 : vector<8x8xf32>
    %cst_221 = arith.constant dense<0.000000e+00> : vector<8x8xf32>
    %365 = tpu.matmul %364, %352, %cst_221 {dimension_numbers = #tpu.dot_dimension_numbers<[1], [0], [0], [1], [0, 0, 1, 1], [], []>} : vector<8x8xf32>, vector<8x8xf32>, vector<8x8xf32> -> vector<8x8xf32>
    %c1_222 = arith.constant 1 : index
    %c3_223 = arith.constant 3 : index
    %c0_224 = arith.constant 0 : index
    %c0_225 = arith.constant 0 : index
    %366 = vector.load %arg4[%c1_222, %c3_223, %c0_224, %c0_225] : memref<2x4x32x8xf32, #tpu.memory_space<vmem>>, vector<1x1x32x8xf32>
    %367 = vector.shape_cast %366 : vector<1x1x32x8xf32> to vector<32x8xf32>
    %cst_226 = arith.constant dense<0.000000e+00> : vector<8x8xf32>
    %368 = tpu.matmul %299, %367, %cst_226 {dimension_numbers = #tpu.dot_dimension_numbers<[1], [0], [0], [1], [0, 0, 1, 1], [], []>} : vector<8x32xf32>, vector<32x8xf32>, vector<8x8xf32> -> vector<8x8xf32>
    %c1_227 = arith.constant 1 : index
    %c3_228 = arith.constant 3 : index
    %c0_229 = arith.constant 0 : index
    %c0_230 = arith.constant 0 : index
    %369 = vector.load %arg5[%c1_227, %c3_228, %c0_229, %c0_230] : memref<2x4x32x8xf32, #tpu.memory_space<vmem>>, vector<1x1x32x8xf32>
    %370 = vector.shape_cast %369 : vector<1x1x32x8xf32> to vector<32x8xf32>
    %cst_231 = arith.constant dense<0.000000e+00> : vector<8x8xf32>
    %371 = tpu.matmul %271, %370, %cst_231 {dimension_numbers = #tpu.dot_dimension_numbers<[1], [0], [0], [1], [0, 0, 1, 1], [], []>} : vector<8x32xf32>, vector<32x8xf32>, vector<8x8xf32> -> vector<8x8xf32>
    %c1_232 = arith.constant 1 : index
    %c3_233 = arith.constant 3 : index
    %c0_234 = arith.constant 0 : index
    %c0_235 = arith.constant 0 : index
    %372 = vector.load %arg6[%c1_232, %c3_233, %c0_234, %c0_235] : memref<2x4x32x8xf32, #tpu.memory_space<vmem>>, vector<1x1x32x8xf32>
    %373 = vector.shape_cast %372 : vector<1x1x32x8xf32> to vector<32x8xf32>
    %cst_236 = arith.constant dense<0.000000e+00> : vector<8x8xf32>
    %374 = tpu.matmul %271, %373, %cst_236 {dimension_numbers = #tpu.dot_dimension_numbers<[1], [0], [0], [1], [0, 0, 1, 1], [], []>} : vector<8x32xf32>, vector<32x8xf32>, vector<8x8xf32> -> vector<8x8xf32>
    "tpu.trace_start"() <{level = 10 : i32, message = "qd,kd->qk"}> : () -> ()
    %cst_237 = arith.constant dense<0.000000e+00> : vector<8x8xf32>
    %375 = tpu.matmul %368, %371, %cst_237 {dimension_numbers = #tpu.dot_dimension_numbers<[1], [1], [0], [0], [0, 0, 1, 0], [], []>} : vector<8x8xf32>, vector<8x8xf32>, vector<8x8xf32> -> vector<8x8xf32>
    "tpu.trace_stop"() : () -> ()
    %cst_238 = arith.constant 0.353553385 : f32
    %376 = vector.broadcast %cst_238 : f32 to vector<8x8xf32>
    %377 = arith.mulf %375, %376 : vector<8x8xf32>
    %cst_239 = arith.constant dense<0xFF800000> : vector<8xf32>
    %378 = vector.multi_reduction <maximumf>, %377, %cst_239 [1] : vector<8x8xf32> to vector<8xf32>
    %379 = vector.shape_cast %378 : vector<8xf32> to vector<8x1xf32>
    %380 = vector.broadcast %379 : vector<8x1xf32> to vector<8x8xf32>
    %381 = arith.subf %377, %380 : vector<8x8xf32>
    %382 = math.exp %381 : vector<8x8xf32>
    %cst_240 = arith.constant dense<0.000000e+00> : vector<8xf32>
    %383 = vector.multi_reduction <add>, %382, %cst_240 [1] : vector<8x8xf32> to vector<8xf32>
    %384 = vector.shape_cast %383 : vector<8xf32> to vector<8x1xf32>
    %385 = vector.broadcast %384 : vector<8x1xf32> to vector<8x8xf32>
    %386 = arith.divf %382, %385 : vector<8x8xf32>
    %cst_241 = arith.constant dense<0.000000e+00> : vector<8x8xf32>
    %387 = tpu.matmul %386, %374, %cst_241 {dimension_numbers = #tpu.dot_dimension_numbers<[1], [0], [0], [1], [0, 0, 1, 1], [], []>} : vector<8x8xf32>, vector<8x8xf32>, vector<8x8xf32> -> vector<8x8xf32>
    %388 = tpu.concatenate %321, %343, %365, %387 in 1 : vector<8x8xf32>, vector<8x8xf32>, vector<8x8xf32>, vector<8x8xf32> -> vector<8x32xf32>
    %c1_242 = arith.constant 1 : index
    %c0_243 = arith.constant 0 : index
    %c0_244 = arith.constant 0 : index
    %389 = vector.load %arg7[%c1_242, %c0_243, %c0_244] : memref<2x32x32xf32, #tpu.memory_space<vmem>>, vector<1x32x32xf32>
    %390 = vector.shape_cast %389 : vector<1x32x32xf32> to vector<32x32xf32>
    %cst_245 = arith.constant dense<0.000000e+00> : vector<8x32xf32>
    %391 = tpu.matmul %388, %390, %cst_245 {dimension_numbers = #tpu.dot_dimension_numbers<[1], [0], [0], [1], [0, 0, 1, 1], [], []>} : vector<8x32xf32>, vector<32x32xf32>, vector<8x32xf32> -> vector<8x32xf32>
    %392 = arith.addf %391, %299 : vector<8x32xf32>
    %393 = vector.extract_strided_slice %273 {offsets = [2, 0], sizes = [1, 32], strides = [1, 1]} : vector<8x32xf32> to vector<1x32xf32>
    %394 = vector.extract_strided_slice %273 {offsets = [3, 0], sizes = [1, 32], strides = [1, 1]} : vector<8x32xf32> to vector<1x32xf32>
    %cst_246 = arith.constant dense<0.000000e+00> : vector<8xf32>
    %395 = vector.multi_reduction <add>, %392, %cst_246 [1] : vector<8x32xf32> to vector<8xf32>
    %396 = vector.shape_cast %395 : vector<8xf32> to vector<8x1xf32>
    %cst_247 = arith.constant 3.200000e+01 : f32
    %397 = vector.broadcast %cst_247 : f32 to vector<8x1xf32>
    %398 = arith.divf %396, %397 : vector<8x1xf32>
    %399 = vector.broadcast %398 : vector<8x1xf32> to vector<8x32xf32>
    %400 = arith.subf %392, %399 : vector<8x32xf32>
    %401 = arith.mulf %400, %400 : vector<8x32xf32>
    %cst_248 = arith.constant dense<0.000000e+00> : vector<8xf32>
    %402 = vector.multi_reduction <add>, %401, %cst_248 [1] : vector<8x32xf32> to vector<8xf32>
    %403 = vector.shape_cast %402 : vector<8xf32> to vector<8x1xf32>
    %cst_249 = arith.constant 3.200000e+01 : f32
    %404 = vector.broadcast %cst_249 : f32 to vector<8x1xf32>
    %405 = arith.divf %403, %404 : vector<8x1xf32>
    %cst_250 = arith.constant 9.99999974E-6 : f32
    %406 = vector.broadcast %cst_250 : f32 to vector<8x1xf32>
    %407 = arith.addf %405, %406 : vector<8x1xf32>
    %408 = math.rsqrt %407 : vector<8x1xf32>
    %409 = vector.broadcast %408 : vector<8x1xf32> to vector<8x32xf32>
    %410 = arith.mulf %400, %409 : vector<8x32xf32>
    %411 = vector.broadcast %393 : vector<1x32xf32> to vector<8x32xf32>
    %412 = arith.mulf %410, %411 : vector<8x32xf32>
    %413 = vector.broadcast %394 : vector<1x32xf32> to vector<8x32xf32>
    %414 = arith.addf %412, %413 : vector<8x32xf32>
    %c1_251 = arith.constant 1 : index
    %c0_252 = arith.constant 0 : index
    %c0_253 = arith.constant 0 : index
    %415 = vector.load %arg8[%c1_251, %c0_252, %c0_253] : memref<2x32x32xf32, #tpu.memory_space<vmem>>, vector<1x32x32xf32>
    %416 = vector.shape_cast %415 : vector<1x32x32xf32> to vector<32x32xf32>
    %cst_254 = arith.constant dense<0.000000e+00> : vector<8x32xf32>
    %417 = tpu.matmul %414, %416, %cst_254 {dimension_numbers = #tpu.dot_dimension_numbers<[1], [0], [0], [1], [0, 0, 1, 1], [], []>} : vector<8x32xf32>, vector<32x32xf32>, vector<8x32xf32> -> vector<8x32xf32>
    %418 = arith.addf %417, %414 : vector<8x32xf32>
    %419 = vector.extract_strided_slice %273 {offsets = [4, 0], sizes = [1, 32], strides = [1, 1]} : vector<8x32xf32> to vector<1x32xf32>
    %420 = vector.extract_strided_slice %273 {offsets = [5, 0], sizes = [1, 32], strides = [1, 1]} : vector<8x32xf32> to vector<1x32xf32>
    %cst_255 = arith.constant dense<0.000000e+00> : vector<8xf32>
    %421 = vector.multi_reduction <add>, %418, %cst_255 [1] : vector<8x32xf32> to vector<8xf32>
    %422 = vector.shape_cast %421 : vector<8xf32> to vector<8x1xf32>
    %cst_256 = arith.constant 3.200000e+01 : f32
    %423 = vector.broadcast %cst_256 : f32 to vector<8x1xf32>
    %424 = arith.divf %422, %423 : vector<8x1xf32>
    %425 = vector.broadcast %424 : vector<8x1xf32> to vector<8x32xf32>
    %426 = arith.subf %418, %425 : vector<8x32xf32>
    %427 = arith.mulf %426, %426 : vector<8x32xf32>
    %cst_257 = arith.constant dense<0.000000e+00> : vector<8xf32>
    %428 = vector.multi_reduction <add>, %427, %cst_257 [1] : vector<8x32xf32> to vector<8xf32>
    %429 = vector.shape_cast %428 : vector<8xf32> to vector<8x1xf32>
    %cst_258 = arith.constant 3.200000e+01 : f32
    %430 = vector.broadcast %cst_258 : f32 to vector<8x1xf32>
    %431 = arith.divf %429, %430 : vector<8x1xf32>
    %cst_259 = arith.constant 9.99999974E-6 : f32
    %432 = vector.broadcast %cst_259 : f32 to vector<8x1xf32>
    %433 = arith.addf %431, %432 : vector<8x1xf32>
    %434 = math.rsqrt %433 : vector<8x1xf32>
    %435 = vector.broadcast %434 : vector<8x1xf32> to vector<8x32xf32>
    %436 = arith.mulf %426, %435 : vector<8x32xf32>
    %437 = vector.broadcast %419 : vector<1x32xf32> to vector<8x32xf32>
    %438 = arith.mulf %436, %437 : vector<8x32xf32>
    %439 = vector.broadcast %420 : vector<1x32xf32> to vector<8x32xf32>
    %440 = arith.addf %438, %439 : vector<8x32xf32>
    %c1_260 = arith.constant 1 : index
    %c0_261 = arith.constant 0 : index
    %c0_262 = arith.constant 0 : index
    %441 = vector.load %arg10[%c1_260, %c0_261, %c0_262] : memref<2x32x64xf32, #tpu.memory_space<vmem>>, vector<1x32x64xf32>
    %442 = vector.shape_cast %441 : vector<1x32x64xf32> to vector<32x64xf32>
    %cst_263 = arith.constant dense<0.000000e+00> : vector<8x64xf32>
    %443 = tpu.matmul %440, %442, %cst_263 {dimension_numbers = #tpu.dot_dimension_numbers<[1], [0], [0], [1], [0, 0, 1, 1], [], []>} : vector<8x32xf32>, vector<32x64xf32>, vector<8x64xf32> -> vector<8x64xf32>
    %c1_264 = arith.constant 1 : index
    %c0_265 = arith.constant 0 : index
    %c0_266 = arith.constant 0 : index
    %444 = vector.load %arg11[%c1_264, %c0_265, %c0_266] : memref<2x1x64xf32, #tpu.memory_space<vmem>>, vector<1x1x64xf32>
    %445 = vector.shape_cast %444 : vector<1x1x64xf32> to vector<1x64xf32>
    %446 = vector.broadcast %445 : vector<1x64xf32> to vector<8x64xf32>
    %447 = arith.addf %443, %446 : vector<8x64xf32>
    %cst_267 = arith.constant 5.000000e-01 : f32
    %448 = vector.broadcast %cst_267 : f32 to vector<8x64xf32>
    %449 = arith.mulf %448, %447 : vector<8x64xf32>
    %cst_268 = arith.constant 0.707106769 : f32
    %450 = vector.broadcast %cst_268 : f32 to vector<8x64xf32>
    %451 = arith.mulf %447, %450 : vector<8x64xf32>
    %cst_269 = arith.constant 0.000000e+00 : f32
    %452 = vector.broadcast %cst_269 : f32 to vector<8x64xf32>
    %453 = arith.cmpf oge, %451, %452 : vector<8x64xf32>
    %cst_270 = arith.constant 1.000000e+00 : f32
    %cst_271 = arith.constant -1.000000e+00 : f32
    %454 = vector.broadcast %cst_270 : f32 to vector<8x64xf32>
    %455 = vector.broadcast %cst_271 : f32 to vector<8x64xf32>
    %456 = arith.select %453, %454, %455 : vector<8x64xi1>, vector<8x64xf32>
    %457 = math.absf %451 : vector<8x64xf32>
    %cst_272 = arith.constant 0.327591091 : f32
    %458 = vector.broadcast %cst_272 : f32 to vector<8x64xf32>
    %459 = arith.mulf %458, %457 : vector<8x64xf32>
    %cst_273 = arith.constant 1.000000e+00 : f32
    %460 = vector.broadcast %cst_273 : f32 to vector<8x64xf32>
    %461 = arith.addf %460, %459 : vector<8x64xf32>
    %cst_274 = arith.constant 1.000000e+00 : f32
    %462 = vector.broadcast %cst_274 : f32 to vector<8x64xf32>
    %463 = arith.divf %462, %461 : vector<8x64xf32>
    %cst_275 = arith.constant 1.06140542 : f32
    %464 = vector.broadcast %cst_275 : f32 to vector<8x64xf32>
    %465 = arith.mulf %464, %463 : vector<8x64xf32>
    %cst_276 = arith.constant -1.45315206 : f32
    %466 = vector.broadcast %cst_276 : f32 to vector<8x64xf32>
    %467 = arith.addf %465, %466 : vector<8x64xf32>
    %468 = arith.mulf %467, %463 : vector<8x64xf32>
    %cst_277 = arith.constant 1.42141378 : f32
    %469 = vector.broadcast %cst_277 : f32 to vector<8x64xf32>
    %470 = arith.addf %468, %469 : vector<8x64xf32>
    %471 = arith.mulf %470, %463 : vector<8x64xf32>
    %cst_278 = arith.constant -0.284496725 : f32
    %472 = vector.broadcast %cst_278 : f32 to vector<8x64xf32>
    %473 = arith.addf %471, %472 : vector<8x64xf32>
    %474 = arith.mulf %473, %463 : vector<8x64xf32>
    %cst_279 = arith.constant 0.254829586 : f32
    %475 = vector.broadcast %cst_279 : f32 to vector<8x64xf32>
    %476 = arith.addf %474, %475 : vector<8x64xf32>
    %477 = arith.mulf %476, %463 : vector<8x64xf32>
    %cst_280 = arith.constant 0.000000e+00 : f32
    %478 = vector.broadcast %cst_280 : f32 to vector<8x64xf32>
    %479 = arith.subf %478, %457 : vector<8x64xf32>
    %480 = arith.mulf %479, %457 : vector<8x64xf32>
    %481 = math.exp %480 : vector<8x64xf32>
    %482 = arith.mulf %477, %481 : vector<8x64xf32>
    %cst_281 = arith.constant 1.000000e+00 : f32
    %483 = vector.broadcast %cst_281 : f32 to vector<8x64xf32>
    %484 = arith.subf %483, %482 : vector<8x64xf32>
    %485 = arith.mulf %456, %484 : vector<8x64xf32>
    %cst_282 = arith.constant 1.000000e+00 : f32
    %486 = vector.broadcast %cst_282 : f32 to vector<8x64xf32>
    %487 = arith.addf %486, %485 : vector<8x64xf32>
    %488 = arith.mulf %449, %487 : vector<8x64xf32>
    %c1_283 = arith.constant 1 : index
    %c0_284 = arith.constant 0 : index
    %c0_285 = arith.constant 0 : index
    %489 = vector.load %arg12[%c1_283, %c0_284, %c0_285] : memref<2x64x32xf32, #tpu.memory_space<vmem>>, vector<1x64x32xf32>
    %490 = vector.shape_cast %489 : vector<1x64x32xf32> to vector<64x32xf32>
    %cst_286 = arith.constant dense<0.000000e+00> : vector<8x32xf32>
    %491 = tpu.matmul %488, %490, %cst_286 {dimension_numbers = #tpu.dot_dimension_numbers<[1], [0], [0], [1], [0, 0, 1, 1], [], []>} : vector<8x64xf32>, vector<64x32xf32>, vector<8x32xf32> -> vector<8x32xf32>
    %c1_287 = arith.constant 1 : index
    %c0_288 = arith.constant 0 : index
    %c0_289 = arith.constant 0 : index
    %492 = vector.load %arg13[%c1_287, %c0_288, %c0_289] : memref<2x1x32xf32, #tpu.memory_space<vmem>>, vector<1x1x32xf32>
    %493 = vector.shape_cast %492 : vector<1x1x32xf32> to vector<1x32xf32>
    %494 = vector.broadcast %493 : vector<1x32xf32> to vector<8x32xf32>
    %495 = arith.addf %491, %494 : vector<8x32xf32>
    %496 = arith.addf %495, %440 : vector<8x32xf32>
    %497 = vector.extract_strided_slice %273 {offsets = [6, 0], sizes = [1, 32], strides = [1, 1]} : vector<8x32xf32> to vector<1x32xf32>
    %498 = vector.extract_strided_slice %273 {offsets = [7, 0], sizes = [1, 32], strides = [1, 1]} : vector<8x32xf32> to vector<1x32xf32>
    %cst_290 = arith.constant dense<0.000000e+00> : vector<8xf32>
    %499 = vector.multi_reduction <add>, %496, %cst_290 [1] : vector<8x32xf32> to vector<8xf32>
    %500 = vector.shape_cast %499 : vector<8xf32> to vector<8x1xf32>
    %cst_291 = arith.constant 3.200000e+01 : f32
    %501 = vector.broadcast %cst_291 : f32 to vector<8x1xf32>
    %502 = arith.divf %500, %501 : vector<8x1xf32>
    %503 = vector.broadcast %502 : vector<8x1xf32> to vector<8x32xf32>
    %504 = arith.subf %496, %503 : vector<8x32xf32>
    %505 = arith.mulf %504, %504 : vector<8x32xf32>
    %cst_292 = arith.constant dense<0.000000e+00> : vector<8xf32>
    %506 = vector.multi_reduction <add>, %505, %cst_292 [1] : vector<8x32xf32> to vector<8xf32>
    %507 = vector.shape_cast %506 : vector<8xf32> to vector<8x1xf32>
    %cst_293 = arith.constant 3.200000e+01 : f32
    %508 = vector.broadcast %cst_293 : f32 to vector<8x1xf32>
    %509 = arith.divf %507, %508 : vector<8x1xf32>
    %cst_294 = arith.constant 9.99999974E-6 : f32
    %510 = vector.broadcast %cst_294 : f32 to vector<8x1xf32>
    %511 = arith.addf %509, %510 : vector<8x1xf32>
    %512 = math.rsqrt %511 : vector<8x1xf32>
    %513 = vector.broadcast %512 : vector<8x1xf32> to vector<8x32xf32>
    %514 = arith.mulf %504, %513 : vector<8x32xf32>
    %515 = vector.broadcast %497 : vector<1x32xf32> to vector<8x32xf32>
    %516 = arith.mulf %514, %515 : vector<8x32xf32>
    %517 = vector.broadcast %498 : vector<1x32xf32> to vector<8x32xf32>
    %518 = arith.addf %516, %517 : vector<8x32xf32>
    %519 = vector.extract_strided_slice %417 {offsets = [7, 0], sizes = [1, 32], strides = [1, 1]} : vector<8x32xf32> to vector<1x32xf32>
    %c0_295 = arith.constant 0 : index
    %c0_296 = arith.constant 0 : index
    %c0_297 = arith.constant 0 : index
    %520 = vector.load %arg15[%c0_295, %c0_296, %c0_297] : memref<1x1x32xf32, #tpu.memory_space<vmem>>, vector<1x1x32xf32>
    %521 = vector.shape_cast %520 : vector<1x1x32xf32> to vector<1x32xf32>
    %522 = vector.shape_cast %519 : vector<1x32xf32> to vector<1x1x32xf32>
    tpu.vector_store %arg15[%c0_295, %c0_296, %c0_297], %522 {strides = array<i32>} : memref<1x1x32xf32, #tpu.memory_space<vmem>>, vector<1x1x32xf32>,
    %c0_298 = arith.constant 0 : index
    %c0_299 = arith.constant 0 : index
    %c0_300 = arith.constant 0 : index
    %523 = vector.load %arg14[%c0_298, %c0_299, %c0_300] : memref<1x8x32xf32, #tpu.memory_space<vmem>>, vector<1x8x32xf32>
    %524 = vector.shape_cast %523 : vector<1x8x32xf32> to vector<8x32xf32>
    %525 = vector.shape_cast %518 : vector<8x32xf32> to vector<1x8x32xf32>
    tpu.vector_store %arg14[%c0_298, %c0_299, %c0_300], %525 {strides = array<i32>} : memref<1x8x32xf32, #tpu.memory_space<vmem>>, vector<1x8x32xf32>,
    return
  }
  func.func @transform_0(%arg0: i32) -> (i32, i32, i32) {
    %c0_i32 = arith.constant 0 : i32
    %c0_i32_0 = arith.constant 0 : i32
    %c0_i32_1 = arith.constant 0 : i32
    return %arg0, %c0_i32, %c0_i32_0 : i32, i32, i32
  }
  func.func @transform_1(%arg0: i32) -> (i32, i32) {
    %c0_i32 = arith.constant 0 : i32
    %c0_i32_0 = arith.constant 0 : i32
    %c0_i32_1 = arith.constant 0 : i32
    return %c0_i32, %c0_i32_0 : i32, i32
  }
  func.func @transform_2(%arg0: i32) -> (i32, i32, i32) {
    %c0_i32 = arith.constant 0 : i32
    %c0_i32_0 = arith.constant 0 : i32
    %c0_i32_1 = arith.constant 0 : i32
    %c0_i32_2 = arith.constant 0 : i32
    return %c0_i32, %c0_i32_0, %c0_i32_1 : i32, i32, i32
  }
  func.func @transform_3(%arg0: i32) -> (i32, i32, i32, i32) {
    %c0_i32 = arith.constant 0 : i32
    %c0_i32_0 = arith.constant 0 : i32
    %c0_i32_1 = arith.constant 0 : i32
    %c0_i32_2 = arith.constant 0 : i32
    %c0_i32_3 = arith.constant 0 : i32
    return %c0_i32, %c0_i32_0, %c0_i32_1, %c0_i32_2 : i32, i32, i32, i32
  }
  func.func @transform_4(%arg0: i32) -> (i32, i32, i32, i32) {
    %c0_i32 = arith.constant 0 : i32
    %c0_i32_0 = arith.constant 0 : i32
    %c0_i32_1 = arith.constant 0 : i32
    %c0_i32_2 = arith.constant 0 : i32
    %c0_i32_3 = arith.constant 0 : i32
    return %c0_i32, %c0_i32_0, %c0_i32_1, %c0_i32_2 : i32, i32, i32, i32
  }
  func.func @transform_5(%arg0: i32) -> (i32, i32, i32, i32) {
    %c0_i32 = arith.constant 0 : i32
    %c0_i32_0 = arith.constant 0 : i32
    %c0_i32_1 = arith.constant 0 : i32
    %c0_i32_2 = arith.constant 0 : i32
    %c0_i32_3 = arith.constant 0 : i32
    return %c0_i32, %c0_i32_0, %c0_i32_1, %c0_i32_2 : i32, i32, i32, i32
  }
  func.func @transform_6(%arg0: i32) -> (i32, i32, i32) {
    %c0_i32 = arith.constant 0 : i32
    %c0_i32_0 = arith.constant 0 : i32
    %c0_i32_1 = arith.constant 0 : i32
    %c0_i32_2 = arith.constant 0 : i32
    return %c0_i32, %c0_i32_0, %c0_i32_1 : i32, i32, i32
  }
  func.func @transform_7(%arg0: i32) -> (i32, i32, i32) {
    %c0_i32 = arith.constant 0 : i32
    %c0_i32_0 = arith.constant 0 : i32
    %c0_i32_1 = arith.constant 0 : i32
    %c0_i32_2 = arith.constant 0 : i32
    return %c0_i32, %c0_i32_0, %c0_i32_1 : i32, i32, i32
  }
  func.func @transform_8(%arg0: i32) -> (i32, i32, i32) {
    %c0_i32 = arith.constant 0 : i32
    %c0_i32_0 = arith.constant 0 : i32
    %c0_i32_1 = arith.constant 0 : i32
    %c0_i32_2 = arith.constant 0 : i32
    return %c0_i32, %c0_i32_0, %c0_i32_1 : i32, i32, i32
  }
  func.func @transform_9(%arg0: i32) -> (i32, i32, i32) {
    %c0_i32 = arith.constant 0 : i32
    %c0_i32_0 = arith.constant 0 : i32
    %c0_i32_1 = arith.constant 0 : i32
    %c0_i32_2 = arith.constant 0 : i32
    return %c0_i32, %c0_i32_0, %c0_i32_1 : i32, i32, i32
  }
  func.func @transform_10(%arg0: i32) -> (i32, i32, i32) {
    %c0_i32 = arith.constant 0 : i32
    %c0_i32_0 = arith.constant 0 : i32
    %c0_i32_1 = arith.constant 0 : i32
    %c0_i32_2 = arith.constant 0 : i32
    return %c0_i32, %c0_i32_0, %c0_i32_1 : i32, i32, i32
  }
  func.func @transform_11(%arg0: i32) -> (i32, i32, i32) {
    %c0_i32 = arith.constant 0 : i32
    %c0_i32_0 = arith.constant 0 : i32
    %c0_i32_1 = arith.constant 0 : i32
    %c0_i32_2 = arith.constant 0 : i32
    return %c0_i32, %c0_i32_0, %c0_i32_1 : i32, i32, i32
  }
  func.func @transform_12(%arg0: i32) -> (i32, i32, i32) {
    %c0_i32 = arith.constant 0 : i32
    %c0_i32_0 = arith.constant 0 : i32
    %c0_i32_1 = arith.constant 0 : i32
    %c0_i32_2 = arith.constant 0 : i32
    return %c0_i32, %c0_i32_0, %c0_i32_1 : i32, i32, i32
  }
  func.func @transform_13(%arg0: i32) -> (i32, i32, i32) {
    %c0_i32 = arith.constant 0 : i32
    %c0_i32_0 = arith.constant 0 : i32
    %c0_i32_1 = arith.constant 0 : i32
    return %arg0, %c0_i32, %c0_i32_0 : i32, i32, i32
  }
  func.func @transform_14(%arg0: i32) -> (i32, i32, i32) {
    %c0_i32 = arith.constant 0 : i32
    %c0_i32_0 = arith.constant 0 : i32
    %c0_i32_1 = arith.constant 0 : i32
    return %arg0, %c0_i32, %c0_i32_0 : i32, i32, i32
  }
}

</mosaic_0001>

<llo_original>
// kernel: fwd.1
$region0: #{fwd.1}
  #allocation0 [shape = 'u32[]', space=smem, size = 0x4, offset = 0x4, fixed_abs, tag = 'smem constant byte address 0x4 - core index']
  #allocation1 [shape = 'u32[144,128]{1,0:T(1,128)}', space=vmem, size = 0x12000, scoped, tag = 'internal scratch']
  %s0 = inlined_call_operand.vmem [shape: f32[2,8,32], index: 0, kind: input, shape index: {}]
  %s1 = inlined_call_operand.vmem [shape: f32[2,32], index: 1, kind: input, shape index: {}]
  %s2 = inlined_call_operand.vmem [shape: f32[2,32,32], index: 2, kind: input, shape index: {}]
  %s3 = inlined_call_operand.vmem [shape: f32[2,4,32,8], index: 3, kind: input, shape index: {}]
  %s4 = inlined_call_operand.vmem [shape: f32[2,4,32,8], index: 4, kind: input, shape index: {}]
  %s5 = inlined_call_operand.vmem [shape: f32[2,4,32,8], index: 5, kind: input, shape index: {}]
  %s6 = inlined_call_operand.vmem [shape: f32[2,32,32], index: 6, kind: input, shape index: {}]
  %s7 = inlined_call_operand.vmem [shape: f32[2,32,32], index: 7, kind: input, shape index: {}]
  %s8 = inlined_call_operand.vmem [shape: f32[2,8,32], index: 8, kind: input, shape index: {}]
  %s9 = inlined_call_operand.vmem [shape: f32[2,32,64], index: 9, kind: input, shape index: {}]
  %s10 = inlined_call_operand.vmem [shape: f32[2,1,64], index: 10, kind: input, shape index: {}]
  %s11 = inlined_call_operand.vmem [shape: f32[2,64,32], index: 11, kind: input, shape index: {}]
  %s12 = inlined_call_operand.vmem [shape: f32[2,1,32], index: 12, kind: input, shape index: {}]
  %s13 = inlined_call_operand.hbm [shape: f32[2,8,32], index: 13, kind: output, shape index: {0}]
  %s14 = inlined_call_operand.hbm [shape: f32[2,1,32], index: 14, kind: output, shape index: {1}]
  %15 = xla_tuple %s13, %s14
  %s16 = sld [smem:[#allocation0]]
  $region93: #{fwd.1} parent=0
    _
  %s18 = ssub.s32 1, %s16
  %s19 = scalar_select 0, %s18, %s16
  $region1: #{fwd.1} parent=0
    #allocation2 [shape = 'u8[8192]{0}', space=vmem, size = 0x2000, scoped, tag = 'output window, operand 0']
    #allocation3 [shape = 's32[2]{0}', space=sflag, size = 0x8, scoped, tag = 'scoped memory for fwd.1']
    #allocation4 [shape = 'u8[1024]{0}', space=vmem, size = 0x400, scoped, tag = 'output window, operand 1']
    #allocation5 [shape = 's32[2]{0}', space=sflag, size = 0x8, scoped, tag = 'scoped memory for fwd.1']
    %20 = vsyncpa [#allocation3], 0
    %s21 = scalar_lea.sflag [#allocation3], 1
    %22 = vsyncpa %s21, 0
    %23 = vsyncpa [#allocation5], 0
    %s24 = scalar_lea.sflag [#allocation5], 1
    %25 = vsyncpa %s24, 0
    loop: start=0, step=1, limit=4
    $region2: #{fwd.1} parent=1 // loop_pre_header
      _
    $region3: #{fwd.1} parent=1 // loop_header
      %s27 = sphi 0, %s31
      %p28 = scmp.ge.s32.totalorder %s27, 4
      %s37 = sphi 0, %s39
      %s40 = sphi 0, %s37
      %s41 = sphi 0, %s40
      %s57 = sphi 0, %s41
      %s61 = sphi 0, %s61
      %s63 = sphi 0, %s61
      %s64 = sphi 0, %s63
      %s78 = sphi 0, %s64
      %s82 = sphi 0, %s82
      %s84 = sphi 0, %s82
      %s85 = sphi 0, %s84
      %s99 = sphi 0, %s85
      %s103 = sphi 0, %s103
      %s105 = sphi 0, %s103
      %s106 = sphi 0, %s105
      %s120 = sphi 0, %s106
      %s124 = sphi 0, %s124
      %s126 = sphi 0, %s124
      %s127 = sphi 0, %s126
      %s141 = sphi 0, %s127
      %s145 = sphi 0, %s145
      %s147 = sphi 0, %s145
      %s148 = sphi 0, %s147
      %s162 = sphi 0, %s148
      %s166 = sphi 0, %s166
      %s168 = sphi 0, %s166
      %s169 = sphi 0, %s168
      %s183 = sphi 0, %s169
      %s187 = sphi 0, %s187
      %s189 = sphi 0, %s187
      %s190 = sphi 0, %s189
      %s204 = sphi 0, %s190
      %s208 = sphi 0, %s208
      %s210 = sphi 0, %s208
      %s211 = sphi 0, %s210
      %s225 = sphi 0, %s211
      %s229 = sphi 0, %s229
      %s231 = sphi 0, %s229
      %s232 = sphi 0, %s231
      %s246 = sphi 0, %s232
      %s250 = sphi 0, %s250
      %s252 = sphi 0, %s250
      %s253 = sphi 0, %s252
      %s267 = sphi 0, %s253
      %s271 = sphi 0, %s271
      %s273 = sphi 0, %s271
      %s274 = sphi 0, %s273
      %s288 = sphi 0, %s274
      %s292 = sphi 0, %s292
      %s294 = sphi 0, %s292
      %s295 = sphi 0, %s294
      %s309 = sphi 0, %s295
      %s315 = sphi 0, %s317
      %s318 = sphi 0, %s315
      %s319 = sphi 0, %s318
      %s335 = sphi 0, %s319
      %s341 = sphi 0, %s343
      %s344 = sphi 0, %s341
      %s345 = sphi 0, %s344
      %s361 = sphi 0, %s345
    $region4: #{fwd.1} parent=1 // loop_header_branch
      %30 = sbr.rel (%p28) target = $region8
    $region5: #{fwd.1} parent=1 // loop_body
      %s32 = ssub.s32 %s27, 1
      %s33 = ssub.s32 %s27, 2
      %s34 = sadd.s32 %s27, 1
      %s35 = ssub.s32 %s27, %s34
      %p36 = scmp.eq.s32.totalorder %s35, 0
      %s38 = sadd.s32 %s37, 1
      %s39 = scalar_select %p36, %s37, %s38
      %p42 = pneg %p36
      %p43 = scmp.eq.s32.totalorder %s27, 1
      %p44 = por %p42, %p43
      %p45 = scmp.ne.s32.totalorder %s37, %s40
      %p46 = scmp.eq.s32.totalorder %s27, 0
      %p47 = por %p45, %p46
      %p48 = scmp.ne.s32.totalorder %s37, %s40
      %p49 = scmp.eq.s32.totalorder %s32, 1
      %p50 = por %p48, %p49
      %p51 = scmp.ne.s32.totalorder %s40, %s41
      %p52 = scmp.eq.s32.totalorder %s32, 0
      %p53 = por %p51, %p52
      %p54 = scmp.ne.s32.totalorder %s40, %s41
      %p55 = scmp.eq.s32.totalorder %s33, 1
      %p56 = por %p54, %p55
      %p58 = scmp.ne.s32.totalorder %s41, %s57
      %p59 = scmp.eq.s32.totalorder %s33, 0
      %p60 = por %p58, %p59
      %s62 = sadd.s32 %s61, 1
      %p65 = scmp.eq.s32.totalorder %s27, 1
      %p66 = scmp.ne.s32.totalorder %s61, %s63
      %p67 = scmp.eq.s32.totalorder %s27, 0
      %p68 = por %p66, %p67
      %p69 = scmp.ne.s32.totalorder %s61, %s63
      %p70 = scmp.eq.s32.totalorder %s32, 1
      %p71 = por %p69, %p70
      %p72 = scmp.ne.s32.totalorder %s63, %s64
      %p73 = scmp.eq.s32.totalorder %s32, 0
      %p74 = por %p72, %p73
      %p75 = scmp.ne.s32.totalorder %s63, %s64
      %p76 = scmp.eq.s32.totalorder %s33, 1
      %p77 = por %p75, %p76
      %p79 = scmp.ne.s32.totalorder %s64, %s78
      %p80 = scmp.eq.s32.totalorder %s33, 0
      %p81 = por %p79, %p80
      %s83 = sadd.s32 %s82, 1
      %p86 = scmp.eq.s32.totalorder %s27, 1
      %p87 = scmp.ne.s32.totalorder %s82, %s84
      %p88 = scmp.eq.s32.totalorder %s27, 0
      %p89 = por %p87, %p88
      %p90 = scmp.ne.s32.totalorder %s82, %s84
      %p91 = scmp.eq.s32.totalorder %s32, 1
      %p92 = por %p90, %p91
      %p93 = scmp.ne.s32.totalorder %s84, %s85
      %p94 = scmp.eq.s32.totalorder %s32, 0
      %p95 = por %p93, %p94
      %p96 = scmp.ne.s32.totalorder %s84, %s85
      %p97 = scmp.eq.s32.totalorder %s33, 1
      %p98 = por %p96, %p97
      %p100 = scmp.ne.s32.totalorder %s85, %s99
      %p101 = scmp.eq.s32.totalorder %s33, 0
      %p102 = por %p100, %p101
      %s104 = sadd.s32 %s103, 1
      %p107 = scmp.eq.s32.totalorder %s27, 1
      %p108 = scmp.ne.s32.totalorder %s103, %s105
      %p109 = scmp.eq.s32.totalorder %s27, 0
      %p110 = por %p108, %p109
      %p111 = scmp.ne.s32.totalorder %s103, %s105
      %p112 = scmp.eq.s32.totalorder %s32, 1
      %p113 = por %p111, %p112
      %p114 = scmp.ne.s32.totalorder %s105, %s106
      %p115 = scmp.eq.s32.totalorder %s32, 0
      %p116 = por %p114, %p115
      %p117 = scmp.ne.s32.totalorder %s105, %s106
      %p118 = scmp.eq.s32.totalorder %s33, 1
      %p119 = por %p117, %p118
      %p121 = scmp.ne.s32.totalorder %s106, %s120
      %p122 = scmp.eq.s32.totalorder %s33, 0
      %p123 = por %p121, %p122
      %s125 = sadd.s32 %s124, 1
      %p128 = scmp.eq.s32.totalorder %s27, 1
      %p129 = scmp.ne.s32.totalorder %s124, %s126
      %p130 = scmp.eq.s32.totalorder %s27, 0
      %p131 = por %p129, %p130
      %p132 = scmp.ne.s32.totalorder %s124, %s126
      %p133 = scmp.eq.s32.totalorder %s32, 1
      %p134 = por %p132, %p133
      %p135 = scmp.ne.s32.totalorder %s126, %s127
      %p136 = scmp.eq.s32.totalorder %s32, 0
      %p137 = por %p135, %p136
      %p138 = scmp.ne.s32.totalorder %s126, %s127
      %p139 = scmp.eq.s32.totalorder %s33, 1
      %p140 = por %p138, %p139
      %p142 = scmp.ne.s32.totalorder %s127, %s141
      %p143 = scmp.eq.s32.totalorder %s33, 0
      %p144 = por %p142, %p143
      %s146 = sadd.s32 %s145, 1
      %p149 = scmp.eq.s32.totalorder %s27, 1
      %p150 = scmp.ne.s32.totalorder %s145, %s147
      %p151 = scmp.eq.s32.totalorder %s27, 0
      %p152 = por %p150, %p151
      %p153 = scmp.ne.s32.totalorder %s145, %s147
      %p154 = scmp.eq.s32.totalorder %s32, 1
      %p155 = por %p153, %p154
      %p156 = scmp.ne.s32.totalorder %s147, %s148
      %p157 = scmp.eq.s32.totalorder %s32, 0
      %p158 = por %p156, %p157
      %p159 = scmp.ne.s32.totalorder %s147, %s148
      %p160 = scmp.eq.s32.totalorder %s33, 1
      %p161 = por %p159, %p160
      %p163 = scmp.ne.s32.totalorder %s148, %s162
      %p164 = scmp.eq.s32.totalorder %s33, 0
      %p165 = por %p163, %p164
      %s167 = sadd.s32 %s166, 1
      %p170 = scmp.eq.s32.totalorder %s27, 1
      %p171 = scmp.ne.s32.totalorder %s166, %s168
      %p172 = scmp.eq.s32.totalorder %s27, 0
      %p173 = por %p171, %p172
      %p174 = scmp.ne.s32.totalorder %s166, %s168
      %p175 = scmp.eq.s32.totalorder %s32, 1
      %p176 = por %p174, %p175
      %p177 = scmp.ne.s32.totalorder %s168, %s169
      %p178 = scmp.eq.s32.totalorder %s32, 0
      %p179 = por %p177, %p178
      %p180 = scmp.ne.s32.totalorder %s168, %s169
      %p181 = scmp.eq.s32.totalorder %s33, 1
      %p182 = por %p180, %p181
      %p184 = scmp.ne.s32.totalorder %s169, %s183
      %p185 = scmp.eq.s32.totalorder %s33, 0
      %p186 = por %p184, %p185
      %s188 = sadd.s32 %s187, 1
      %p191 = scmp.eq.s32.totalorder %s27, 1
      %p192 = scmp.ne.s32.totalorder %s187, %s189
      %p193 = scmp.eq.s32.totalorder %s27, 0
      %p194 = por %p192, %p193
      %p195 = scmp.ne.s32.totalorder %s187, %s189
      %p196 = scmp.eq.s32.totalorder %s32, 1
      %p197 = por %p195, %p196
      %p198 = scmp.ne.s32.totalorder %s189, %s190
      %p199 = scmp.eq.s32.totalorder %s32, 0
      %p200 = por %p198, %p199
      %p201 = scmp.ne.s32.totalorder %s189, %s190
      %p202 = scmp.eq.s32.totalorder %s33, 1
      %p203 = por %p201, %p202
      %p205 = scmp.ne.s32.totalorder %s190, %s204
      %p206 = scmp.eq.s32.totalorder %s33, 0
      %p207 = por %p205, %p206
      %s209 = sadd.s32 %s208, 1
      %p212 = scmp.eq.s32.totalorder %s27, 1
      %p213 = scmp.ne.s32.totalorder %s208, %s210
      %p214 = scmp.eq.s32.totalorder %s27, 0
      %p215 = por %p213, %p214
      %p216 = scmp.ne.s32.totalorder %s208, %s210
      %p217 = scmp.eq.s32.totalorder %s32, 1
      %p218 = por %p216, %p217
      %p219 = scmp.ne.s32.totalorder %s210, %s211
      %p220 = scmp.eq.s32.totalorder %s32, 0
      %p221 = por %p219, %p220
      %p222 = scmp.ne.s32.totalorder %s210, %s211
      %p223 = scmp.eq.s32.totalorder %s33, 1
      %p224 = por %p222, %p223
      %p226 = scmp.ne.s32.totalorder %s211, %s225
      %p227 = scmp.eq.s32.totalorder %s33, 0
      %p228 = por %p226, %p227
      %s230 = sadd.s32 %s229, 1
      %p233 = scmp.eq.s32.totalorder %s27, 1
      %p234 = scmp.ne.s32.totalorder %s229, %s231
      %p235 = scmp.eq.s32.totalorder %s27, 0
      %p236 = por %p234, %p235
      %p237 = scmp.ne.s32.totalorder %s229, %s231
      %p238 = scmp.eq.s32.totalorder %s32, 1
      %p239 = por %p237, %p238
      %p240 = scmp.ne.s32.totalorder %s231, %s232
      %p241 = scmp.eq.s32.totalorder %s32, 0
      %p242 = por %p240, %p241
      %p243 = scmp.ne.s32.totalorder %s231, %s232
      %p244 = scmp.eq.s32.totalorder %s33, 1
      %p245 = por %p243, %p244
      %p247 = scmp.ne.s32.totalorder %s232, %s246
      %p248 = scmp.eq.s32.totalorder %s33, 0
      %p249 = por %p247, %p248
      %s251 = sadd.s32 %s250, 1
      %p254 = scmp.eq.s32.totalorder %s27, 1
      %p255 = scmp.ne.s32.totalorder %s250, %s252
      %p256 = scmp.eq.s32.totalorder %s27, 0
      %p257 = por %p255, %p256
      %p258 = scmp.ne.s32.totalorder %s250, %s252
      %p259 = scmp.eq.s32.totalorder %s32, 1
      %p260 = por %p258, %p259
      %p261 = scmp.ne.s32.totalorder %s252, %s253
      %p262 = scmp.eq.s32.totalorder %s32, 0
      %p263 = por %p261, %p262
      %p264 = scmp.ne.s32.totalorder %s252, %s253
      %p265 = scmp.eq.s32.totalorder %s33, 1
      %p266 = por %p264, %p265
      %p268 = scmp.ne.s32.totalorder %s253, %s267
      %p269 = scmp.eq.s32.totalorder %s33, 0
      %p270 = por %p268, %p269
      %s272 = sadd.s32 %s271, 1
      %p275 = scmp.eq.s32.totalorder %s27, 1
      %p276 = scmp.ne.s32.totalorder %s271, %s273
      %p277 = scmp.eq.s32.totalorder %s27, 0
      %p278 = por %p276, %p277
      %p279 = scmp.ne.s32.totalorder %s271, %s273
      %p280 = scmp.eq.s32.totalorder %s32, 1
      %p281 = por %p279, %p280
      %p282 = scmp.ne.s32.totalorder %s273, %s274
      %p283 = scmp.eq.s32.totalorder %s32, 0
      %p284 = por %p282, %p283
      %p285 = scmp.ne.s32.totalorder %s273, %s274
      %p286 = scmp.eq.s32.totalorder %s33, 1
      %p287 = por %p285, %p286
      %p289 = scmp.ne.s32.totalorder %s274, %s288
      %p290 = scmp.eq.s32.totalorder %s33, 0
      %p291 = por %p289, %p290
      %s293 = sadd.s32 %s292, 1
      %p296 = scmp.eq.s32.totalorder %s27, 1
      %p297 = scmp.ne.s32.totalorder %s292, %s294
      %p298 = scmp.eq.s32.totalorder %s27, 0
      %p299 = por %p297, %p298
      %p300 = scmp.ne.s32.totalorder %s292, %s294
      %p301 = scmp.eq.s32.totalorder %s32, 1
      %p302 = por %p300, %p301
      %p303 = scmp.ne.s32.totalorder %s294, %s295
      %p304 = scmp.eq.s32.totalorder %s32, 0
      %p305 = por %p303, %p304
      %p306 = scmp.ne.s32.totalorder %s294, %s295
      %p307 = scmp.eq.s32.totalorder %s33, 1
      %p308 = por %p306, %p307
      %p310 = scmp.ne.s32.totalorder %s295, %s309
      %p311 = scmp.eq.s32.totalorder %s33, 0
      %p312 = por %p310, %p311
      %s313 = ssub.s32 %s27, %s34
      %p314 = scmp.eq.s32.totalorder %s313, 0
      %s316 = sadd.s32 %s315, 1
      %s317 = scalar_select %p314, %s315, %s316
      %p320 = pneg %p314
      %p321 = scmp.eq.s32.totalorder %s27, 1
      %p322 = por %p320, %p321
      %p323 = scmp.ne.s32.totalorder %s315, %s318
      %p324 = scmp.eq.s32.totalorder %s27, 0
      %p325 = por %p323, %p324
      %p326 = scmp.ne.s32.totalorder %s315, %s318
      %p327 = scmp.eq.s32.totalorder %s32, 1
      %p328 = por %p326, %p327
      %p329 = scmp.ne.s32.totalorder %s318, %s319
      %p330 = scmp.eq.s32.totalorder %s32, 0
      %p331 = por %p329, %p330
      %p332 = scmp.ne.s32.totalorder %s318, %s319
      %p333 = scmp.eq.s32.totalorder %s33, 1
      %p334 = por %p332, %p333
      %p336 = scmp.ne.s32.totalorder %s319, %s335
      %p337 = scmp.eq.s32.totalorder %s33, 0
      %p338 = por %p336, %p337
      %s339 = ssub.s32 %s27, %s34
      %p340 = scmp.eq.s32.totalorder %s339, 0
      %s342 = sadd.s32 %s341, 1
      %s343 = scalar_select %p340, %s341, %s342
      %p346 = pneg %p340
      %p347 = scmp.eq.s32.totalorder %s27, 1
      %p348 = por %p346, %p347
      %p349 = scmp.ne.s32.totalorder %s341, %s344
      %p350 = scmp.eq.s32.totalorder %s27, 0
      %p351 = por %p349, %p350
      %p352 = scmp.ne.s32.totalorder %s341, %s344
      %p353 = scmp.eq.s32.totalorder %s32, 1
      %p354 = por %p352, %p353
      %p355 = scmp.ne.s32.totalorder %s344, %s345
      %p356 = scmp.eq.s32.totalorder %s32, 0
      %p357 = por %p355, %p356
      %p358 = scmp.ne.s32.totalorder %s344, %s345
      %p359 = scmp.eq.s32.totalorder %s33, 1
      %p360 = por %p358, %p359
      %p362 = scmp.ne.s32.totalorder %s345, %s361
      %p363 = scmp.eq.s32.totalorder %s33, 0
      %p364 = por %p362, %p363
      %p365 = scmp.le.s32.totalorder 1, %s27
      %p366 = scmp.lt.s32.totalorder %s27, 3
      %p367 = pnand %p365, %p366
      %p368 = pneg %p367
      // Predicated region
      $region9: #{fwd.1} parent=5 // pred_check
        _
      $region10: #{fwd.1} parent=5 // pred_check_branch
        %370 = sbr.rel (%p367) target = $region12
      $region11: #{fwd.1} parent=5 // pred_region
        %s371 = ssub.s32 %s27, 1
        // Predicated region
        $region13: #{fwd.1} parent=11 // pred_check
          %p372 = pneg %p74
        $region14: #{fwd.1} parent=11 // pred_check_branch
          %374 = sbr.rel (%p372) target = $region16
        $region15: #{fwd.1} parent=11 // pred_region
          _
        $region16: #{fwd.1} parent=11 // pred_fallthru
          _
        // Predicated region
        $region17: #{fwd.1} parent=11 // pred_check
          %p375 = pneg %p95
        $region18: #{fwd.1} parent=11 // pred_check_branch
          %377 = sbr.rel (%p375) target = $region20
        $region19: #{fwd.1} parent=11 // pred_region
          _
        $region20: #{fwd.1} parent=11 // pred_fallthru
          _
        // Predicated region
        $region21: #{fwd.1} parent=11 // pred_check
          %p378 = pneg %p116
        $region22: #{fwd.1} parent=11 // pred_check_branch
          %380 = sbr.rel (%p378) target = $region24
        $region23: #{fwd.1} parent=11 // pred_region
          _
        $region24: #{fwd.1} parent=11 // pred_fallthru
          _
        // Predicated region
        $region25: #{fwd.1} parent=11 // pred_check
          %p381 = pneg %p137
        $region26: #{fwd.1} parent=11 // pred_check_branch
          %383 = sbr.rel (%p381) target = $region28
        $region27: #{fwd.1} parent=11 // pred_region
          _
        $region28: #{fwd.1} parent=11 // pred_fallthru
          _
        // Predicated region
        $region29: #{fwd.1} parent=11 // pred_check
          %p384 = pneg %p158
        $region30: #{fwd.1} parent=11 // pred_check_branch
          %386 = sbr.rel (%p384) target = $region32
        $region31: #{fwd.1} parent=11 // pred_region
          _
        $region32: #{fwd.1} parent=11 // pred_fallthru
          _
        // Predicated region
        $region33: #{fwd.1} parent=11 // pred_check
          %p387 = pneg %p179
        $region34: #{fwd.1} parent=11 // pred_check_branch
          %389 = sbr.rel (%p387) target = $region36
        $region35: #{fwd.1} parent=11 // pred_region
          _
        $region36: #{fwd.1} parent=11 // pred_fallthru
          _
        // Predicated region
        $region37: #{fwd.1} parent=11 // pred_check
          %p390 = pneg %p200
        $region38: #{fwd.1} parent=11 // pred_check_branch
          %392 = sbr.rel (%p390) target = $region40
        $region39: #{fwd.1} parent=11 // pred_region
          _
        $region40: #{fwd.1} parent=11 // pred_fallthru
          _
        // Predicated region
        $region41: #{fwd.1} parent=11 // pred_check
          %p393 = pneg %p221
        $region42: #{fwd.1} parent=11 // pred_check_branch
          %395 = sbr.rel (%p393) target = $region44
        $region43: #{fwd.1} parent=11 // pred_region
          _
        $region44: #{fwd.1} parent=11 // pred_fallthru
          _
        // Predicated region
        $region45: #{fwd.1} parent=11 // pred_check
          %p396 = pneg %p242
        $region46: #{fwd.1} parent=11 // pred_check_branch
          %398 = sbr.rel (%p396) target = $region48
        $region47: #{fwd.1} parent=11 // pred_region
          _
        $region48: #{fwd.1} parent=11 // pred_fallthru
          _
        // Predicated region
        $region49: #{fwd.1} parent=11 // pred_check
          %p399 = pneg %p263
        $region50: #{fwd.1} parent=11 // pred_check_branch
          %401 = sbr.rel (%p399) target = $region52
        $region51: #{fwd.1} parent=11 // pred_region
          _
        $region52: #{fwd.1} parent=11 // pred_fallthru
          _
        // Predicated region
        $region53: #{fwd.1} parent=11 // pred_check
          %p402 = pneg %p284
        $region54: #{fwd.1} parent=11 // pred_check_branch
          %404 = sbr.rel (%p402) target = $region56
        $region55: #{fwd.1} parent=11 // pred_region
          _
        $region56: #{fwd.1} parent=11 // pred_fallthru
          _
        // Predicated region
        $region57: #{fwd.1} parent=11 // pred_check
          %p405 = pneg %p305
        $region58: #{fwd.1} parent=11 // pred_check_branch
          %407 = sbr.rel (%p405) target = $region60
        $region59: #{fwd.1} parent=11 // pred_region
          _
        $region60: #{fwd.1} parent=11 // pred_fallthru
          _
      $region12: #{fwd.1} parent=5 // pred_fallthru
        _
      %p408 = scmp.lt.s32.totalorder %s27, 2
      // Predicated region
      $region61: #{fwd.1} parent=5 // pred_check
        %p409 = pneg %p408
      $region62: #{fwd.1} parent=5 // pred_check_branch
        %411 = sbr.rel (%p409) target = $region64
      $region63: #{fwd.1} parent=5 // pred_region
        // Predicated region
        $region65: #{fwd.1} parent=63 // pred_check
          %p412 = pneg %p47
        $region66: #{fwd.1} parent=63 // pred_check_branch
          %414 = sbr.rel (%p412) target = $region68
        $region67: #{fwd.1} parent=63 // pred_region
          %p415 = scmp.lt.s32.totalorder %s27, 1
          %s416 = scalar_select %p415, %s27, 1
          %s417 = smul.addr %s416, 8
          %s418 = scalar_lea.vmem %s0, %s417
        $region68: #{fwd.1} parent=63 // pred_fallthru
          _
      $region64: #{fwd.1} parent=5 // pred_fallthru
        _
      %p419 = scmp.le.s32.totalorder 1, %s27
      %p420 = scmp.lt.s32.totalorder %s27, 3
      %p421 = pnand %p419, %p420
      %p422 = pneg %p421
      // Predicated region
      $region69: #{fwd.1} parent=5 // pred_check
        _
      $region70: #{fwd.1} parent=5 // pred_check_branch
        %424 = sbr.rel (%p421) target = $region72
      $region71: #{fwd.1} parent=5 // pred_region
        %s425 = ssub.s32 %s27, 1
        %p426 = scmp.lt.s32.totalorder %s32, 1
        %s427 = scalar_select %p426, %s32, 1
        %s428 = smul.addr %s427, 8
        %s429 = scalar_lea.vmem %s0, %s428
        %p430 = pneg %p53
        %p431 = pneg %p50
        %p432 = pneg %p74
        %p433 = pneg %p71
        %p434 = pneg %p95
        %p435 = pneg %p92
        %p436 = pneg %p116
        %p437 = pneg %p113
        %p438 = pneg %p137
        %p439 = pneg %p134
        %p440 = pneg %p158
        %p441 = pneg %p155
        %p442 = pneg %p179
        %p443 = pneg %p176
        %p444 = pneg %p200
        %p445 = pneg %p197
        %p446 = pneg %p221
        %p447 = pneg %p218
        %p448 = pneg %p242
        %p449 = pneg %p239
        %p450 = pneg %p263
        %p451 = pneg %p260
        %p452 = pneg %p284
        %p453 = pneg %p281
        %p454 = pneg %p305
        %p455 = pneg %p302
        %p456 = pneg %p331
        %p457 = pneg %p328
        %s458 = sand.u32 %s318, 1
        %s459 = scalar_lea.sflag [#allocation3], %s458
        %s460 = sand.u32 %s318, 1
        %s461 = smul.addr %s460, 8
        %s462 = scalar_lea.vmem [#allocation2], %s461
        %p463 = pneg %p357
        %p464 = pneg %p354
        %s465 = sand.u32 %s344, 1
        %s466 = scalar_lea.sflag [#allocation5], %s465
        %s467 = sand.u32 %s344, 1
        %s468 = scalar_lea.vmem [#allocation4], %s467
        %p469 = scmp.lt.s32.totalorder %s32, 1
        %s470 = scalar_select %p469, %s32, 1
        %s471 = smul.addr %s470, 8
        %s472 = scalar_lea.vmem %s0, %s471
        %v473 = vld [vmem:[%s1] sm:$0x3]
        %v474 = vld [vmem:[%s472] sm:$0xff]
        %vm475 = vcmask 261120
        %v476 = vsel %vm475, %v474, 0.0
        %477 = vadd.xlane.f32.xlu0 %v476
        %v478 = vpop.xlane.xlu0 %477
        %v479 = vrcp.pop 32.0
        %v480 = vmul.f32 %v478, %v479
        %v481 = vsub.f32 %v474, %v480
        %v482 = vmul.f32 %v481, %v481
        %v483 = vsel %vm475, %v482, 0.0
        %484 = vadd.xlane.f32.xlu0 %v483
        %v485 = vpop.xlane.xlu0 %484
        %v486 = vmul.f32 %v485, %v479
        %v487 = vadd.f32 %v486, 1e-05
        %v488 = vrsqrt.pop %v487
        %v489 = vmul.f32 %v481, %v488
        %v490 = vlaneseq
        %v491 = vshrl.u32 %v490, 7
        %v492 = vsub.s32 0, %v491
        %v493 = vrot.slane %v473, %v492
        %v494 = vmul.f32 %v489, %v493
        %v495 = vlaneseq
        %v496 = vshrl.u32 %v495, 7
        %v497 = vsub.s32 1, %v496
        %v498 = vrot.slane %v473, %v497
        %v499 = vadd.f32 %v494, %v498
        %v500 = vld [vmem:[%s8] sm:$0xff]
        %v501 = vld [vmem:[%s2] sm:$0xff]
        %v502 = vld [vmem:[%s2 + $0x8] sm:$0xff]
        %v503 = vld [vmem:[%s2 + $0x10] sm:$0xff]
        %v504 = vld [vmem:[%s2 + $0x18] sm:$0xff]
        %v506 = vsel %vm475, %v499, 0
        %508 = vmatprep.subr.mxu0 0.0
        %509 = vmatpush1.msra.mxu0 0.0
        %510 = vmatprep.subr.mxu0 0.0
        %511 = vmatpush1.msra.mxu0 0.0
        %512 = vmatprep.subr.mxu0 0.0
        %513 = vmatpush1.msra.mxu0 0.0
        %514 = vmatprep.subr.mxu0 0.0
        %515 = vmatpush1.msra.mxu0 0.0
        %516 = vmatprep.subr.mxu0 0.0
        %517 = vmatpush1.msra.mxu0 0.0
        %518 = vmatprep.subr.mxu0 0.0
        %519 = vmatpush1.msra.mxu0 0.0
        %520 = vmatprep.subr.mxu0 0.0
        %521 = vmatpush1.msra.mxu0 0.0
        %522 = vmatprep.subr.mxu0 0.0
        %523 = vmatpush1.msra.mxu0 0.0
        %524 = vmatprep.subr.mxu0 0.0
        %525 = vmatpush1.msra.mxu0 0.0
        %526 = vmatprep.subr.mxu0 0.0
        %527 = vmatpush1.msra.mxu0 0.0
        %528 = vmatprep.subr.mxu0 0.0
        %529 = vmatpush1.msra.mxu0 0.0
        %530 = vmatprep.subr.mxu0 0.0
        %531 = vmatpush1.msra.mxu0 0.0
        %532 = vmatprep.subr.mxu0 0.0
        %533 = vmatpush1.msra.mxu0 %v504
        %534 = vmatprep.subr.mxu0 0.0
        %535 = vmatpush1.msra.mxu0 %v503
        %536 = vmatprep.subr.mxu0 0.0
        %537 = vmatpush1.msra.mxu0 %v502
        %538 = vmatprep.subr.mxu0 0.0
        %539 = vmatpush1.msra.mxu0 %v501
        %540 = vmatprep.subr.mxu0 0.0
        %541 = vmatpush2.msra.mxu0 0.0
        %542 = vmatprep.subr.mxu0 0.0
        %543 = vmatpush2.msra.mxu0 0.0
        %544 = vmatprep.subr.mxu0 0.0
        %545 = vmatpush2.msra.mxu0 0.0
        %546 = vmatprep.subr.mxu0 0.0
        %547 = vmatpush2.msra.mxu0 0.0
        %548 = vmatprep.subr.mxu0 0.0
        %549 = vmatpush2.msra.mxu0 0.0
        %550 = vmatprep.subr.mxu0 0.0
        %551 = vmatpush2.msra.mxu0 0.0
        %552 = vmatprep.subr.mxu0 0.0
        %553 = vmatpush2.msra.mxu0 0.0
        %554 = vmatprep.subr.mxu0 0.0
        %555 = vmatpush2.msra.mxu0 0.0
        %556 = vmatprep.subr.mxu0 0.0
        %557 = vmatpush2.msra.mxu0 0.0
        %558 = vmatprep.subr.mxu0 0.0
        %559 = vmatpush2.msra.mxu0 0.0
        %560 = vmatprep.subr.mxu0 0.0
        %561 = vmatpush2.msra.mxu0 0.0
        %562 = vmatprep.subr.mxu0 0.0
        %563 = vmatpush2.msra.mxu0 0.0
        %564 = vmatprep.subr.mxu0 0.0
        %565 = vmatpush2.msra.mxu0 0.0
        %566 = vmatprep.subr.mxu0 0.0
        %567 = vmatpush2.msra.mxu0 0.0
        %568 = vmatprep.subr.mxu0 0.0
        %569 = vmatpush2.msra.mxu0 0.0
        %570 = vmatprep.subr.mxu0 0.0
        %571 = vmatpush2.msra.mxu0 0.0
        %572 = vmatprep.mubr.f32.mxu0 0.0
        %573 = vmatmul.mubr.f32.gmra.mxu0 %v506
        %v574 = vpop.f32.mrf.mxu0
        %v575 = vadd.f32 %v499, %v574
        %v576 = vpop.f32.mrf.mxu0
        %577 = vdwg.mxu0
        %v578 = vsel %vm475, %v575, 0.0
        %579 = vadd.xlane.f32.xlu0 %v578
        %v580 = vpop.xlane.xlu0 %579
        %v581 = vmul.f32 %v580, %v479
        %v582 = vsub.f32 %v575, %v581
        %v583 = vmul.f32 %v582, %v582
        %v584 = vsel %vm475, %v583, 0.0
        %585 = vadd.xlane.f32.xlu0 %v584
        %v586 = vpop.xlane.xlu0 %585
        %v587 = vmul.f32 %v586, %v479
        %v588 = vadd.f32 %v587, 1e-05
        %v589 = vrsqrt.pop %v588
        %v590 = vmul.f32 %v582, %v589
        %v591 = vlaneseq
        %v592 = vshrl.u32 %v591, 7
        %v593 = vsub.s32 0, %v592
        %v594 = vrot.slane %v500, %v593
        %v595 = vmul.f32 %v590, %v594
        %v596 = vlaneseq
        %v597 = vshrl.u32 %v596, 7
        %v598 = vsub.s32 1, %v597
        %v599 = vrot.slane %v500, %v598
        %v600 = vadd.f32 %v595, %v599
        %v601 = vld [vmem:[%s3] sm:$0xff]
        %v602 = vld [vmem:[%s3 + $0x8] sm:$0xff]
        %v603 = vld [vmem:[%s3 + $0x10] sm:$0xff]
        %v604 = vld [vmem:[%s3 + $0x18] sm:$0xff]
        %v606 = vsel %vm475, %v600, 0
        %608 = vmatprep.subr.mxu0 0.0
        %609 = vmatpush1.msra.mxu0 0.0
        %610 = vmatprep.subr.mxu0 0.0
        %611 = vmatpush1.msra.mxu0 0.0
        %612 = vmatprep.subr.mxu0 0.0
        %613 = vmatpush1.msra.mxu0 0.0
        %614 = vmatprep.subr.mxu0 0.0
        %615 = vmatpush1.msra.mxu0 0.0
        %616 = vmatprep.subr.mxu0 0.0
        %617 = vmatpush1.msra.mxu0 0.0
        %618 = vmatprep.subr.mxu0 0.0
        %619 = vmatpush1.msra.mxu0 0.0
        %620 = vmatprep.subr.mxu0 0.0
        %621 = vmatpush1.msra.mxu0 0.0
        %622 = vmatprep.subr.mxu0 0.0
        %623 = vmatpush1.msra.mxu0 0.0
        %624 = vmatprep.subr.mxu0 0.0
        %625 = vmatpush1.msra.mxu0 0.0
        %626 = vmatprep.subr.mxu0 0.0
        %627 = vmatpush1.msra.mxu0 0.0
        %628 = vmatprep.subr.mxu0 0.0
        %629 = vmatpush1.msra.mxu0 0.0
        %630 = vmatprep.subr.mxu0 0.0
        %631 = vmatpush1.msra.mxu0 0.0
        %632 = vmatprep.subr.mxu0 0.0
        %633 = vmatpush1.msra.mxu0 %v604
        %634 = vmatprep.subr.mxu0 0.0
        %635 = vmatpush1.msra.mxu0 %v603
        %636 = vmatprep.subr.mxu0 0.0
        %637 = vmatpush1.msra.mxu0 %v602
        %638 = vmatprep.subr.mxu0 0.0
        %639 = vmatpush1.msra.mxu0 %v601
        %640 = vmatprep.subr.mxu0 0.0
        %641 = vmatpush2.msra.mxu0 0.0
        %642 = vmatprep.subr.mxu0 0.0
        %643 = vmatpush2.msra.mxu0 0.0
        %644 = vmatprep.subr.mxu0 0.0
        %645 = vmatpush2.msra.mxu0 0.0
        %646 = vmatprep.subr.mxu0 0.0
        %647 = vmatpush2.msra.mxu0 0.0
        %648 = vmatprep.subr.mxu0 0.0
        %649 = vmatpush2.msra.mxu0 0.0
        %650 = vmatprep.subr.mxu0 0.0
        %651 = vmatpush2.msra.mxu0 0.0
        %652 = vmatprep.subr.mxu0 0.0
        %653 = vmatpush2.msra.mxu0 0.0
        %654 = vmatprep.subr.mxu0 0.0
        %655 = vmatpush2.msra.mxu0 0.0
        %656 = vmatprep.subr.mxu0 0.0
        %657 = vmatpush2.msra.mxu0 0.0
        %658 = vmatprep.subr.mxu0 0.0
        %659 = vmatpush2.msra.mxu0 0.0
        %660 = vmatprep.subr.mxu0 0.0
        %661 = vmatpush2.msra.mxu0 0.0
        %662 = vmatprep.subr.mxu0 0.0
        %663 = vmatpush2.msra.mxu0 0.0
        %664 = vmatprep.subr.mxu0 0.0
        %665 = vmatpush2.msra.mxu0 0.0
        %666 = vmatprep.subr.mxu0 0.0
        %667 = vmatpush2.msra.mxu0 0.0
        %668 = vmatprep.subr.mxu0 0.0
        %669 = vmatpush2.msra.mxu0 0.0
        %670 = vmatprep.subr.mxu0 0.0
        %671 = vmatpush2.msra.mxu0 0.0
        %672 = vmatprep.mubr.f32.mxu0 0.0
        %673 = vmatmul.mubr.f32.gmra.mxu0 %v606
        %v674 = vpop.f32.mrf.mxu0
        %v675 = vadd.f32 0.0, %v674
        %v676 = vpop.f32.mrf.mxu0
        %677 = vdwg.mxu0
        %v678 = vld [vmem:[%s4] sm:$0xff]
        %v679 = vld [vmem:[%s4 + $0x8] sm:$0xff]
        %v680 = vld [vmem:[%s4 + $0x10] sm:$0xff]
        %v681 = vld [vmem:[%s4 + $0x18] sm:$0xff]
        %682 = vmatprep.subr.mxu0 0.0
        %683 = vmatpush1.msra.mxu0 0.0
        %684 = vmatprep.subr.mxu0 0.0
        %685 = vmatpush1.msra.mxu0 0.0
        %686 = vmatprep.subr.mxu0 0.0
        %687 = vmatpush1.msra.mxu0 0.0
        %688 = vmatprep.subr.mxu0 0.0
        %689 = vmatpush1.msra.mxu0 0.0
        %690 = vmatprep.subr.mxu0 0.0
        %691 = vmatpush1.msra.mxu0 0.0
        %692 = vmatprep.subr.mxu0 0.0
        %693 = vmatpush1.msra.mxu0 0.0
        %694 = vmatprep.subr.mxu0 0.0
        %695 = vmatpush1.msra.mxu0 0.0
        %696 = vmatprep.subr.mxu0 0.0
        %697 = vmatpush1.msra.mxu0 0.0
        %698 = vmatprep.subr.mxu0 0.0
        %699 = vmatpush1.msra.mxu0 0.0
        %700 = vmatprep.subr.mxu0 0.0
        %701 = vmatpush1.msra.mxu0 0.0
        %702 = vmatprep.subr.mxu0 0.0
        %703 = vmatpush1.msra.mxu0 0.0
        %704 = vmatprep.subr.mxu0 0.0
        %705 = vmatpush1.msra.mxu0 0.0
        %706 = vmatprep.subr.mxu0 0.0
        %707 = vmatpush1.msra.mxu0 %v681
        %708 = vmatprep.subr.mxu0 0.0
        %709 = vmatpush1.msra.mxu0 %v680
        %710 = vmatprep.subr.mxu0 0.0
        %711 = vmatpush1.msra.mxu0 %v679
        %712 = vmatprep.subr.mxu0 0.0
        %713 = vmatpush1.msra.mxu0 %v678
        %714 = vmatprep.subr.mxu0 0.0
        %715 = vmatpush2.msra.mxu0 0.0
        %716 = vmatprep.subr.mxu0 0.0
        %717 = vmatpush2.msra.mxu0 0.0
        %718 = vmatprep.subr.mxu0 0.0
        %719 = vmatpush2.msra.mxu0 0.0
        %720 = vmatprep.subr.mxu0 0.0
        %721 = vmatpush2.msra.mxu0 0.0
        %722 = vmatprep.subr.mxu0 0.0
        %723 = vmatpush2.msra.mxu0 0.0
        %724 = vmatprep.subr.mxu0 0.0
        %725 = vmatpush2.msra.mxu0 0.0
        %726 = vmatprep.subr.mxu0 0.0
        %727 = vmatpush2.msra.mxu0 0.0
        %728 = vmatprep.subr.mxu0 0.0
        %729 = vmatpush2.msra.mxu0 0.0
        %730 = vmatprep.subr.mxu0 0.0
        %731 = vmatpush2.msra.mxu0 0.0
        %732 = vmatprep.subr.mxu0 0.0
        %733 = vmatpush2.msra.mxu0 0.0
        %734 = vmatprep.subr.mxu0 0.0
        %735 = vmatpush2.msra.mxu0 0.0
        %736 = vmatprep.subr.mxu0 0.0
        %737 = vmatpush2.msra.mxu0 0.0
        %738 = vmatprep.subr.mxu0 0.0
        %739 = vmatpush2.msra.mxu0 0.0
        %740 = vmatprep.subr.mxu0 0.0
        %741 = vmatpush2.msra.mxu0 0.0
        %742 = vmatprep.subr.mxu0 0.0
        %743 = vmatpush2.msra.mxu0 0.0
        %744 = vmatprep.subr.mxu0 0.0
        %745 = vmatpush2.msra.mxu0 0.0
        %746 = vmatprep.mubr.f32.mxu0 0.0
        %747 = vmatmul.mubr.f32.gmra.mxu0 %v506
        %v748 = vpop.f32.mrf.mxu0
        %v749 = vadd.f32 0.0, %v748
        %v750 = vpop.f32.mrf.mxu0
        %751 = vdwg.mxu0
        %v752 = vld [vmem:[%s5] sm:$0xff]
        %v753 = vld [vmem:[%s5 + $0x8] sm:$0xff]
        %v754 = vld [vmem:[%s5 + $0x10] sm:$0xff]
        %v755 = vld [vmem:[%s5 + $0x18] sm:$0xff]
        %756 = vmatprep.subr.mxu0 0.0
        %757 = vmatpush1.msra.mxu0 0.0
        %758 = vmatprep.subr.mxu0 0.0
        %759 = vmatpush1.msra.mxu0 0.0
        %760 = vmatprep.subr.mxu0 0.0
        %761 = vmatpush1.msra.mxu0 0.0
        %762 = vmatprep.subr.mxu0 0.0
        %763 = vmatpush1.msra.mxu0 0.0
        %764 = vmatprep.subr.mxu0 0.0
        %765 = vmatpush1.msra.mxu0 0.0
        %766 = vmatprep.subr.mxu0 0.0
        %767 = vmatpush1.msra.mxu0 0.0
        %768 = vmatprep.subr.mxu0 0.0
        %769 = vmatpush1.msra.mxu0 0.0
        %770 = vmatprep.subr.mxu0 0.0
        %771 = vmatpush1.msra.mxu0 0.0
        %772 = vmatprep.subr.mxu0 0.0
        %773 = vmatpush1.msra.mxu0 0.0
        %774 = vmatprep.subr.mxu0 0.0
        %775 = vmatpush1.msra.mxu0 0.0
        %776 = vmatprep.subr.mxu0 0.0
        %777 = vmatpush1.msra.mxu0 0.0
        %778 = vmatprep.subr.mxu0 0.0
        %779 = vmatpush1.msra.mxu0 0.0
        %780 = vmatprep.subr.mxu0 0.0
        %781 = vmatpush1.msra.mxu0 %v755
        %782 = vmatprep.subr.mxu0 0.0
        %783 = vmatpush1.msra.mxu0 %v754
        %784 = vmatprep.subr.mxu0 0.0
        %785 = vmatpush1.msra.mxu0 %v753
        %786 = vmatprep.subr.mxu0 0.0
        %787 = vmatpush1.msra.mxu0 %v752
        %788 = vmatprep.subr.mxu0 0.0
        %789 = vmatpush2.msra.mxu0 0.0
        %790 = vmatprep.subr.mxu0 0.0
        %791 = vmatpush2.msra.mxu0 0.0
        %792 = vmatprep.subr.mxu0 0.0
        %793 = vmatpush2.msra.mxu0 0.0
        %794 = vmatprep.subr.mxu0 0.0
        %795 = vmatpush2.msra.mxu0 0.0
        %796 = vmatprep.subr.mxu0 0.0
        %797 = vmatpush2.msra.mxu0 0.0
        %798 = vmatprep.subr.mxu0 0.0
        %799 = vmatpush2.msra.mxu0 0.0
        %800 = vmatprep.subr.mxu0 0.0
        %801 = vmatpush2.msra.mxu0 0.0
        %802 = vmatprep.subr.mxu0 0.0
        %803 = vmatpush2.msra.mxu0 0.0
        %804 = vmatprep.subr.mxu0 0.0
        %805 = vmatpush2.msra.mxu0 0.0
        %806 = vmatprep.subr.mxu0 0.0
        %807 = vmatpush2.msra.mxu0 0.0
        %808 = vmatprep.subr.mxu0 0.0
        %809 = vmatpush2.msra.mxu0 0.0
        %810 = vmatprep.subr.mxu0 0.0
        %811 = vmatpush2.msra.mxu0 0.0
        %812 = vmatprep.subr.mxu0 0.0
        %813 = vmatpush2.msra.mxu0 0.0
        %814 = vmatprep.subr.mxu0 0.0
        %815 = vmatpush2.msra.mxu0 0.0
        %816 = vmatprep.subr.mxu0 0.0
        %817 = vmatpush2.msra.mxu0 0.0
        %818 = vmatprep.subr.mxu0 0.0
        %819 = vmatpush2.msra.mxu0 0.0
        %820 = vmatprep.mubr.f32.mxu0 0.0
        %821 = vmatmul.mubr.f32.gmra.mxu0 %v506
        %v822 = vpop.f32.mrf.mxu0
        %v823 = vadd.f32 0.0, %v822
        %v824 = vpop.f32.mrf.mxu0
        %825 = vdwg.mxu0
        %vm826 = vcmask 64512
        %v828 = vsel %vm826, %v675, 0
        %v831 = vsel %vm826, %v749, 0
        %833 = vmatprep.subr.mxu0 0.0
        %834 = vmatpush1.xpose.msra.mxu0 0.0
        %835 = vmatprep.subr.mxu0 0.0
        %836 = vmatpush1.xpose.msra.mxu0 0.0
        %837 = vmatprep.subr.mxu0 0.0
        %838 = vmatpush1.xpose.msra.mxu0 0.0
        %839 = vmatprep.subr.mxu0 0.0
        %840 = vmatpush1.xpose.msra.mxu0 0.0
        %841 = vmatprep.subr.mxu0 0.0
        %842 = vmatpush1.xpose.msra.mxu0 0.0
        %843 = vmatprep.subr.mxu0 0.0
        %844 = vmatpush1.xpose.msra.mxu0 0.0
        %845 = vmatprep.subr.mxu0 0.0
        %846 = vmatpush1.xpose.msra.mxu0 0.0
        %847 = vmatprep.subr.mxu0 0.0
        %848 = vmatpush1.xpose.msra.mxu0 0.0
        %849 = vmatprep.subr.mxu0 0.0
        %850 = vmatpush1.xpose.msra.mxu0 0.0
        %851 = vmatprep.subr.mxu0 0.0
        %852 = vmatpush1.xpose.msra.mxu0 0.0
        %853 = vmatprep.subr.mxu0 0.0
        %854 = vmatpush1.xpose.msra.mxu0 0.0
        %855 = vmatprep.subr.mxu0 0.0
        %856 = vmatpush1.xpose.msra.mxu0 0.0
        %857 = vmatprep.subr.mxu0 0.0
        %858 = vmatpush1.xpose.msra.mxu0 0.0
        %859 = vmatprep.subr.mxu0 0.0
        %860 = vmatpush1.xpose.msra.mxu0 0.0
        %861 = vmatprep.subr.mxu0 0.0
        %862 = vmatpush1.xpose.msra.mxu0 0.0
        %863 = vmatprep.subr.mxu0 0.0
        %864 = vmatpush1.xpose.msra.mxu0 %v831
        %865 = vmatprep.subr.mxu0 0.0
        %866 = vmatpush2.xpose.msra.mxu0 0.0
        %867 = vmatprep.subr.mxu0 0.0
        %868 = vmatpush2.xpose.msra.mxu0 0.0
        %869 = vmatprep.subr.mxu0 0.0
        %870 = vmatpush2.xpose.msra.mxu0 0.0
        %871 = vmatprep.subr.mxu0 0.0
        %872 = vmatpush2.xpose.msra.mxu0 0.0
        %873 = vmatprep.subr.mxu0 0.0
        %874 = vmatpush2.xpose.msra.mxu0 0.0
        %875 = vmatprep.subr.mxu0 0.0
        %876 = vmatpush2.xpose.msra.mxu0 0.0
        %877 = vmatprep.subr.mxu0 0.0
        %878 = vmatpush2.xpose.msra.mxu0 0.0
        %879 = vmatprep.subr.mxu0 0.0
        %880 = vmatpush2.xpose.msra.mxu0 0.0
        %881 = vmatprep.subr.mxu0 0.0
        %882 = vmatpush2.xpose.msra.mxu0 0.0
        %883 = vmatprep.subr.mxu0 0.0
        %884 = vmatpush2.xpose.msra.mxu0 0.0
        %885 = vmatprep.subr.mxu0 0.0
        %886 = vmatpush2.xpose.msra.mxu0 0.0
        %887 = vmatprep.subr.mxu0 0.0
        %888 = vmatpush2.xpose.msra.mxu0 0.0
        %889 = vmatprep.subr.mxu0 0.0
        %890 = vmatpush2.xpose.msra.mxu0 0.0
        %891 = vmatprep.subr.mxu0 0.0
        %892 = vmatpush2.xpose.msra.mxu0 0.0
        %893 = vmatprep.subr.mxu0 0.0
        %894 = vmatpush2.xpose.msra.mxu0 0.0
        %895 = vmatprep.subr.mxu0 0.0
        %896 = vmatpush2.xpose.msra.mxu0 0.0
        %897 = vmatprep.mubr.f32.mxu0 0.0
        %898 = vmatmul.mubr.f32.gmra.mxu0 %v828
        %v899 = vpop.f32.mrf.mxu0
        %v900 = vadd.f32 0.0, %v899
        %v901 = vpop.f32.mrf.mxu0
        %902 = vdwg.mxu0
        %v903 = vmul.f32 %v900, 0.35355338
        %v904 = vsel %vm826, %v903, -inf
        %905 = vmax.xlane.f32.xlu0 %v904
        %v906 = vpop.xlane.xlu0 %905
        %v907 = vsub.f32 %v903, %v906
        %v908 = vmul.f32 %v907, 1.442695
        %v909 = vpow.pop %v908
        %v910 = vsel %vm826, %v909, 0.0
        %911 = vadd.xlane.f32.xlu0 %v910
        %v912 = vpop.xlane.xlu0 %911
        %v913 = vrcp.pop %v912
        %v914 = vmul.f32 %v909, %v913
        %v916 = vsel %vm826, %v914, 0
        %918 = vmatprep.subr.mxu0 0.0
        %919 = vmatpush1.msra.mxu0 0.0
        %920 = vmatprep.subr.mxu0 0.0
        %921 = vmatpush1.msra.mxu0 0.0
        %922 = vmatprep.subr.mxu0 0.0
        %923 = vmatpush1.msra.mxu0 0.0
        %924 = vmatprep.subr.mxu0 0.0
        %925 = vmatpush1.msra.mxu0 0.0
        %926 = vmatprep.subr.mxu0 0.0
        %927 = vmatpush1.msra.mxu0 0.0
        %928 = vmatprep.subr.mxu0 0.0
        %929 = vmatpush1.msra.mxu0 0.0
        %930 = vmatprep.subr.mxu0 0.0
        %931 = vmatpush1.msra.mxu0 0.0
        %932 = vmatprep.subr.mxu0 0.0
        %933 = vmatpush1.msra.mxu0 0.0
        %934 = vmatprep.subr.mxu0 0.0
        %935 = vmatpush1.msra.mxu0 0.0
        %936 = vmatprep.subr.mxu0 0.0
        %937 = vmatpush1.msra.mxu0 0.0
        %938 = vmatprep.subr.mxu0 0.0
        %939 = vmatpush1.msra.mxu0 0.0
        %940 = vmatprep.subr.mxu0 0.0
        %941 = vmatpush1.msra.mxu0 0.0
        %942 = vmatprep.subr.mxu0 0.0
        %943 = vmatpush1.msra.mxu0 0.0
        %944 = vmatprep.subr.mxu0 0.0
        %945 = vmatpush1.msra.mxu0 0.0
        %946 = vmatprep.subr.mxu0 0.0
        %947 = vmatpush1.msra.mxu0 0.0
        %948 = vmatprep.subr.mxu0 0.0
        %949 = vmatpush1.msra.mxu0 %v823
        %950 = vmatprep.subr.mxu0 0.0
        %951 = vmatpush2.msra.mxu0 0.0
        %952 = vmatprep.subr.mxu0 0.0
        %953 = vmatpush2.msra.mxu0 0.0
        %954 = vmatprep.subr.mxu0 0.0
        %955 = vmatpush2.msra.mxu0 0.0
        %956 = vmatprep.subr.mxu0 0.0
        %957 = vmatpush2.msra.mxu0 0.0
        %958 = vmatprep.subr.mxu0 0.0
        %959 = vmatpush2.msra.mxu0 0.0
        %960 = vmatprep.subr.mxu0 0.0
        %961 = vmatpush2.msra.mxu0 0.0
        %962 = vmatprep.subr.mxu0 0.0
        %963 = vmatpush2.msra.mxu0 0.0
        %964 = vmatprep.subr.mxu0 0.0
        %965 = vmatpush2.msra.mxu0 0.0
        %966 = vmatprep.subr.mxu0 0.0
        %967 = vmatpush2.msra.mxu0 0.0
        %968 = vmatprep.subr.mxu0 0.0
        %969 = vmatpush2.msra.mxu0 0.0
        %970 = vmatprep.subr.mxu0 0.0
        %971 = vmatpush2.msra.mxu0 0.0
        %972 = vmatprep.subr.mxu0 0.0
        %973 = vmatpush2.msra.mxu0 0.0
        %974 = vmatprep.subr.mxu0 0.0
        %975 = vmatpush2.msra.mxu0 0.0
        %976 = vmatprep.subr.mxu0 0.0
        %977 = vmatpush2.msra.mxu0 0.0
        %978 = vmatprep.subr.mxu0 0.0
        %979 = vmatpush2.msra.mxu0 0.0
        %980 = vmatprep.subr.mxu0 0.0
        %981 = vmatpush2.msra.mxu0 0.0
        %982 = vmatprep.mubr.f32.mxu0 0.0
        %983 = vmatmul.mubr.f32.gmra.mxu0 %v916
        %v984 = vpop.f32.mrf.mxu0
        %v985 = vadd.f32 0.0, %v984
        %v986 = vpop.f32.mrf.mxu0
        %987 = vdwg.mxu0
        %s988 = scalar_lea.vmem %s3, 32
        %v989 = vld [vmem:[%s988] sm:$0xff]
        %v990 = vld [vmem:[%s988 + $0x8] sm:$0xff]
        %v991 = vld [vmem:[%s988 + $0x10] sm:$0xff]
        %v992 = vld [vmem:[%s988 + $0x18] sm:$0xff]
        %993 = vmatprep.subr.mxu0 0.0
        %994 = vmatpush1.msra.mxu0 0.0
        %995 = vmatprep.subr.mxu0 0.0
        %996 = vmatpush1.msra.mxu0 0.0
        %997 = vmatprep.subr.mxu0 0.0
        %998 = vmatpush1.msra.mxu0 0.0
        %999 = vmatprep.subr.mxu0 0.0
        %1000 = vmatpush1.msra.mxu0 0.0
        %1001 = vmatprep.subr.mxu0 0.0
        %1002 = vmatpush1.msra.mxu0 0.0
        %1003 = vmatprep.subr.mxu0 0.0
        %1004 = vmatpush1.msra.mxu0 0.0
        %1005 = vmatprep.subr.mxu0 0.0
        %1006 = vmatpush1.msra.mxu0 0.0
        %1007 = vmatprep.subr.mxu0 0.0
        %1008 = vmatpush1.msra.mxu0 0.0
        %1009 = vmatprep.subr.mxu0 0.0
        %1010 = vmatpush1.msra.mxu0 0.0
        %1011 = vmatprep.subr.mxu0 0.0
        %1012 = vmatpush1.msra.mxu0 0.0
        %1013 = vmatprep.subr.mxu0 0.0
        %1014 = vmatpush1.msra.mxu0 0.0
        %1015 = vmatprep.subr.mxu0 0.0
        %1016 = vmatpush1.msra.mxu0 0.0
        %1017 = vmatprep.subr.mxu0 0.0
        %1018 = vmatpush1.msra.mxu0 %v992
        %1019 = vmatprep.subr.mxu0 0.0
        %1020 = vmatpush1.msra.mxu0 %v991
        %1021 = vmatprep.subr.mxu0 0.0
        %1022 = vmatpush1.msra.mxu0 %v990
        %1023 = vmatprep.subr.mxu0 0.0
        %1024 = vmatpush1.msra.mxu0 %v989
        %1025 = vmatprep.subr.mxu0 0.0
        %1026 = vmatpush2.msra.mxu0 0.0
        %1027 = vmatprep.subr.mxu0 0.0
        %1028 = vmatpush2.msra.mxu0 0.0
        %1029 = vmatprep.subr.mxu0 0.0
        %1030 = vmatpush2.msra.mxu0 0.0
        %1031 = vmatprep.subr.mxu0 0.0
        %1032 = vmatpush2.msra.mxu0 0.0
        %1033 = vmatprep.subr.mxu0 0.0
        %1034 = vmatpush2.msra.mxu0 0.0
        %1035 = vmatprep.subr.mxu0 0.0
        %1036 = vmatpush2.msra.mxu0 0.0
        %1037 = vmatprep.subr.mxu0 0.0
        %1038 = vmatpush2.msra.mxu0 0.0
        %1039 = vmatprep.subr.mxu0 0.0
        %1040 = vmatpush2.msra.mxu0 0.0
        %1041 = vmatprep.subr.mxu0 0.0
        %1042 = vmatpush2.msra.mxu0 0.0
        %1043 = vmatprep.subr.mxu0 0.0
        %1044 = vmatpush2.msra.mxu0 0.0
        %1045 = vmatprep.subr.mxu0 0.0
        %1046 = vmatpush2.msra.mxu0 0.0
        %1047 = vmatprep.subr.mxu0 0.0
        %1048 = vmatpush2.msra.mxu0 0.0
        %1049 = vmatprep.subr.mxu0 0.0
        %1050 = vmatpush2.msra.mxu0 0.0
        %1051 = vmatprep.subr.mxu0 0.0
        %1052 = vmatpush2.msra.mxu0 0.0
        %1053 = vmatprep.subr.mxu0 0.0
        %1054 = vmatpush2.msra.mxu0 0.0
        %1055 = vmatprep.subr.mxu0 0.0
        %1056 = vmatpush2.msra.mxu0 0.0
        %1057 = vmatprep.mubr.f32.mxu0 0.0
        %1058 = vmatmul.mubr.f32.gmra.mxu0 %v606
        %v1059 = vpop.f32.mrf.mxu0
        %v1060 = vadd.f32 0.0, %v1059
        %v1061 = vpop.f32.mrf.mxu0
        %1062 = vdwg.mxu0
        %s1063 = scalar_lea.vmem %s4, 32
        %v1064 = vld [vmem:[%s1063] sm:$0xff]
        %v1065 = vld [vmem:[%s1063 + $0x8] sm:$0xff]
        %v1066 = vld [vmem:[%s1063 + $0x10] sm:$0xff]
        %v1067 = vld [vmem:[%s1063 + $0x18] sm:$0xff]
        %1068 = vmatprep.subr.mxu0 0.0
        %1069 = vmatpush1.msra.mxu0 0.0
        %1070 = vmatprep.subr.mxu0 0.0
        %1071 = vmatpush1.msra.mxu0 0.0
        %1072 = vmatprep.subr.mxu0 0.0
        %1073 = vmatpush1.msra.mxu0 0.0
        %1074 = vmatprep.subr.mxu0 0.0
        %1075 = vmatpush1.msra.mxu0 0.0
        %1076 = vmatprep.subr.mxu0 0.0
        %1077 = vmatpush1.msra.mxu0 0.0
        %1078 = vmatprep.subr.mxu0 0.0
        %1079 = vmatpush1.msra.mxu0 0.0
        %1080 = vmatprep.subr.mxu0 0.0
        %1081 = vmatpush1.msra.mxu0 0.0
        %1082 = vmatprep.subr.mxu0 0.0
        %1083 = vmatpush1.msra.mxu0 0.0
        %1084 = vmatprep.subr.mxu0 0.0
        %1085 = vmatpush1.msra.mxu0 0.0
        %1086 = vmatprep.subr.mxu0 0.0
        %1087 = vmatpush1.msra.mxu0 0.0
        %1088 = vmatprep.subr.mxu0 0.0
        %1089 = vmatpush1.msra.mxu0 0.0
        %1090 = vmatprep.subr.mxu0 0.0
        %1091 = vmatpush1.msra.mxu0 0.0
        %1092 = vmatprep.subr.mxu0 0.0
        %1093 = vmatpush1.msra.mxu0 %v1067
        %1094 = vmatprep.subr.mxu0 0.0
        %1095 = vmatpush1.msra.mxu0 %v1066
        %1096 = vmatprep.subr.mxu0 0.0
        %1097 = vmatpush1.msra.mxu0 %v1065
        %1098 = vmatprep.subr.mxu0 0.0
        %1099 = vmatpush1.msra.mxu0 %v1064
        %1100 = vmatprep.subr.mxu0 0.0
        %1101 = vmatpush2.msra.mxu0 0.0
        %1102 = vmatprep.subr.mxu0 0.0
        %1103 = vmatpush2.msra.mxu0 0.0
        %1104 = vmatprep.subr.mxu0 0.0
        %1105 = vmatpush2.msra.mxu0 0.0
        %1106 = vmatprep.subr.mxu0 0.0
        %1107 = vmatpush2.msra.mxu0 0.0
        %1108 = vmatprep.subr.mxu0 0.0
        %1109 = vmatpush2.msra.mxu0 0.0
        %1110 = vmatprep.subr.mxu0 0.0
        %1111 = vmatpush2.msra.mxu0 0.0
        %1112 = vmatprep.subr.mxu0 0.0
        %1113 = vmatpush2.msra.mxu0 0.0
        %1114 = vmatprep.subr.mxu0 0.0
        %1115 = vmatpush2.msra.mxu0 0.0
        %1116 = vmatprep.subr.mxu0 0.0
        %1117 = vmatpush2.msra.mxu0 0.0
        %1118 = vmatprep.subr.mxu0 0.0
        %1119 = vmatpush2.msra.mxu0 0.0
        %1120 = vmatprep.subr.mxu0 0.0
        %1121 = vmatpush2.msra.mxu0 0.0
        %1122 = vmatprep.subr.mxu0 0.0
        %1123 = vmatpush2.msra.mxu0 0.0
        %1124 = vmatprep.subr.mxu0 0.0
        %1125 = vmatpush2.msra.mxu0 0.0
        %1126 = vmatprep.subr.mxu0 0.0
        %1127 = vmatpush2.msra.mxu0 0.0
        %1128 = vmatprep.subr.mxu0 0.0
        %1129 = vmatpush2.msra.mxu0 0.0
        %1130 = vmatprep.subr.mxu0 0.0
        %1131 = vmatpush2.msra.mxu0 0.0
        %1132 = vmatprep.mubr.f32.mxu0 0.0
        %1133 = vmatmul.mubr.f32.gmra.mxu0 %v506
        %v1134 = vpop.f32.mrf.mxu0
        %v1135 = vadd.f32 0.0, %v1134
        %v1136 = vpop.f32.mrf.mxu0
        %1137 = vdwg.mxu0
        %s1138 = scalar_lea.vmem %s5, 32
        %v1139 = vld [vmem:[%s1138] sm:$0xff]
        %v1140 = vld [vmem:[%s1138 + $0x8] sm:$0xff]
        %v1141 = vld [vmem:[%s1138 + $0x10] sm:$0xff]
        %v1142 = vld [vmem:[%s1138 + $0x18] sm:$0xff]
        %1143 = vmatprep.subr.mxu0 0.0
        %1144 = vmatpush1.msra.mxu0 0.0
        %1145 = vmatprep.subr.mxu0 0.0
        %1146 = vmatpush1.msra.mxu0 0.0
        %1147 = vmatprep.subr.mxu0 0.0
        %1148 = vmatpush1.msra.mxu0 0.0
        %1149 = vmatprep.subr.mxu0 0.0
        %1150 = vmatpush1.msra.mxu0 0.0
        %1151 = vmatprep.subr.mxu0 0.0
        %1152 = vmatpush1.msra.mxu0 0.0
        %1153 = vmatprep.subr.mxu0 0.0
        %1154 = vmatpush1.msra.mxu0 0.0
        %1155 = vmatprep.subr.mxu0 0.0
        %1156 = vmatpush1.msra.mxu0 0.0
        %1157 = vmatprep.subr.mxu0 0.0
        %1158 = vmatpush1.msra.mxu0 0.0
        %1159 = vmatprep.subr.mxu0 0.0
        %1160 = vmatpush1.msra.mxu0 0.0
        %1161 = vmatprep.subr.mxu0 0.0
        %1162 = vmatpush1.msra.mxu0 0.0
        %1163 = vmatprep.subr.mxu0 0.0
        %1164 = vmatpush1.msra.mxu0 0.0
        %1165 = vmatprep.subr.mxu0 0.0
        %1166 = vmatpush1.msra.mxu0 0.0
        %1167 = vmatprep.subr.mxu0 0.0
        %1168 = vmatpush1.msra.mxu0 %v1142
        %1169 = vmatprep.subr.mxu0 0.0
        %1170 = vmatpush1.msra.mxu0 %v1141
        %1171 = vmatprep.subr.mxu0 0.0
        %1172 = vmatpush1.msra.mxu0 %v1140
        %1173 = vmatprep.subr.mxu0 0.0
        %1174 = vmatpush1.msra.mxu0 %v1139
        %1175 = vmatprep.subr.mxu0 0.0
        %1176 = vmatpush2.msra.mxu0 0.0
        %1177 = vmatprep.subr.mxu0 0.0
        %1178 = vmatpush2.msra.mxu0 0.0
        %1179 = vmatprep.subr.mxu0 0.0
        %1180 = vmatpush2.msra.mxu0 0.0
        %1181 = vmatprep.subr.mxu0 0.0
        %1182 = vmatpush2.msra.mxu0 0.0
        %1183 = vmatprep.subr.mxu0 0.0
        %1184 = vmatpush2.msra.mxu0 0.0
        %1185 = vmatprep.subr.mxu0 0.0
        %1186 = vmatpush2.msra.mxu0 0.0
        %1187 = vmatprep.subr.mxu0 0.0
        %1188 = vmatpush2.msra.mxu0 0.0
        %1189 = vmatprep.subr.mxu0 0.0
        %1190 = vmatpush2.msra.mxu0 0.0
        %1191 = vmatprep.subr.mxu0 0.0
        %1192 = vmatpush2.msra.mxu0 0.0
        %1193 = vmatprep.subr.mxu0 0.0
        %1194 = vmatpush2.msra.mxu0 0.0
        %1195 = vmatprep.subr.mxu0 0.0
        %1196 = vmatpush2.msra.mxu0 0.0
        %1197 = vmatprep.subr.mxu0 0.0
        %1198 = vmatpush2.msra.mxu0 0.0
        %1199 = vmatprep.subr.mxu0 0.0
        %1200 = vmatpush2.msra.mxu0 0.0
        %1201 = vmatprep.subr.mxu0 0.0
        %1202 = vmatpush2.msra.mxu0 0.0
        %1203 = vmatprep.subr.mxu0 0.0
        %1204 = vmatpush2.msra.mxu0 0.0
        %1205 = vmatprep.subr.mxu0 0.0
        %1206 = vmatpush2.msra.mxu0 0.0
        %1207 = vmatprep.mubr.f32.mxu0 0.0
        %1208 = vmatmul.mubr.f32.gmra.mxu0 %v506
        %v1209 = vpop.f32.mrf.mxu0
        %v1210 = vadd.f32 0.0, %v1209
        %v1211 = vpop.f32.mrf.mxu0
        %1212 = vdwg.mxu0
        %v1214 = vsel %vm826, %v1060, 0
        %v1217 = vsel %vm826, %v1135, 0
        %1219 = vmatprep.subr.mxu0 0.0
        %1220 = vmatpush1.xpose.msra.mxu0 0.0
        %1221 = vmatprep.subr.mxu0 0.0
        %1222 = vmatpush1.xpose.msra.mxu0 0.0
        %1223 = vmatprep.subr.mxu0 0.0
        %1224 = vmatpush1.xpose.msra.mxu0 0.0
        %1225 = vmatprep.subr.mxu0 0.0
        %1226 = vmatpush1.xpose.msra.mxu0 0.0
        %1227 = vmatprep.subr.mxu0 0.0
        %1228 = vmatpush1.xpose.msra.mxu0 0.0
        %1229 = vmatprep.subr.mxu0 0.0
        %1230 = vmatpush1.xpose.msra.mxu0 0.0
        %1231 = vmatprep.subr.mxu0 0.0
        %1232 = vmatpush1.xpose.msra.mxu0 0.0
        %1233 = vmatprep.subr.mxu0 0.0
        %1234 = vmatpush1.xpose.msra.mxu0 0.0
        %1235 = vmatprep.subr.mxu0 0.0
        %1236 = vmatpush1.xpose.msra.mxu0 0.0
        %1237 = vmatprep.subr.mxu0 0.0
        %1238 = vmatpush1.xpose.msra.mxu0 0.0
        %1239 = vmatprep.subr.mxu0 0.0
        %1240 = vmatpush1.xpose.msra.mxu0 0.0
        %1241 = vmatprep.subr.mxu0 0.0
        %1242 = vmatpush1.xpose.msra.mxu0 0.0
        %1243 = vmatprep.subr.mxu0 0.0
        %1244 = vmatpush1.xpose.msra.mxu0 0.0
        %1245 = vmatprep.subr.mxu0 0.0
        %1246 = vmatpush1.xpose.msra.mxu0 0.0
        %1247 = vmatprep.subr.mxu0 0.0
        %1248 = vmatpush1.xpose.msra.mxu0 0.0
        %1249 = vmatprep.subr.mxu0 0.0
        %1250 = vmatpush1.xpose.msra.mxu0 %v1217
        %1251 = vmatprep.subr.mxu0 0.0
        %1252 = vmatpush2.xpose.msra.mxu0 0.0
        %1253 = vmatprep.subr.mxu0 0.0
        %1254 = vmatpush2.xpose.msra.mxu0 0.0
        %1255 = vmatprep.subr.mxu0 0.0
        %1256 = vmatpush2.xpose.msra.mxu0 0.0
        %1257 = vmatprep.subr.mxu0 0.0
        %1258 = vmatpush2.xpose.msra.mxu0 0.0
        %1259 = vmatprep.subr.mxu0 0.0
        %1260 = vmatpush2.xpose.msra.mxu0 0.0
        %1261 = vmatprep.subr.mxu0 0.0
        %1262 = vmatpush2.xpose.msra.mxu0 0.0
        %1263 = vmatprep.subr.mxu0 0.0
        %1264 = vmatpush2.xpose.msra.mxu0 0.0
        %1265 = vmatprep.subr.mxu0 0.0
        %1266 = vmatpush2.xpose.msra.mxu0 0.0
        %1267 = vmatprep.subr.mxu0 0.0
        %1268 = vmatpush2.xpose.msra.mxu0 0.0
        %1269 = vmatprep.subr.mxu0 0.0
        %1270 = vmatpush2.xpose.msra.mxu0 0.0
        %1271 = vmatprep.subr.mxu0 0.0
        %1272 = vmatpush2.xpose.msra.mxu0 0.0
        %1273 = vmatprep.subr.mxu0 0.0
        %1274 = vmatpush2.xpose.msra.mxu0 0.0
        %1275 = vmatprep.subr.mxu0 0.0
        %1276 = vmatpush2.xpose.msra.mxu0 0.0
        %1277 = vmatprep.subr.mxu0 0.0
        %1278 = vmatpush2.xpose.msra.mxu0 0.0
        %1279 = vmatprep.subr.mxu0 0.0
        %1280 = vmatpush2.xpose.msra.mxu0 0.0
        %1281 = vmatprep.subr.mxu0 0.0
        %1282 = vmatpush2.xpose.msra.mxu0 0.0
        %1283 = vmatprep.mubr.f32.mxu0 0.0
        %1284 = vmatmul.mubr.f32.gmra.mxu0 %v1214
        %v1285 = vpop.f32.mrf.mxu0
        %v1286 = vadd.f32 0.0, %v1285
        %v1287 = vpop.f32.mrf.mxu0
        %1288 = vdwg.mxu0
        %v1289 = vmul.f32 %v1286, 0.35355338
        %v1290 = vsel %vm826, %v1289, -inf
        %1291 = vmax.xlane.f32.xlu0 %v1290
        %v1292 = vpop.xlane.xlu0 %1291
        %v1293 = vsub.f32 %v1289, %v1292
        %v1294 = vmul.f32 %v1293, 1.442695
        %v1295 = vpow.pop %v1294
        %v1296 = vsel %vm826, %v1295, 0.0
        %1297 = vadd.xlane.f32.xlu0 %v1296
        %v1298 = vpop.xlane.xlu0 %1297
        %v1299 = vrcp.pop %v1298
        %v1300 = vmul.f32 %v1295, %v1299
        %v1302 = vsel %vm826, %v1300, 0
        %1304 = vmatprep.subr.mxu0 0.0
        %1305 = vmatpush1.msra.mxu0 0.0
        %1306 = vmatprep.subr.mxu0 0.0
        %1307 = vmatpush1.msra.mxu0 0.0
        %1308 = vmatprep.subr.mxu0 0.0
        %1309 = vmatpush1.msra.mxu0 0.0
        %1310 = vmatprep.subr.mxu0 0.0
        %1311 = vmatpush1.msra.mxu0 0.0
        %1312 = vmatprep.subr.mxu0 0.0
        %1313 = vmatpush1.msra.mxu0 0.0
        %1314 = vmatprep.subr.mxu0 0.0
        %1315 = vmatpush1.msra.mxu0 0.0
        %1316 = vmatprep.subr.mxu0 0.0
        %1317 = vmatpush1.msra.mxu0 0.0
        %1318 = vmatprep.subr.mxu0 0.0
        %1319 = vmatpush1.msra.mxu0 0.0
        %1320 = vmatprep.subr.mxu0 0.0
        %1321 = vmatpush1.msra.mxu0 0.0
        %1322 = vmatprep.subr.mxu0 0.0
        %1323 = vmatpush1.msra.mxu0 0.0
        %1324 = vmatprep.subr.mxu0 0.0
        %1325 = vmatpush1.msra.mxu0 0.0
        %1326 = vmatprep.subr.mxu0 0.0
        %1327 = vmatpush1.msra.mxu0 0.0
        %1328 = vmatprep.subr.mxu0 0.0
        %1329 = vmatpush1.msra.mxu0 0.0
        %1330 = vmatprep.subr.mxu0 0.0
        %1331 = vmatpush1.msra.mxu0 0.0
        %1332 = vmatprep.subr.mxu0 0.0
        %1333 = vmatpush1.msra.mxu0 0.0
        %1334 = vmatprep.subr.mxu0 0.0
        %1335 = vmatpush1.msra.mxu0 %v1210
        %1336 = vmatprep.subr.mxu0 0.0
        %1337 = vmatpush2.msra.mxu0 0.0
        %1338 = vmatprep.subr.mxu0 0.0
        %1339 = vmatpush2.msra.mxu0 0.0
        %1340 = vmatprep.subr.mxu0 0.0
        %1341 = vmatpush2.msra.mxu0 0.0
        %1342 = vmatprep.subr.mxu0 0.0
        %1343 = vmatpush2.msra.mxu0 0.0
        %1344 = vmatprep.subr.mxu0 0.0
        %1345 = vmatpush2.msra.mxu0 0.0
        %1346 = vmatprep.subr.mxu0 0.0
        %1347 = vmatpush2.msra.mxu0 0.0
        %1348 = vmatprep.subr.mxu0 0.0
        %1349 = vmatpush2.msra.mxu0 0.0
        %1350 = vmatprep.subr.mxu0 0.0
        %1351 = vmatpush2.msra.mxu0 0.0
        %1352 = vmatprep.subr.mxu0 0.0
        %1353 = vmatpush2.msra.mxu0 0.0
        %1354 = vmatprep.subr.mxu0 0.0
        %1355 = vmatpush2.msra.mxu0 0.0
        %1356 = vmatprep.subr.mxu0 0.0
        %1357 = vmatpush2.msra.mxu0 0.0
        %1358 = vmatprep.subr.mxu0 0.0
        %1359 = vmatpush2.msra.mxu0 0.0
        %1360 = vmatprep.subr.mxu0 0.0
        %1361 = vmatpush2.msra.mxu0 0.0
        %1362 = vmatprep.subr.mxu0 0.0
        %1363 = vmatpush2.msra.mxu0 0.0
        %1364 = vmatprep.subr.mxu0 0.0
        %1365 = vmatpush2.msra.mxu0 0.0
        %1366 = vmatprep.subr.mxu0 0.0
        %1367 = vmatpush2.msra.mxu0 0.0
        %1368 = vmatprep.mubr.f32.mxu0 0.0
        %1369 = vmatmul.mubr.f32.gmra.mxu0 %v1302
        %v1370 = vpop.f32.mrf.mxu0
        %v1371 = vadd.f32 0.0, %v1370
        %v1372 = vpop.f32.mrf.mxu0
        %1373 = vdwg.mxu0
        %s1374 = scalar_lea.vmem %s3, 64
        %v1375 = vld [vmem:[%s1374] sm:$0xff]
        %v1376 = vld [vmem:[%s1374 + $0x8] sm:$0xff]
        %v1377 = vld [vmem:[%s1374 + $0x10] sm:$0xff]
        %v1378 = vld [vmem:[%s1374 + $0x18] sm:$0xff]
        %1379 = vmatprep.subr.mxu0 0.0
        %1380 = vmatpush1.msra.mxu0 0.0
        %1381 = vmatprep.subr.mxu0 0.0
        %1382 = vmatpush1.msra.mxu0 0.0
        %1383 = vmatprep.subr.mxu0 0.0
        %1384 = vmatpush1.msra.mxu0 0.0
        %1385 = vmatprep.subr.mxu0 0.0
        %1386 = vmatpush1.msra.mxu0 0.0
        %1387 = vmatprep.subr.mxu0 0.0
        %1388 = vmatpush1.msra.mxu0 0.0
        %1389 = vmatprep.subr.mxu0 0.0
        %1390 = vmatpush1.msra.mxu0 0.0
        %1391 = vmatprep.subr.mxu0 0.0
        %1392 = vmatpush1.msra.mxu0 0.0
        %1393 = vmatprep.subr.mxu0 0.0
        %1394 = vmatpush1.msra.mxu0 0.0
        %1395 = vmatprep.subr.mxu0 0.0
        %1396 = vmatpush1.msra.mxu0 0.0
        %1397 = vmatprep.subr.mxu0 0.0
        %1398 = vmatpush1.msra.mxu0 0.0
        %1399 = vmatprep.subr.mxu0 0.0
        %1400 = vmatpush1.msra.mxu0 0.0
        %1401 = vmatprep.subr.mxu0 0.0
        %1402 = vmatpush1.msra.mxu0 0.0
        %1403 = vmatprep.subr.mxu0 0.0
        %1404 = vmatpush1.msra.mxu0 %v1378
        %1405 = vmatprep.subr.mxu0 0.0
        %1406 = vmatpush1.msra.mxu0 %v1377
        %1407 = vmatprep.subr.mxu0 0.0
        %1408 = vmatpush1.msra.mxu0 %v1376
        %1409 = vmatprep.subr.mxu0 0.0
        %1410 = vmatpush1.msra.mxu0 %v1375
        %1411 = vmatprep.subr.mxu0 0.0
        %1412 = vmatpush2.msra.mxu0 0.0
        %1413 = vmatprep.subr.mxu0 0.0
        %1414 = vmatpush2.msra.mxu0 0.0
        %1415 = vmatprep.subr.mxu0 0.0
        %1416 = vmatpush2.msra.mxu0 0.0
        %1417 = vmatprep.subr.mxu0 0.0
        %1418 = vmatpush2.msra.mxu0 0.0
        %1419 = vmatprep.subr.mxu0 0.0
        %1420 = vmatpush2.msra.mxu0 0.0
        %1421 = vmatprep.subr.mxu0 0.0
        %1422 = vmatpush2.msra.mxu0 0.0
        %1423 = vmatprep.subr.mxu0 0.0
        %1424 = vmatpush2.msra.mxu0 0.0
        %1425 = vmatprep.subr.mxu0 0.0
        %1426 = vmatpush2.msra.mxu0 0.0
        %1427 = vmatprep.subr.mxu0 0.0
        %1428 = vmatpush2.msra.mxu0 0.0
        %1429 = vmatprep.subr.mxu0 0.0
        %1430 = vmatpush2.msra.mxu0 0.0
        %1431 = vmatprep.subr.mxu0 0.0
        %1432 = vmatpush2.msra.mxu0 0.0
        %1433 = vmatprep.subr.mxu0 0.0
        %1434 = vmatpush2.msra.mxu0 0.0
        %1435 = vmatprep.subr.mxu0 0.0
        %1436 = vmatpush2.msra.mxu0 0.0
        %1437 = vmatprep.subr.mxu0 0.0
        %1438 = vmatpush2.msra.mxu0 0.0
        %1439 = vmatprep.subr.mxu0 0.0
        %1440 = vmatpush2.msra.mxu0 0.0
        %1441 = vmatprep.subr.mxu0 0.0
        %1442 = vmatpush2.msra.mxu0 0.0
        %1443 = vmatprep.mubr.f32.mxu0 0.0
        %1444 = vmatmul.mubr.f32.gmra.mxu0 %v606
        %v1445 = vpop.f32.mrf.mxu0
        %v1446 = vadd.f32 0.0, %v1445
        %v1447 = vpop.f32.mrf.mxu0
        %1448 = vdwg.mxu0
        %s1449 = scalar_lea.vmem %s4, 64
        %v1450 = vld [vmem:[%s1449] sm:$0xff]
        %v1451 = vld [vmem:[%s1449 + $0x8] sm:$0xff]
        %v1452 = vld [vmem:[%s1449 + $0x10] sm:$0xff]
        %v1453 = vld [vmem:[%s1449 + $0x18] sm:$0xff]
        %1454 = vmatprep.subr.mxu0 0.0
        %1455 = vmatpush1.msra.mxu0 0.0
        %1456 = vmatprep.subr.mxu0 0.0
        %1457 = vmatpush1.msra.mxu0 0.0
        %1458 = vmatprep.subr.mxu0 0.0
        %1459 = vmatpush1.msra.mxu0 0.0
        %1460 = vmatprep.subr.mxu0 0.0
        %1461 = vmatpush1.msra.mxu0 0.0
        %1462 = vmatprep.subr.mxu0 0.0
        %1463 = vmatpush1.msra.mxu0 0.0
        %1464 = vmatprep.subr.mxu0 0.0
        %1465 = vmatpush1.msra.mxu0 0.0
        %1466 = vmatprep.subr.mxu0 0.0
        %1467 = vmatpush1.msra.mxu0 0.0
        %1468 = vmatprep.subr.mxu0 0.0
        %1469 = vmatpush1.msra.mxu0 0.0
        %1470 = vmatprep.subr.mxu0 0.0
        %1471 = vmatpush1.msra.mxu0 0.0
        %1472 = vmatprep.subr.mxu0 0.0
        %1473 = vmatpush1.msra.mxu0 0.0
        %1474 = vmatprep.subr.mxu0 0.0
        %1475 = vmatpush1.msra.mxu0 0.0
        %1476 = vmatprep.subr.mxu0 0.0
        %1477 = vmatpush1.msra.mxu0 0.0
        %1478 = vmatprep.subr.mxu0 0.0
        %1479 = vmatpush1.msra.mxu0 %v1453
        %1480 = vmatprep.subr.mxu0 0.0
        %1481 = vmatpush1.msra.mxu0 %v1452
        %1482 = vmatprep.subr.mxu0 0.0
        %1483 = vmatpush1.msra.mxu0 %v1451
        %1484 = vmatprep.subr.mxu0 0.0
        %1485 = vmatpush1.msra.mxu0 %v1450
        %1486 = vmatprep.subr.mxu0 0.0
        %1487 = vmatpush2.msra.mxu0 0.0
        %1488 = vmatprep.subr.mxu0 0.0
        %1489 = vmatpush2.msra.mxu0 0.0
        %1490 = vmatprep.subr.mxu0 0.0
        %1491 = vmatpush2.msra.mxu0 0.0
        %1492 = vmatprep.subr.mxu0 0.0
        %1493 = vmatpush2.msra.mxu0 0.0
        %1494 = vmatprep.subr.mxu0 0.0
        %1495 = vmatpush2.msra.mxu0 0.0
        %1496 = vmatprep.subr.mxu0 0.0
        %1497 = vmatpush2.msra.mxu0 0.0
        %1498 = vmatprep.subr.mxu0 0.0
        %1499 = vmatpush2.msra.mxu0 0.0
        %1500 = vmatprep.subr.mxu0 0.0
        %1501 = vmatpush2.msra.mxu0 0.0
        %1502 = vmatprep.subr.mxu0 0.0
        %1503 = vmatpush2.msra.mxu0 0.0
        %1504 = vmatprep.subr.mxu0 0.0
        %1505 = vmatpush2.msra.mxu0 0.0
        %1506 = vmatprep.subr.mxu0 0.0
        %1507 = vmatpush2.msra.mxu0 0.0
        %1508 = vmatprep.subr.mxu0 0.0
        %1509 = vmatpush2.msra.mxu0 0.0
        %1510 = vmatprep.subr.mxu0 0.0
        %1511 = vmatpush2.msra.mxu0 0.0
        %1512 = vmatprep.subr.mxu0 0.0
        %1513 = vmatpush2.msra.mxu0 0.0
        %1514 = vmatprep.subr.mxu0 0.0
        %1515 = vmatpush2.msra.mxu0 0.0
        %1516 = vmatprep.subr.mxu0 0.0
        %1517 = vmatpush2.msra.mxu0 0.0
        %1518 = vmatprep.mubr.f32.mxu0 0.0
        %1519 = vmatmul.mubr.f32.gmra.mxu0 %v506
        %v1520 = vpop.f32.mrf.mxu0
        %v1521 = vadd.f32 0.0, %v1520
        %v1522 = vpop.f32.mrf.mxu0
        %1523 = vdwg.mxu0
        %s1524 = scalar_lea.vmem %s5, 64
        %v1525 = vld [vmem:[%s1524] sm:$0xff]
        %v1526 = vld [vmem:[%s1524 + $0x8] sm:$0xff]
        %v1527 = vld [vmem:[%s1524 + $0x10] sm:$0xff]
        %v1528 = vld [vmem:[%s1524 + $0x18] sm:$0xff]
        %1529 = vmatprep.subr.mxu0 0.0
        %1530 = vmatpush1.msra.mxu0 0.0
        %1531 = vmatprep.subr.mxu0 0.0
        %1532 = vmatpush1.msra.mxu0 0.0
        %1533 = vmatprep.subr.mxu0 0.0
        %1534 = vmatpush1.msra.mxu0 0.0
        %1535 = vmatprep.subr.mxu0 0.0
        %1536 = vmatpush1.msra.mxu0 0.0
        %1537 = vmatprep.subr.mxu0 0.0
        %1538 = vmatpush1.msra.mxu0 0.0
        %1539 = vmatprep.subr.mxu0 0.0
        %1540 = vmatpush1.msra.mxu0 0.0
        %1541 = vmatprep.subr.mxu0 0.0
        %1542 = vmatpush1.msra.mxu0 0.0
        %1543 = vmatprep.subr.mxu0 0.0
        %1544 = vmatpush1.msra.mxu0 0.0
        %1545 = vmatprep.subr.mxu0 0.0
        %1546 = vmatpush1.msra.mxu0 0.0
        %1547 = vmatprep.subr.mxu0 0.0
        %1548 = vmatpush1.msra.mxu0 0.0
        %1549 = vmatprep.subr.mxu0 0.0
        %1550 = vmatpush1.msra.mxu0 0.0
        %1551 = vmatprep.subr.mxu0 0.0
        %1552 = vmatpush1.msra.mxu0 0.0
        %1553 = vmatprep.subr.mxu0 0.0
        %1554 = vmatpush1.msra.mxu0 %v1528
        %1555 = vmatprep.subr.mxu0 0.0
        %1556 = vmatpush1.msra.mxu0 %v1527
        %1557 = vmatprep.subr.mxu0 0.0
        %1558 = vmatpush1.msra.mxu0 %v1526
        %1559 = vmatprep.subr.mxu0 0.0
        %1560 = vmatpush1.msra.mxu0 %v1525
        %1561 = vmatprep.subr.mxu0 0.0
        %1562 = vmatpush2.msra.mxu0 0.0
        %1563 = vmatprep.subr.mxu0 0.0
        %1564 = vmatpush2.msra.mxu0 0.0
        %1565 = vmatprep.subr.mxu0 0.0
        %1566 = vmatpush2.msra.mxu0 0.0
        %1567 = vmatprep.subr.mxu0 0.0
        %1568 = vmatpush2.msra.mxu0 0.0
        %1569 = vmatprep.subr.mxu0 0.0
        %1570 = vmatpush2.msra.mxu0 0.0
        %1571 = vmatprep.subr.mxu0 0.0
        %1572 = vmatpush2.msra.mxu0 0.0
        %1573 = vmatprep.subr.mxu0 0.0
        %1574 = vmatpush2.msra.mxu0 0.0
        %1575 = vmatprep.subr.mxu0 0.0
        %1576 = vmatpush2.msra.mxu0 0.0
        %1577 = vmatprep.subr.mxu0 0.0
        %1578 = vmatpush2.msra.mxu0 0.0
        %1579 = vmatprep.subr.mxu0 0.0
        %1580 = vmatpush2.msra.mxu0 0.0
        %1581 = vmatprep.subr.mxu0 0.0
        %1582 = vmatpush2.msra.mxu0 0.0
        %1583 = vmatprep.subr.mxu0 0.0
        %1584 = vmatpush2.msra.mxu0 0.0
        %1585 = vmatprep.subr.mxu0 0.0
        %1586 = vmatpush2.msra.mxu0 0.0
        %1587 = vmatprep.subr.mxu0 0.0
        %1588 = vmatpush2.msra.mxu0 0.0
        %1589 = vmatprep.subr.mxu0 0.0
        %1590 = vmatpush2.msra.mxu0 0.0
        %1591 = vmatprep.subr.mxu0 0.0
        %1592 = vmatpush2.msra.mxu0 0.0
        %1593 = vmatprep.mubr.f32.mxu0 0.0
        %1594 = vmatmul.mubr.f32.gmra.mxu0 %v506
        %v1595 = vpop.f32.mrf.mxu0
        %v1596 = vadd.f32 0.0, %v1595
        %v1597 = vpop.f32.mrf.mxu0
        %1598 = vdwg.mxu0
        %v1600 = vsel %vm826, %v1446, 0
        %v1603 = vsel %vm826, %v1521, 0
        %1605 = vmatprep.subr.mxu0 0.0
        %1606 = vmatpush1.xpose.msra.mxu0 0.0
        %1607 = vmatprep.subr.mxu0 0.0
        %1608 = vmatpush1.xpose.msra.mxu0 0.0
        %1609 = vmatprep.subr.mxu0 0.0
        %1610 = vmatpush1.xpose.msra.mxu0 0.0
        %1611 = vmatprep.subr.mxu0 0.0
        %1612 = vmatpush1.xpose.msra.mxu0 0.0
        %1613 = vmatprep.subr.mxu0 0.0
        %1614 = vmatpush1.xpose.msra.mxu0 0.0
        %1615 = vmatprep.subr.mxu0 0.0
        %1616 = vmatpush1.xpose.msra.mxu0 0.0
        %1617 = vmatprep.subr.mxu0 0.0
        %1618 = vmatpush1.xpose.msra.mxu0 0.0
        %1619 = vmatprep.subr.mxu0 0.0
        %1620 = vmatpush1.xpose.msra.mxu0 0.0
        %1621 = vmatprep.subr.mxu0 0.0
        %1622 = vmatpush1.xpose.msra.mxu0 0.0
        %1623 = vmatprep.subr.mxu0 0.0
        %1624 = vmatpush1.xpose.msra.mxu0 0.0
        %1625 = vmatprep.subr.mxu0 0.0
        %1626 = vmatpush1.xpose.msra.mxu0 0.0
        %1627 = vmatprep.subr.mxu0 0.0
        %1628 = vmatpush1.xpose.msra.mxu0 0.0
        %1629 = vmatprep.subr.mxu0 0.0
        %1630 = vmatpush1.xpose.msra.mxu0 0.0
        %1631 = vmatprep.subr.mxu0 0.0
        %1632 = vmatpush1.xpose.msra.mxu0 0.0
        %1633 = vmatprep.subr.mxu0 0.0
        %1634 = vmatpush1.xpose.msra.mxu0 0.0
        %1635 = vmatprep.subr.mxu0 0.0
        %1636 = vmatpush1.xpose.msra.mxu0 %v1603
        %1637 = vmatprep.subr.mxu0 0.0
        %1638 = vmatpush2.xpose.msra.mxu0 0.0
        %1639 = vmatprep.subr.mxu0 0.0
        %1640 = vmatpush2.xpose.msra.mxu0 0.0
        %1641 = vmatprep.subr.mxu0 0.0
        %1642 = vmatpush2.xpose.msra.mxu0 0.0
        %1643 = vmatprep.subr.mxu0 0.0
        %1644 = vmatpush2.xpose.msra.mxu0 0.0
        %1645 = vmatprep.subr.mxu0 0.0
        %1646 = vmatpush2.xpose.msra.mxu0 0.0
        %1647 = vmatprep.subr.mxu0 0.0
        %1648 = vmatpush2.xpose.msra.mxu0 0.0
        %1649 = vmatprep.subr.mxu0 0.0
        %1650 = vmatpush2.xpose.msra.mxu0 0.0
        %1651 = vmatprep.subr.mxu0 0.0
        %1652 = vmatpush2.xpose.msra.mxu0 0.0
        %1653 = vmatprep.subr.mxu0 0.0
        %1654 = vmatpush2.xpose.msra.mxu0 0.0
        %1655 = vmatprep.subr.mxu0 0.0
        %1656 = vmatpush2.xpose.msra.mxu0 0.0
        %1657 = vmatprep.subr.mxu0 0.0
        %1658 = vmatpush2.xpose.msra.mxu0 0.0
        %1659 = vmatprep.subr.mxu0 0.0
        %1660 = vmatpush2.xpose.msra.mxu0 0.0
        %1661 = vmatprep.subr.mxu0 0.0
        %1662 = vmatpush2.xpose.msra.mxu0 0.0
        %1663 = vmatprep.subr.mxu0 0.0
        %1664 = vmatpush2.xpose.msra.mxu0 0.0
        %1665 = vmatprep.subr.mxu0 0.0
        %1666 = vmatpush2.xpose.msra.mxu0 0.0
        %1667 = vmatprep.subr.mxu0 0.0
        %1668 = vmatpush2.xpose.msra.mxu0 0.0
        %1669 = vmatprep.mubr.f32.mxu0 0.0
        %1670 = vmatmul.mubr.f32.gmra.mxu0 %v1600
        %v1671 = vpop.f32.mrf.mxu0
        %v1672 = vadd.f32 0.0, %v1671
        %v1673 = vpop.f32.mrf.mxu0
        %1674 = vdwg.mxu0
        %v1675 = vmul.f32 %v1672, 0.35355338
        %v1676 = vsel %vm826, %v1675, -inf
        %1677 = vmax.xlane.f32.xlu0 %v1676
        %v1678 = vpop.xlane.xlu0 %1677
        %v1679 = vsub.f32 %v1675, %v1678
        %v1680 = vmul.f32 %v1679, 1.442695
        %v1681 = vpow.pop %v1680
        %v1682 = vsel %vm826, %v1681, 0.0
        %1683 = vadd.xlane.f32.xlu0 %v1682
        %v1684 = vpop.xlane.xlu0 %1683
        %v1685 = vrcp.pop %v1684
        %v1686 = vmul.f32 %v1681, %v1685
        %v1688 = vsel %vm826, %v1686, 0
        %1690 = vmatprep.subr.mxu0 0.0
        %1691 = vmatpush1.msra.mxu0 0.0
        %1692 = vmatprep.subr.mxu0 0.0
        %1693 = vmatpush1.msra.mxu0 0.0
        %1694 = vmatprep.subr.mxu0 0.0
        %1695 = vmatpush1.msra.mxu0 0.0
        %1696 = vmatprep.subr.mxu0 0.0
        %1697 = vmatpush1.msra.mxu0 0.0
        %1698 = vmatprep.subr.mxu0 0.0
        %1699 = vmatpush1.msra.mxu0 0.0
        %1700 = vmatprep.subr.mxu0 0.0
        %1701 = vmatpush1.msra.mxu0 0.0
        %1702 = vmatprep.subr.mxu0 0.0
        %1703 = vmatpush1.msra.mxu0 0.0
        %1704 = vmatprep.subr.mxu0 0.0
        %1705 = vmatpush1.msra.mxu0 0.0
        %1706 = vmatprep.subr.mxu0 0.0
        %1707 = vmatpush1.msra.mxu0 0.0
        %1708 = vmatprep.subr.mxu0 0.0
        %1709 = vmatpush1.msra.mxu0 0.0
        %1710 = vmatprep.subr.mxu0 0.0
        %1711 = vmatpush1.msra.mxu0 0.0
        %1712 = vmatprep.subr.mxu0 0.0
        %1713 = vmatpush1.msra.mxu0 0.0
        %1714 = vmatprep.subr.mxu0 0.0
        %1715 = vmatpush1.msra.mxu0 0.0
        %1716 = vmatprep.subr.mxu0 0.0
        %1717 = vmatpush1.msra.mxu0 0.0
        %1718 = vmatprep.subr.mxu0 0.0
        %1719 = vmatpush1.msra.mxu0 0.0
        %1720 = vmatprep.subr.mxu0 0.0
        %1721 = vmatpush1.msra.mxu0 %v1596
        %1722 = vmatprep.subr.mxu0 0.0
        %1723 = vmatpush2.msra.mxu0 0.0
        %1724 = vmatprep.subr.mxu0 0.0
        %1725 = vmatpush2.msra.mxu0 0.0
        %1726 = vmatprep.subr.mxu0 0.0
        %1727 = vmatpush2.msra.mxu0 0.0
        %1728 = vmatprep.subr.mxu0 0.0
        %1729 = vmatpush2.msra.mxu0 0.0
        %1730 = vmatprep.subr.mxu0 0.0
        %1731 = vmatpush2.msra.mxu0 0.0
        %1732 = vmatprep.subr.mxu0 0.0
        %1733 = vmatpush2.msra.mxu0 0.0
        %1734 = vmatprep.subr.mxu0 0.0
        %1735 = vmatpush2.msra.mxu0 0.0
        %1736 = vmatprep.subr.mxu0 0.0
        %1737 = vmatpush2.msra.mxu0 0.0
        %1738 = vmatprep.subr.mxu0 0.0
        %1739 = vmatpush2.msra.mxu0 0.0
        %1740 = vmatprep.subr.mxu0 0.0
        %1741 = vmatpush2.msra.mxu0 0.0
        %1742 = vmatprep.subr.mxu0 0.0
        %1743 = vmatpush2.msra.mxu0 0.0
        %1744 = vmatprep.subr.mxu0 0.0
        %1745 = vmatpush2.msra.mxu0 0.0
        %1746 = vmatprep.subr.mxu0 0.0
        %1747 = vmatpush2.msra.mxu0 0.0
        %1748 = vmatprep.subr.mxu0 0.0
        %1749 = vmatpush2.msra.mxu0 0.0
        %1750 = vmatprep.subr.mxu0 0.0
        %1751 = vmatpush2.msra.mxu0 0.0
        %1752 = vmatprep.subr.mxu0 0.0
        %1753 = vmatpush2.msra.mxu0 0.0
        %1754 = vmatprep.mubr.f32.mxu0 0.0
        %1755 = vmatmul.mubr.f32.gmra.mxu0 %v1688
        %v1756 = vpop.f32.mrf.mxu0
        %v1757 = vadd.f32 0.0, %v1756
        %v1758 = vpop.f32.mrf.mxu0
        %1759 = vdwg.mxu0
        %s1760 = scalar_lea.vmem %s3, 96
        %v1761 = vld [vmem:[%s1760] sm:$0xff]
        %v1762 = vld [vmem:[%s1760 + $0x8] sm:$0xff]
        %v1763 = vld [vmem:[%s1760 + $0x10] sm:$0xff]
        %v1764 = vld [vmem:[%s1760 + $0x18] sm:$0xff]
        %1765 = vmatprep.subr.mxu0 0.0
        %1766 = vmatpush1.msra.mxu0 0.0
        %1767 = vmatprep.subr.mxu0 0.0
        %1768 = vmatpush1.msra.mxu0 0.0
        %1769 = vmatprep.subr.mxu0 0.0
        %1770 = vmatpush1.msra.mxu0 0.0
        %1771 = vmatprep.subr.mxu0 0.0
        %1772 = vmatpush1.msra.mxu0 0.0
        %1773 = vmatprep.subr.mxu0 0.0
        %1774 = vmatpush1.msra.mxu0 0.0
        %1775 = vmatprep.subr.mxu0 0.0
        %1776 = vmatpush1.msra.mxu0 0.0
        %1777 = vmatprep.subr.mxu0 0.0
        %1778 = vmatpush1.msra.mxu0 0.0
        %1779 = vmatprep.subr.mxu0 0.0
        %1780 = vmatpush1.msra.mxu0 0.0
        %1781 = vmatprep.subr.mxu0 0.0
        %1782 = vmatpush1.msra.mxu0 0.0
        %1783 = vmatprep.subr.mxu0 0.0
        %1784 = vmatpush1.msra.mxu0 0.0
        %1785 = vmatprep.subr.mxu0 0.0
        %1786 = vmatpush1.msra.mxu0 0.0
        %1787 = vmatprep.subr.mxu0 0.0
        %1788 = vmatpush1.msra.mxu0 0.0
        %1789 = vmatprep.subr.mxu0 0.0
        %1790 = vmatpush1.msra.mxu0 %v1764
        %1791 = vmatprep.subr.mxu0 0.0
        %1792 = vmatpush1.msra.mxu0 %v1763
        %1793 = vmatprep.subr.mxu0 0.0
        %1794 = vmatpush1.msra.mxu0 %v1762
        %1795 = vmatprep.subr.mxu0 0.0
        %1796 = vmatpush1.msra.mxu0 %v1761
        %1797 = vmatprep.subr.mxu0 0.0
        %1798 = vmatpush2.msra.mxu0 0.0
        %1799 = vmatprep.subr.mxu0 0.0
        %1800 = vmatpush2.msra.mxu0 0.0
        %1801 = vmatprep.subr.mxu0 0.0
        %1802 = vmatpush2.msra.mxu0 0.0
        %1803 = vmatprep.subr.mxu0 0.0
        %1804 = vmatpush2.msra.mxu0 0.0
        %1805 = vmatprep.subr.mxu0 0.0
        %1806 = vmatpush2.msra.mxu0 0.0
        %1807 = vmatprep.subr.mxu0 0.0
        %1808 = vmatpush2.msra.mxu0 0.0
        %1809 = vmatprep.subr.mxu0 0.0
        %1810 = vmatpush2.msra.mxu0 0.0
        %1811 = vmatprep.subr.mxu0 0.0
        %1812 = vmatpush2.msra.mxu0 0.0
        %1813 = vmatprep.subr.mxu0 0.0
        %1814 = vmatpush2.msra.mxu0 0.0
        %1815 = vmatprep.subr.mxu0 0.0
        %1816 = vmatpush2.msra.mxu0 0.0
        %1817 = vmatprep.subr.mxu0 0.0
        %1818 = vmatpush2.msra.mxu0 0.0
        %1819 = vmatprep.subr.mxu0 0.0
        %1820 = vmatpush2.msra.mxu0 0.0
        %1821 = vmatprep.subr.mxu0 0.0
        %1822 = vmatpush2.msra.mxu0 0.0
        %1823 = vmatprep.subr.mxu0 0.0
        %1824 = vmatpush2.msra.mxu0 0.0
        %1825 = vmatprep.subr.mxu0 0.0
        %1826 = vmatpush2.msra.mxu0 0.0
        %1827 = vmatprep.subr.mxu0 0.0
        %1828 = vmatpush2.msra.mxu0 0.0
        %1829 = vmatprep.mubr.f32.mxu0 0.0
        %1830 = vmatmul.mubr.f32.gmra.mxu0 %v606
        %v1831 = vpop.f32.mrf.mxu0
        %v1832 = vadd.f32 0.0, %v1831
        %v1833 = vpop.f32.mrf.mxu0
        %1834 = vdwg.mxu0
        %s1835 = scalar_lea.vmem %s4, 96
        %v1836 = vld [vmem:[%s1835] sm:$0xff]
        %v1837 = vld [vmem:[%s1835 + $0x8] sm:$0xff]
        %v1838 = vld [vmem:[%s1835 + $0x10] sm:$0xff]
        %v1839 = vld [vmem:[%s1835 + $0x18] sm:$0xff]
        %1840 = vmatprep.subr.mxu0 0.0
        %1841 = vmatpush1.msra.mxu0 0.0
        %1842 = vmatprep.subr.mxu0 0.0
        %1843 = vmatpush1.msra.mxu0 0.0
        %1844 = vmatprep.subr.mxu0 0.0
        %1845 = vmatpush1.msra.mxu0 0.0
        %1846 = vmatprep.subr.mxu0 0.0
        %1847 = vmatpush1.msra.mxu0 0.0
        %1848 = vmatprep.subr.mxu0 0.0
        %1849 = vmatpush1.msra.mxu0 0.0
        %1850 = vmatprep.subr.mxu0 0.0
        %1851 = vmatpush1.msra.mxu0 0.0
        %1852 = vmatprep.subr.mxu0 0.0
        %1853 = vmatpush1.msra.mxu0 0.0
        %1854 = vmatprep.subr.mxu0 0.0
        %1855 = vmatpush1.msra.mxu0 0.0
        %1856 = vmatprep.subr.mxu0 0.0
        %1857 = vmatpush1.msra.mxu0 0.0
        %1858 = vmatprep.subr.mxu0 0.0
        %1859 = vmatpush1.msra.mxu0 0.0
        %1860 = vmatprep.subr.mxu0 0.0
        %1861 = vmatpush1.msra.mxu0 0.0
        %1862 = vmatprep.subr.mxu0 0.0
        %1863 = vmatpush1.msra.mxu0 0.0
        %1864 = vmatprep.subr.mxu0 0.0
        %1865 = vmatpush1.msra.mxu0 %v1839
        %1866 = vmatprep.subr.mxu0 0.0
        %1867 = vmatpush1.msra.mxu0 %v1838
        %1868 = vmatprep.subr.mxu0 0.0
        %1869 = vmatpush1.msra.mxu0 %v1837
        %1870 = vmatprep.subr.mxu0 0.0
        %1871 = vmatpush1.msra.mxu0 %v1836
        %1872 = vmatprep.subr.mxu0 0.0
        %1873 = vmatpush2.msra.mxu0 0.0
        %1874 = vmatprep.subr.mxu0 0.0
        %1875 = vmatpush2.msra.mxu0 0.0
        %1876 = vmatprep.subr.mxu0 0.0
        %1877 = vmatpush2.msra.mxu0 0.0
        %1878 = vmatprep.subr.mxu0 0.0
        %1879 = vmatpush2.msra.mxu0 0.0
        %1880 = vmatprep.subr.mxu0 0.0
        %1881 = vmatpush2.msra.mxu0 0.0
        %1882 = vmatprep.subr.mxu0 0.0
        %1883 = vmatpush2.msra.mxu0 0.0
        %1884 = vmatprep.subr.mxu0 0.0
        %1885 = vmatpush2.msra.mxu0 0.0
        %1886 = vmatprep.subr.mxu0 0.0
        %1887 = vmatpush2.msra.mxu0 0.0
        %1888 = vmatprep.subr.mxu0 0.0
        %1889 = vmatpush2.msra.mxu0 0.0
        %1890 = vmatprep.subr.mxu0 0.0
        %1891 = vmatpush2.msra.mxu0 0.0
        %1892 = vmatprep.subr.mxu0 0.0
        %1893 = vmatpush2.msra.mxu0 0.0
        %1894 = vmatprep.subr.mxu0 0.0
        %1895 = vmatpush2.msra.mxu0 0.0
        %1896 = vmatprep.subr.mxu0 0.0
        %1897 = vmatpush2.msra.mxu0 0.0
        %1898 = vmatprep.subr.mxu0 0.0
        %1899 = vmatpush2.msra.mxu0 0.0
        %1900 = vmatprep.subr.mxu0 0.0
        %1901 = vmatpush2.msra.mxu0 0.0
        %1902 = vmatprep.subr.mxu0 0.0
        %1903 = vmatpush2.msra.mxu0 0.0
        %1904 = vmatprep.mubr.f32.mxu0 0.0
        %1905 = vmatmul.mubr.f32.gmra.mxu0 %v506
        %v1906 = vpop.f32.mrf.mxu0
        %v1907 = vadd.f32 0.0, %v1906
        %v1908 = vpop.f32.mrf.mxu0
        %1909 = vdwg.mxu0
        %s1910 = scalar_lea.vmem %s5, 96
        %v1911 = vld [vmem:[%s1910] sm:$0xff]
        %v1912 = vld [vmem:[%s1910 + $0x8] sm:$0xff]
        %v1913 = vld [vmem:[%s1910 + $0x10] sm:$0xff]
        %v1914 = vld [vmem:[%s1910 + $0x18] sm:$0xff]
        %1915 = vmatprep.subr.mxu0 0.0
        %1916 = vmatpush1.msra.mxu0 0.0
        %1917 = vmatprep.subr.mxu0 0.0
        %1918 = vmatpush1.msra.mxu0 0.0
        %1919 = vmatprep.subr.mxu0 0.0
        %1920 = vmatpush1.msra.mxu0 0.0
        %1921 = vmatprep.subr.mxu0 0.0
        %1922 = vmatpush1.msra.mxu0 0.0
        %1923 = vmatprep.subr.mxu0 0.0
        %1924 = vmatpush1.msra.mxu0 0.0
        %1925 = vmatprep.subr.mxu0 0.0
        %1926 = vmatpush1.msra.mxu0 0.0
        %1927 = vmatprep.subr.mxu0 0.0
        %1928 = vmatpush1.msra.mxu0 0.0
        %1929 = vmatprep.subr.mxu0 0.0
        %1930 = vmatpush1.msra.mxu0 0.0
        %1931 = vmatprep.subr.mxu0 0.0
        %1932 = vmatpush1.msra.mxu0 0.0
        %1933 = vmatprep.subr.mxu0 0.0
        %1934 = vmatpush1.msra.mxu0 0.0
        %1935 = vmatprep.subr.mxu0 0.0
        %1936 = vmatpush1.msra.mxu0 0.0
        %1937 = vmatprep.subr.mxu0 0.0
        %1938 = vmatpush1.msra.mxu0 0.0
        %1939 = vmatprep.subr.mxu0 0.0
        %1940 = vmatpush1.msra.mxu0 %v1914
        %1941 = vmatprep.subr.mxu0 0.0
        %1942 = vmatpush1.msra.mxu0 %v1913
        %1943 = vmatprep.subr.mxu0 0.0
        %1944 = vmatpush1.msra.mxu0 %v1912
        %1945 = vmatprep.subr.mxu0 0.0
        %1946 = vmatpush1.msra.mxu0 %v1911
        %1947 = vmatprep.subr.mxu0 0.0
        %1948 = vmatpush2.msra.mxu0 0.0
        %1949 = vmatprep.subr.mxu0 0.0
        %1950 = vmatpush2.msra.mxu0 0.0
        %1951 = vmatprep.subr.mxu0 0.0
        %1952 = vmatpush2.msra.mxu0 0.0
        %1953 = vmatprep.subr.mxu0 0.0
        %1954 = vmatpush2.msra.mxu0 0.0
        %1955 = vmatprep.subr.mxu0 0.0
        %1956 = vmatpush2.msra.mxu0 0.0
        %1957 = vmatprep.subr.mxu0 0.0
        %1958 = vmatpush2.msra.mxu0 0.0
        %1959 = vmatprep.subr.mxu0 0.0
        %1960 = vmatpush2.msra.mxu0 0.0
        %1961 = vmatprep.subr.mxu0 0.0
        %1962 = vmatpush2.msra.mxu0 0.0
        %1963 = vmatprep.subr.mxu0 0.0
        %1964 = vmatpush2.msra.mxu0 0.0
        %1965 = vmatprep.subr.mxu0 0.0
        %1966 = vmatpush2.msra.mxu0 0.0
        %1967 = vmatprep.subr.mxu0 0.0
        %1968 = vmatpush2.msra.mxu0 0.0
        %1969 = vmatprep.subr.mxu0 0.0
        %1970 = vmatpush2.msra.mxu0 0.0
        %1971 = vmatprep.subr.mxu0 0.0
        %1972 = vmatpush2.msra.mxu0 0.0
        %1973 = vmatprep.subr.mxu0 0.0
        %1974 = vmatpush2.msra.mxu0 0.0
        %1975 = vmatprep.subr.mxu0 0.0
        %1976 = vmatpush2.msra.mxu0 0.0
        %1977 = vmatprep.subr.mxu0 0.0
        %1978 = vmatpush2.msra.mxu0 0.0
        %1979 = vmatprep.mubr.f32.mxu0 0.0
        %1980 = vmatmul.mubr.f32.gmra.mxu0 %v506
        %v1981 = vpop.f32.mrf.mxu0
        %v1982 = vadd.f32 0.0, %v1981
        %v1983 = vpop.f32.mrf.mxu0
        %1984 = vdwg.mxu0
        %v1986 = vsel %vm826, %v1832, 0
        %v1989 = vsel %vm826, %v1907, 0
        %1991 = vmatprep.subr.mxu0 0.0
        %1992 = vmatpush1.xpose.msra.mxu0 0.0
        %1993 = vmatprep.subr.mxu0 0.0
        %1994 = vmatpush1.xpose.msra.mxu0 0.0
        %1995 = vmatprep.subr.mxu0 0.0
        %1996 = vmatpush1.xpose.msra.mxu0 0.0
        %1997 = vmatprep.subr.mxu0 0.0
        %1998 = vmatpush1.xpose.msra.mxu0 0.0
        %1999 = vmatprep.subr.mxu0 0.0
        %2000 = vmatpush1.xpose.msra.mxu0 0.0
        %2001 = vmatprep.subr.mxu0 0.0
        %2002 = vmatpush1.xpose.msra.mxu0 0.0
        %2003 = vmatprep.subr.mxu0 0.0
        %2004 = vmatpush1.xpose.msra.mxu0 0.0
        %2005 = vmatprep.subr.mxu0 0.0
        %2006 = vmatpush1.xpose.msra.mxu0 0.0
        %2007 = vmatprep.subr.mxu0 0.0
        %2008 = vmatpush1.xpose.msra.mxu0 0.0
        %2009 = vmatprep.subr.mxu0 0.0
        %2010 = vmatpush1.xpose.msra.mxu0 0.0
        %2011 = vmatprep.subr.mxu0 0.0
        %2012 = vmatpush1.xpose.msra.mxu0 0.0
        %2013 = vmatprep.subr.mxu0 0.0
        %2014 = vmatpush1.xpose.msra.mxu0 0.0
        %2015 = vmatprep.subr.mxu0 0.0
        %2016 = vmatpush1.xpose.msra.mxu0 0.0
        %2017 = vmatprep.subr.mxu0 0.0
        %2018 = vmatpush1.xpose.msra.mxu0 0.0
        %2019 = vmatprep.subr.mxu0 0.0
        %2020 = vmatpush1.xpose.msra.mxu0 0.0
        %2021 = vmatprep.subr.mxu0 0.0
        %2022 = vmatpush1.xpose.msra.mxu0 %v1989
        %2023 = vmatprep.subr.mxu0 0.0
        %2024 = vmatpush2.xpose.msra.mxu0 0.0
        %2025 = vmatprep.subr.mxu0 0.0
        %2026 = vmatpush2.xpose.msra.mxu0 0.0
        %2027 = vmatprep.subr.mxu0 0.0
        %2028 = vmatpush2.xpose.msra.mxu0 0.0
        %2029 = vmatprep.subr.mxu0 0.0
        %2030 = vmatpush2.xpose.msra.mxu0 0.0
        %2031 = vmatprep.subr.mxu0 0.0
        %2032 = vmatpush2.xpose.msra.mxu0 0.0
        %2033 = vmatprep.subr.mxu0 0.0
        %2034 = vmatpush2.xpose.msra.mxu0 0.0
        %2035 = vmatprep.subr.mxu0 0.0
        %2036 = vmatpush2.xpose.msra.mxu0 0.0
        %2037 = vmatprep.subr.mxu0 0.0
        %2038 = vmatpush2.xpose.msra.mxu0 0.0
        %2039 = vmatprep.subr.mxu0 0.0
        %2040 = vmatpush2.xpose.msra.mxu0 0.0
        %2041 = vmatprep.subr.mxu0 0.0
        %2042 = vmatpush2.xpose.msra.mxu0 0.0
        %2043 = vmatprep.subr.mxu0 0.0
        %2044 = vmatpush2.xpose.msra.mxu0 0.0
        %2045 = vmatprep.subr.mxu0 0.0
        %2046 = vmatpush2.xpose.msra.mxu0 0.0
        %2047 = vmatprep.subr.mxu0 0.0
        %2048 = vmatpush2.xpose.msra.mxu0 0.0
        %2049 = vmatprep.subr.mxu0 0.0
        %2050 = vmatpush2.xpose.msra.mxu0 0.0
        %2051 = vmatprep.subr.mxu0 0.0
        %2052 = vmatpush2.xpose.msra.mxu0 0.0
        %2053 = vmatprep.subr.mxu0 0.0
        %2054 = vmatpush2.xpose.msra.mxu0 0.0
        %2055 = vmatprep.mubr.f32.mxu0 0.0
        %2056 = vmatmul.mubr.f32.gmra.mxu0 %v1986
        %v2057 = vpop.f32.mrf.mxu0
        %v2058 = vadd.f32 0.0, %v2057
        %v2059 = vpop.f32.mrf.mxu0
        %2060 = vdwg.mxu0
        %v2061 = vmul.f32 %v2058, 0.35355338
        %v2062 = vsel %vm826, %v2061, -inf
        %2063 = vmax.xlane.f32.xlu0 %v2062
        %v2064 = vpop.xlane.xlu0 %2063
        %v2065 = vsub.f32 %v2061, %v2064
        %v2066 = vmul.f32 %v2065, 1.442695
        %v2067 = vpow.pop %v2066
        %v2068 = vsel %vm826, %v2067, 0.0
        %2069 = vadd.xlane.f32.xlu0 %v2068
        %v2070 = vpop.xlane.xlu0 %2069
        %v2071 = vrcp.pop %v2070
        %v2072 = vmul.f32 %v2067, %v2071
        %v2074 = vsel %vm826, %v2072, 0
        %2076 = vmatprep.subr.mxu0 0.0
        %2077 = vmatpush1.msra.mxu0 0.0
        %2078 = vmatprep.subr.mxu0 0.0
        %2079 = vmatpush1.msra.mxu0 0.0
        %2080 = vmatprep.subr.mxu0 0.0
        %2081 = vmatpush1.msra.mxu0 0.0
        %2082 = vmatprep.subr.mxu0 0.0
        %2083 = vmatpush1.msra.mxu0 0.0
        %2084 = vmatprep.subr.mxu0 0.0
        %2085 = vmatpush1.msra.mxu0 0.0
        %2086 = vmatprep.subr.mxu0 0.0
        %2087 = vmatpush1.msra.mxu0 0.0
        %2088 = vmatprep.subr.mxu0 0.0
        %2089 = vmatpush1.msra.mxu0 0.0
        %2090 = vmatprep.subr.mxu0 0.0
        %2091 = vmatpush1.msra.mxu0 0.0
        %2092 = vmatprep.subr.mxu0 0.0
        %2093 = vmatpush1.msra.mxu0 0.0
        %2094 = vmatprep.subr.mxu0 0.0
        %2095 = vmatpush1.msra.mxu0 0.0
        %2096 = vmatprep.subr.mxu0 0.0
        %2097 = vmatpush1.msra.mxu0 0.0
        %2098 = vmatprep.subr.mxu0 0.0
        %2099 = vmatpush1.msra.mxu0 0.0
        %2100 = vmatprep.subr.mxu0 0.0
        %2101 = vmatpush1.msra.mxu0 0.0
        %2102 = vmatprep.subr.mxu0 0.0
        %2103 = vmatpush1.msra.mxu0 0.0
        %2104 = vmatprep.subr.mxu0 0.0
        %2105 = vmatpush1.msra.mxu0 0.0
        %2106 = vmatprep.subr.mxu0 0.0
        %2107 = vmatpush1.msra.mxu0 %v1982
        %2108 = vmatprep.subr.mxu0 0.0
        %2109 = vmatpush2.msra.mxu0 0.0
        %2110 = vmatprep.subr.mxu0 0.0
        %2111 = vmatpush2.msra.mxu0 0.0
        %2112 = vmatprep.subr.mxu0 0.0
        %2113 = vmatpush2.msra.mxu0 0.0
        %2114 = vmatprep.subr.mxu0 0.0
        %2115 = vmatpush2.msra.mxu0 0.0
        %2116 = vmatprep.subr.mxu0 0.0
        %2117 = vmatpush2.msra.mxu0 0.0
        %2118 = vmatprep.subr.mxu0 0.0
        %2119 = vmatpush2.msra.mxu0 0.0
        %2120 = vmatprep.subr.mxu0 0.0
        %2121 = vmatpush2.msra.mxu0 0.0
        %2122 = vmatprep.subr.mxu0 0.0
        %2123 = vmatpush2.msra.mxu0 0.0
        %2124 = vmatprep.subr.mxu0 0.0
        %2125 = vmatpush2.msra.mxu0 0.0
        %2126 = vmatprep.subr.mxu0 0.0
        %2127 = vmatpush2.msra.mxu0 0.0
        %2128 = vmatprep.subr.mxu0 0.0
        %2129 = vmatpush2.msra.mxu0 0.0
        %2130 = vmatprep.subr.mxu0 0.0
        %2131 = vmatpush2.msra.mxu0 0.0
        %2132 = vmatprep.subr.mxu0 0.0
        %2133 = vmatpush2.msra.mxu0 0.0
        %2134 = vmatprep.subr.mxu0 0.0
        %2135 = vmatpush2.msra.mxu0 0.0
        %2136 = vmatprep.subr.mxu0 0.0
        %2137 = vmatpush2.msra.mxu0 0.0
        %2138 = vmatprep.subr.mxu0 0.0
        %2139 = vmatpush2.msra.mxu0 0.0
        %2140 = vmatprep.mubr.f32.mxu0 0.0
        %2141 = vmatmul.mubr.f32.gmra.mxu0 %v2074
        %v2142 = vpop.f32.mrf.mxu0
        %v2143 = vadd.f32 0.0, %v2142
        %v2144 = vpop.f32.mrf.mxu0
        %2145 = vdwg.mxu0
        %2147 = vrot.lane.b32.xlu0 %v1371, 8
        %v2148 = vpop.permute.xlu0 %2147
        %2151 = vrot.lane.b32.xlu0 %v1757, 16
        %v2152 = vpop.permute.xlu0 %2151
        %2155 = vrot.lane.b32.xlu0 %v2143, 24
        %v2156 = vpop.permute.xlu0 %2155
        %v2158 = vsel %vm826, %v985, %v2148
        %vm2159 = vcmask 130048
        %v2160 = vsel %vm2159, %v2158, %v2152
        %vm2161 = vcmask 195584
        %v2162 = vsel %vm2161, %v2160, %v2156
        %v2163 = vld [vmem:[%s6] sm:$0xff]
        %v2164 = vld [vmem:[%s6 + $0x8] sm:$0xff]
        %v2165 = vld [vmem:[%s6 + $0x10] sm:$0xff]
        %v2166 = vld [vmem:[%s6 + $0x18] sm:$0xff]
        %v2168 = vsel %vm475, %v2162, 0
        %2170 = vmatprep.subr.mxu0 0.0
        %2171 = vmatpush1.msra.mxu0 0.0
        %2172 = vmatprep.subr.mxu0 0.0
        %2173 = vmatpush1.msra.mxu0 0.0
        %2174 = vmatprep.subr.mxu0 0.0
        %2175 = vmatpush1.msra.mxu0 0.0
        %2176 = vmatprep.subr.mxu0 0.0
        %2177 = vmatpush1.msra.mxu0 0.0
        %2178 = vmatprep.subr.mxu0 0.0
        %2179 = vmatpush1.msra.mxu0 0.0
        %2180 = vmatprep.subr.mxu0 0.0
        %2181 = vmatpush1.msra.mxu0 0.0
        %2182 = vmatprep.subr.mxu0 0.0
        %2183 = vmatpush1.msra.mxu0 0.0
        %2184 = vmatprep.subr.mxu0 0.0
        %2185 = vmatpush1.msra.mxu0 0.0
        %2186 = vmatprep.subr.mxu0 0.0
        %2187 = vmatpush1.msra.mxu0 0.0
        %2188 = vmatprep.subr.mxu0 0.0
        %2189 = vmatpush1.msra.mxu0 0.0
        %2190 = vmatprep.subr.mxu0 0.0
        %2191 = vmatpush1.msra.mxu0 0.0
        %2192 = vmatprep.subr.mxu0 0.0
        %2193 = vmatpush1.msra.mxu0 0.0
        %2194 = vmatprep.subr.mxu0 0.0
        %2195 = vmatpush1.msra.mxu0 %v2166
        %2196 = vmatprep.subr.mxu0 0.0
        %2197 = vmatpush1.msra.mxu0 %v2165
        %2198 = vmatprep.subr.mxu0 0.0
        %2199 = vmatpush1.msra.mxu0 %v2164
        %2200 = vmatprep.subr.mxu0 0.0
        %2201 = vmatpush1.msra.mxu0 %v2163
        %2202 = vmatprep.subr.mxu0 0.0
        %2203 = vmatpush2.msra.mxu0 0.0
        %2204 = vmatprep.subr.mxu0 0.0
        %2205 = vmatpush2.msra.mxu0 0.0
        %2206 = vmatprep.subr.mxu0 0.0
        %2207 = vmatpush2.msra.mxu0 0.0
        %2208 = vmatprep.subr.mxu0 0.0
        %2209 = vmatpush2.msra.mxu0 0.0
        %2210 = vmatprep.subr.mxu0 0.0
        %2211 = vmatpush2.msra.mxu0 0.0
        %2212 = vmatprep.subr.mxu0 0.0
        %2213 = vmatpush2.msra.mxu0 0.0
        %2214 = vmatprep.subr.mxu0 0.0
        %2215 = vmatpush2.msra.mxu0 0.0
        %2216 = vmatprep.subr.mxu0 0.0
        %2217 = vmatpush2.msra.mxu0 0.0
        %2218 = vmatprep.subr.mxu0 0.0
        %2219 = vmatpush2.msra.mxu0 0.0
        %2220 = vmatprep.subr.mxu0 0.0
        %2221 = vmatpush2.msra.mxu0 0.0
        %2222 = vmatprep.subr.mxu0 0.0
        %2223 = vmatpush2.msra.mxu0 0.0
        %2224 = vmatprep.subr.mxu0 0.0
        %2225 = vmatpush2.msra.mxu0 0.0
        %2226 = vmatprep.subr.mxu0 0.0
        %2227 = vmatpush2.msra.mxu0 0.0
        %2228 = vmatprep.subr.mxu0 0.0
        %2229 = vmatpush2.msra.mxu0 0.0
        %2230 = vmatprep.subr.mxu0 0.0
        %2231 = vmatpush2.msra.mxu0 0.0
        %2232 = vmatprep.subr.mxu0 0.0
        %2233 = vmatpush2.msra.mxu0 0.0
        %2234 = vmatprep.mubr.f32.mxu0 0.0
        %2235 = vmatmul.mubr.f32.gmra.mxu0 %v2168
        %v2236 = vpop.f32.mrf.mxu0
        %v2237 = vadd.f32 %v600, %v2236
        %v2238 = vpop.f32.mrf.mxu0
        %2239 = vdwg.mxu0
        %v2240 = vsel %vm475, %v2237, 0.0
        %2241 = vadd.xlane.f32.xlu0 %v2240
        %v2242 = vpop.xlane.xlu0 %2241
        %v2243 = vmul.f32 %v2242, %v479
        %v2244 = vsub.f32 %v2237, %v2243
        %v2245 = vmul.f32 %v2244, %v2244
        %v2246 = vsel %vm475, %v2245, 0.0
        %2247 = vadd.xlane.f32.xlu0 %v2246
        %v2248 = vpop.xlane.xlu0 %2247
        %v2249 = vmul.f32 %v2248, %v479
        %v2250 = vadd.f32 %v2249, 1e-05
        %v2251 = vrsqrt.pop %v2250
        %v2252 = vmul.f32 %v2244, %v2251
        %v2253 = vlaneseq
        %v2254 = vshrl.u32 %v2253, 7
        %v2255 = vsub.s32 2, %v2254
        %v2256 = vrot.slane %v500, %v2255
        %v2257 = vmul.f32 %v2252, %v2256
        %v2258 = vlaneseq
        %v2259 = vshrl.u32 %v2258, 7
        %v2260 = vsub.s32 3, %v2259
        %v2261 = vrot.slane %v500, %v2260
        %v2262 = vadd.f32 %v2257, %v2261
        %v2263 = vld [vmem:[%s7] sm:$0xff]
        %v2264 = vld [vmem:[%s7 + $0x8] sm:$0xff]
        %v2265 = vld [vmem:[%s7 + $0x10] sm:$0xff]
        %v2266 = vld [vmem:[%s7 + $0x18] sm:$0xff]
        %v2268 = vsel %vm475, %v2262, 0
        %2270 = vmatprep.subr.mxu0 0.0
        %2271 = vmatpush1.msra.mxu0 0.0
        %2272 = vmatprep.subr.mxu0 0.0
        %2273 = vmatpush1.msra.mxu0 0.0
        %2274 = vmatprep.subr.mxu0 0.0
        %2275 = vmatpush1.msra.mxu0 0.0
        %2276 = vmatprep.subr.mxu0 0.0
        %2277 = vmatpush1.msra.mxu0 0.0
        %2278 = vmatprep.subr.mxu0 0.0
        %2279 = vmatpush1.msra.mxu0 0.0
        %2280 = vmatprep.subr.mxu0 0.0
        %2281 = vmatpush1.msra.mxu0 0.0
        %2282 = vmatprep.subr.mxu0 0.0
        %2283 = vmatpush1.msra.mxu0 0.0
        %2284 = vmatprep.subr.mxu0 0.0
        %2285 = vmatpush1.msra.mxu0 0.0
        %2286 = vmatprep.subr.mxu0 0.0
        %2287 = vmatpush1.msra.mxu0 0.0
        %2288 = vmatprep.subr.mxu0 0.0
        %2289 = vmatpush1.msra.mxu0 0.0
        %2290 = vmatprep.subr.mxu0 0.0
        %2291 = vmatpush1.msra.mxu0 0.0
        %2292 = vmatprep.subr.mxu0 0.0
        %2293 = vmatpush1.msra.mxu0 0.0
        %2294 = vmatprep.subr.mxu0 0.0
        %2295 = vmatpush1.msra.mxu0 %v2266
        %2296 = vmatprep.subr.mxu0 0.0
        %2297 = vmatpush1.msra.mxu0 %v2265
        %2298 = vmatprep.subr.mxu0 0.0
        %2299 = vmatpush1.msra.mxu0 %v2264
        %2300 = vmatprep.subr.mxu0 0.0
        %2301 = vmatpush1.msra.mxu0 %v2263
        %2302 = vmatprep.subr.mxu0 0.0
        %2303 = vmatpush2.msra.mxu0 0.0
        %2304 = vmatprep.subr.mxu0 0.0
        %2305 = vmatpush2.msra.mxu0 0.0
        %2306 = vmatprep.subr.mxu0 0.0
        %2307 = vmatpush2.msra.mxu0 0.0
        %2308 = vmatprep.subr.mxu0 0.0
        %2309 = vmatpush2.msra.mxu0 0.0
        %2310 = vmatprep.subr.mxu0 0.0
        %2311 = vmatpush2.msra.mxu0 0.0
        %2312 = vmatprep.subr.mxu0 0.0
        %2313 = vmatpush2.msra.mxu0 0.0
        %2314 = vmatprep.subr.mxu0 0.0
        %2315 = vmatpush2.msra.mxu0 0.0
        %2316 = vmatprep.subr.mxu0 0.0
        %2317 = vmatpush2.msra.mxu0 0.0
        %2318 = vmatprep.subr.mxu0 0.0
        %2319 = vmatpush2.msra.mxu0 0.0
        %2320 = vmatprep.subr.mxu0 0.0
        %2321 = vmatpush2.msra.mxu0 0.0
        %2322 = vmatprep.subr.mxu0 0.0
        %2323 = vmatpush2.msra.mxu0 0.0
        %2324 = vmatprep.subr.mxu0 0.0
        %2325 = vmatpush2.msra.mxu0 0.0
        %2326 = vmatprep.subr.mxu0 0.0
        %2327 = vmatpush2.msra.mxu0 0.0
        %2328 = vmatprep.subr.mxu0 0.0
        %2329 = vmatpush2.msra.mxu0 0.0
        %2330 = vmatprep.subr.mxu0 0.0
        %2331 = vmatpush2.msra.mxu0 0.0
        %2332 = vmatprep.subr.mxu0 0.0
        %2333 = vmatpush2.msra.mxu0 0.0
        %2334 = vmatprep.mubr.f32.mxu0 0.0
        %2335 = vmatmul.mubr.f32.gmra.mxu0 %v2268
        %v2336 = vpop.f32.mrf.mxu0
        %v2337 = vadd.f32 %v2262, %v2336
        %v2338 = vpop.f32.mrf.mxu0
        %2339 = vdwg.mxu0
        %v2340 = vsel %vm475, %v2337, 0.0
        %2341 = vadd.xlane.f32.xlu0 %v2340
        %v2342 = vpop.xlane.xlu0 %2341
        %v2343 = vmul.f32 %v2342, %v479
        %v2344 = vsub.f32 %v2337, %v2343
        %v2345 = vmul.f32 %v2344, %v2344
        %v2346 = vsel %vm475, %v2345, 0.0
        %2347 = vadd.xlane.f32.xlu0 %v2346
        %v2348 = vpop.xlane.xlu0 %2347
        %v2349 = vmul.f32 %v2348, %v479
        %v2350 = vadd.f32 %v2349, 1e-05
        %v2351 = vrsqrt.pop %v2350
        %v2352 = vmul.f32 %v2344, %v2351
        %v2353 = vlaneseq
        %v2354 = vshrl.u32 %v2353, 7
        %v2355 = vsub.s32 4, %v2354
        %v2356 = vrot.slane %v500, %v2355
        %v2357 = vmul.f32 %v2352, %v2356
        %v2358 = vlaneseq
        %v2359 = vshrl.u32 %v2358, 7
        %v2360 = vsub.s32 5, %v2359
        %v2361 = vrot.slane %v500, %v2360
        %v2362 = vadd.f32 %v2357, %v2361
        %v2363 = vld [vmem:[%s9] sm:$0xff]
        %v2364 = vld [vmem:[%s9 + $0x8] sm:$0xff]
        %v2365 = vld [vmem:[%s9 + $0x10] sm:$0xff]
        %v2366 = vld [vmem:[%s9 + $0x18] sm:$0xff]
        %v2367 = vld [vmem:[%s10] sm:$0x1]
        %v2369 = vlaneseq
        %v2370 = vshrl.u32 %v2369, 7
        %v2371 = vsub.s32 0, %v2370
        %v2372 = vrot.slane %v2367, %v2371
        %v2375 = vsel %vm475, %v2362, 0
        %2377 = vmatprep.subr.mxu0 0.0
        %2378 = vmatpush1.msra.mxu0 0.0
        %2379 = vmatprep.subr.mxu0 0.0
        %2380 = vmatpush1.msra.mxu0 0.0
        %2381 = vmatprep.subr.mxu0 0.0
        %2382 = vmatpush1.msra.mxu0 0.0
        %2383 = vmatprep.subr.mxu0 0.0
        %2384 = vmatpush1.msra.mxu0 0.0
        %2385 = vmatprep.subr.mxu0 0.0
        %2386 = vmatpush1.msra.mxu0 0.0
        %2387 = vmatprep.subr.mxu0 0.0
        %2388 = vmatpush1.msra.mxu0 0.0
        %2389 = vmatprep.subr.mxu0 0.0
        %2390 = vmatpush1.msra.mxu0 0.0
        %2391 = vmatprep.subr.mxu0 0.0
        %2392 = vmatpush1.msra.mxu0 0.0
        %2393 = vmatprep.subr.mxu0 0.0
        %2394 = vmatpush1.msra.mxu0 0.0
        %2395 = vmatprep.subr.mxu0 0.0
        %2396 = vmatpush1.msra.mxu0 0.0
        %2397 = vmatprep.subr.mxu0 0.0
        %2398 = vmatpush1.msra.mxu0 0.0
        %2399 = vmatprep.subr.mxu0 0.0
        %2400 = vmatpush1.msra.mxu0 0.0
        %2401 = vmatprep.subr.mxu0 0.0
        %2402 = vmatpush1.msra.mxu0 %v2366
        %2403 = vmatprep.subr.mxu0 0.0
        %2404 = vmatpush1.msra.mxu0 %v2365
        %2405 = vmatprep.subr.mxu0 0.0
        %2406 = vmatpush1.msra.mxu0 %v2364
        %2407 = vmatprep.subr.mxu0 0.0
        %2408 = vmatpush1.msra.mxu0 %v2363
        %2409 = vmatprep.subr.mxu0 0.0
        %2410 = vmatpush2.msra.mxu0 0.0
        %2411 = vmatprep.subr.mxu0 0.0
        %2412 = vmatpush2.msra.mxu0 0.0
        %2413 = vmatprep.subr.mxu0 0.0
        %2414 = vmatpush2.msra.mxu0 0.0
        %2415 = vmatprep.subr.mxu0 0.0
        %2416 = vmatpush2.msra.mxu0 0.0
        %2417 = vmatprep.subr.mxu0 0.0
        %2418 = vmatpush2.msra.mxu0 0.0
        %2419 = vmatprep.subr.mxu0 0.0
        %2420 = vmatpush2.msra.mxu0 0.0
        %2421 = vmatprep.subr.mxu0 0.0
        %2422 = vmatpush2.msra.mxu0 0.0
        %2423 = vmatprep.subr.mxu0 0.0
        %2424 = vmatpush2.msra.mxu0 0.0
        %2425 = vmatprep.subr.mxu0 0.0
        %2426 = vmatpush2.msra.mxu0 0.0
        %2427 = vmatprep.subr.mxu0 0.0
        %2428 = vmatpush2.msra.mxu0 0.0
        %2429 = vmatprep.subr.mxu0 0.0
        %2430 = vmatpush2.msra.mxu0 0.0
        %2431 = vmatprep.subr.mxu0 0.0
        %2432 = vmatpush2.msra.mxu0 0.0
        %2433 = vmatprep.subr.mxu0 0.0
        %2434 = vmatpush2.msra.mxu0 0.0
        %2435 = vmatprep.subr.mxu0 0.0
        %2436 = vmatpush2.msra.mxu0 0.0
        %2437 = vmatprep.subr.mxu0 0.0
        %2438 = vmatpush2.msra.mxu0 0.0
        %2439 = vmatprep.subr.mxu0 0.0
        %2440 = vmatpush2.msra.mxu0 0.0
        %2441 = vmatprep.mubr.f32.mxu0 0.0
        %2442 = vmatmul.mubr.f32.gmra.mxu0 %v2375
        %v2443 = vpop.f32.mrf.mxu0
        %v2444 = vadd.f32 %v2372, %v2443
        %v2445 = vpop.f32.mrf.mxu0
        %2446 = vdwg.mxu0
        %v2447 = vmul.f32 %v2444, 0.5
        %v2448 = vmul.f32 %v2444, 0.70710677
        %vm2449 = vcmp.ge.f32.partialorder %v2448, 0.0
        %v2450 = vsel %vm2449, 1.0, -1.0
        %v2451 = vand.u32 2147483647, %v2448
        %v2452 = vmul.f32 %v2451, 0.3275911
        %v2453 = vadd.f32 %v2452, 1.0
        %v2454 = vrcp.pop %v2453
        %v2455 = vmul.f32 1.0, %v2454
        %v2456 = vmul.f32 %v2455, 1.0614054
        %v2457 = vadd.f32 %v2456, -1.4531521
        %v2458 = vmul.f32 %v2457, %v2455
        %v2459 = vadd.f32 %v2458, 1.4214138
        %v2460 = vmul.f32 %v2459, %v2455
        %v2461 = vadd.f32 %v2460, -0.28449672
        %v2462 = vmul.f32 %v2461, %v2455
        %v2463 = vadd.f32 %v2462, 0.2548296
        %v2464 = vmul.f32 %v2463, %v2455
        %v2465 = vsub.f32 0.0, %v2451
        %v2466 = vmul.f32 %v2465, %v2451
        %v2467 = vmul.f32 %v2466, 1.442695
        %v2468 = vpow.pop %v2467
        %v2469 = vmul.f32 %v2464, %v2468
        %v2470 = vsub.f32 1.0, %v2469
        %v2471 = vmul.f32 %v2450, %v2470
        %v2472 = vadd.f32 %v2471, 1.0
        %v2473 = vmul.f32 %v2447, %v2472
        %v2474 = vld [vmem:[%s11] sm:$0xff]
        %v2475 = vld [vmem:[%s11 + $0x8] sm:$0xff]
        %v2476 = vld [vmem:[%s11 + $0x10] sm:$0xff]
        %v2477 = vld [vmem:[%s11 + $0x18] sm:$0xff]
        %v2478 = vld [vmem:[%s11 + $0x20] sm:$0xff]
        %v2479 = vld [vmem:[%s11 + $0x28] sm:$0xff]
        %v2480 = vld [vmem:[%s11 + $0x30] sm:$0xff]
        %v2481 = vld [vmem:[%s11 + $0x38] sm:$0xff]
        %v2482 = vld [vmem:[%s12] sm:$0x1]
        %v2484 = vlaneseq
        %v2485 = vshrl.u32 %v2484, 7
        %v2486 = vsub.s32 0, %v2485
        %v2487 = vrot.slane %v2482, %v2486
        %vm2489 = vcmask 523264
        %v2491 = vsel %vm2489, %v2473, 0
        %2493 = vmatprep.subr.mxu0 0.0
        %2494 = vmatpush1.msra.mxu0 0.0
        %2495 = vmatprep.subr.mxu0 0.0
        %2496 = vmatpush1.msra.mxu0 0.0
        %2497 = vmatprep.subr.mxu0 0.0
        %2498 = vmatpush1.msra.mxu0 0.0
        %2499 = vmatprep.subr.mxu0 0.0
        %2500 = vmatpush1.msra.mxu0 0.0
        %2501 = vmatprep.subr.mxu0 0.0
        %2502 = vmatpush1.msra.mxu0 0.0
        %2503 = vmatprep.subr.mxu0 0.0
        %2504 = vmatpush1.msra.mxu0 0.0
        %2505 = vmatprep.subr.mxu0 0.0
        %2506 = vmatpush1.msra.mxu0 0.0
        %2507 = vmatprep.subr.mxu0 0.0
        %2508 = vmatpush1.msra.mxu0 0.0
        %2509 = vmatprep.subr.mxu0 0.0
        %2510 = vmatpush1.msra.mxu0 %v2481
        %2511 = vmatprep.subr.mxu0 0.0
        %2512 = vmatpush1.msra.mxu0 %v2480
        %2513 = vmatprep.subr.mxu0 0.0
        %2514 = vmatpush1.msra.mxu0 %v2479
        %2515 = vmatprep.subr.mxu0 0.0
        %2516 = vmatpush1.msra.mxu0 %v2478
        %2517 = vmatprep.subr.mxu0 0.0
        %2518 = vmatpush1.msra.mxu0 %v2477
        %2519 = vmatprep.subr.mxu0 0.0
        %2520 = vmatpush1.msra.mxu0 %v2476
        %2521 = vmatprep.subr.mxu0 0.0
        %2522 = vmatpush1.msra.mxu0 %v2475
        %2523 = vmatprep.subr.mxu0 0.0
        %2524 = vmatpush1.msra.mxu0 %v2474
        %2525 = vmatprep.subr.mxu0 0.0
        %2526 = vmatpush2.msra.mxu0 0.0
        %2527 = vmatprep.subr.mxu0 0.0
        %2528 = vmatpush2.msra.mxu0 0.0
        %2529 = vmatprep.subr.mxu0 0.0
        %2530 = vmatpush2.msra.mxu0 0.0
        %2531 = vmatprep.subr.mxu0 0.0
        %2532 = vmatpush2.msra.mxu0 0.0
        %2533 = vmatprep.subr.mxu0 0.0
        %2534 = vmatpush2.msra.mxu0 0.0
        %2535 = vmatprep.subr.mxu0 0.0
        %2536 = vmatpush2.msra.mxu0 0.0
        %2537 = vmatprep.subr.mxu0 0.0
        %2538 = vmatpush2.msra.mxu0 0.0
        %2539 = vmatprep.subr.mxu0 0.0
        %2540 = vmatpush2.msra.mxu0 0.0
        %2541 = vmatprep.subr.mxu0 0.0
        %2542 = vmatpush2.msra.mxu0 0.0
        %2543 = vmatprep.subr.mxu0 0.0
        %2544 = vmatpush2.msra.mxu0 0.0
        %2545 = vmatprep.subr.mxu0 0.0
        %2546 = vmatpush2.msra.mxu0 0.0
        %2547 = vmatprep.subr.mxu0 0.0
        %2548 = vmatpush2.msra.mxu0 0.0
        %2549 = vmatprep.subr.mxu0 0.0
        %2550 = vmatpush2.msra.mxu0 0.0
        %2551 = vmatprep.subr.mxu0 0.0
        %2552 = vmatpush2.msra.mxu0 0.0
        %2553 = vmatprep.subr.mxu0 0.0
        %2554 = vmatpush2.msra.mxu0 0.0
        %2555 = vmatprep.subr.mxu0 0.0
        %2556 = vmatpush2.msra.mxu0 0.0
        %2557 = vmatprep.mubr.f32.mxu0 0.0
        %2558 = vmatmul.mubr.f32.gmra.mxu0 %v2491
        %v2559 = vpop.f32.mrf.mxu0
        %v2560 = vadd.f32 %v2487, %v2559
        %v2561 = vpop.f32.mrf.mxu0
        %2562 = vdwg.mxu0
        %v2563 = vadd.f32 %v2560, %v2362
        %v2564 = vsel %vm475, %v2563, 0.0
        %2565 = vadd.xlane.f32.xlu0 %v2564
        %v2566 = vpop.xlane.xlu0 %2565
        %v2567 = vmul.f32 %v2566, %v479
        %v2568 = vsub.f32 %v2563, %v2567
        %v2569 = vmul.f32 %v2568, %v2568
        %v2570 = vsel %vm475, %v2569, 0.0
        %2571 = vadd.xlane.f32.xlu0 %v2570
        %v2572 = vpop.xlane.xlu0 %2571
        %v2573 = vmul.f32 %v2572, %v479
        %v2574 = vadd.f32 %v2573, 1e-05
        %v2575 = vrsqrt.pop %v2574
        %v2576 = vmul.f32 %v2568, %v2575
        %v2577 = vlaneseq
        %v2578 = vshrl.u32 %v2577, 7
        %v2579 = vsub.s32 6, %v2578
        %v2580 = vrot.slane %v500, %v2579
        %v2581 = vmul.f32 %v2576, %v2580
        %v2582 = vlaneseq
        %v2583 = vshrl.u32 %v2582, 7
        %v2584 = vsub.s32 7, %v2583
        %v2585 = vrot.slane %v500, %v2584
        %v2586 = vadd.f32 %v2581, %v2585
        %s2587 = scalar_lea.vmem %s8, 8
        %v2588 = vld [vmem:[%s2587] sm:$0xff]
        %s2589 = scalar_lea.vmem %s2, 32
        %v2590 = vld [vmem:[%s2589] sm:$0xff]
        %v2591 = vld [vmem:[%s2589 + $0x8] sm:$0xff]
        %v2592 = vld [vmem:[%s2589 + $0x10] sm:$0xff]
        %v2593 = vld [vmem:[%s2589 + $0x18] sm:$0xff]
        %v2595 = vsel %vm475, %v2586, 0
        %2597 = vmatprep.subr.mxu0 0.0
        %2598 = vmatpush1.msra.mxu0 0.0
        %2599 = vmatprep.subr.mxu0 0.0
        %2600 = vmatpush1.msra.mxu0 0.0
        %2601 = vmatprep.subr.mxu0 0.0
        %2602 = vmatpush1.msra.mxu0 0.0
        %2603 = vmatprep.subr.mxu0 0.0
        %2604 = vmatpush1.msra.mxu0 0.0
        %2605 = vmatprep.subr.mxu0 0.0
        %2606 = vmatpush1.msra.mxu0 0.0
        %2607 = vmatprep.subr.mxu0 0.0
        %2608 = vmatpush1.msra.mxu0 0.0
        %2609 = vmatprep.subr.mxu0 0.0
        %2610 = vmatpush1.msra.mxu0 0.0
        %2611 = vmatprep.subr.mxu0 0.0
        %2612 = vmatpush1.msra.mxu0 0.0
        %2613 = vmatprep.subr.mxu0 0.0
        %2614 = vmatpush1.msra.mxu0 0.0
        %2615 = vmatprep.subr.mxu0 0.0
        %2616 = vmatpush1.msra.mxu0 0.0
        %2617 = vmatprep.subr.mxu0 0.0
        %2618 = vmatpush1.msra.mxu0 0.0
        %2619 = vmatprep.subr.mxu0 0.0
        %2620 = vmatpush1.msra.mxu0 0.0
        %2621 = vmatprep.subr.mxu0 0.0
        %2622 = vmatpush1.msra.mxu0 %v2593
        %2623 = vmatprep.subr.mxu0 0.0
        %2624 = vmatpush1.msra.mxu0 %v2592
        %2625 = vmatprep.subr.mxu0 0.0
        %2626 = vmatpush1.msra.mxu0 %v2591
        %2627 = vmatprep.subr.mxu0 0.0
        %2628 = vmatpush1.msra.mxu0 %v2590
        %2629 = vmatprep.subr.mxu0 0.0
        %2630 = vmatpush2.msra.mxu0 0.0
        %2631 = vmatprep.subr.mxu0 0.0
        %2632 = vmatpush2.msra.mxu0 0.0
        %2633 = vmatprep.subr.mxu0 0.0
        %2634 = vmatpush2.msra.mxu0 0.0
        %2635 = vmatprep.subr.mxu0 0.0
        %2636 = vmatpush2.msra.mxu0 0.0
        %2637 = vmatprep.subr.mxu0 0.0
        %2638 = vmatpush2.msra.mxu0 0.0
        %2639 = vmatprep.subr.mxu0 0.0
        %2640 = vmatpush2.msra.mxu0 0.0
        %2641 = vmatprep.subr.mxu0 0.0
        %2642 = vmatpush2.msra.mxu0 0.0
        %2643 = vmatprep.subr.mxu0 0.0
        %2644 = vmatpush2.msra.mxu0 0.0
        %2645 = vmatprep.subr.mxu0 0.0
        %2646 = vmatpush2.msra.mxu0 0.0
        %2647 = vmatprep.subr.mxu0 0.0
        %2648 = vmatpush2.msra.mxu0 0.0
        %2649 = vmatprep.subr.mxu0 0.0
        %2650 = vmatpush2.msra.mxu0 0.0
        %2651 = vmatprep.subr.mxu0 0.0
        %2652 = vmatpush2.msra.mxu0 0.0
        %2653 = vmatprep.subr.mxu0 0.0
        %2654 = vmatpush2.msra.mxu0 0.0
        %2655 = vmatprep.subr.mxu0 0.0
        %2656 = vmatpush2.msra.mxu0 0.0
        %2657 = vmatprep.subr.mxu0 0.0
        %2658 = vmatpush2.msra.mxu0 0.0
        %2659 = vmatprep.subr.mxu0 0.0
        %2660 = vmatpush2.msra.mxu0 0.0
        %2661 = vmatprep.mubr.f32.mxu0 0.0
        %2662 = vmatmul.mubr.f32.gmra.mxu0 %v2595
        %v2663 = vpop.f32.mrf.mxu0
        %v2664 = vadd.f32 %v2586, %v2663
        %v2665 = vpop.f32.mrf.mxu0
        %2666 = vdwg.mxu0
        %v2667 = vsel %vm475, %v2664, 0.0
        %2668 = vadd.xlane.f32.xlu0 %v2667
        %v2669 = vpop.xlane.xlu0 %2668
        %v2670 = vmul.f32 %v2669, %v479
        %v2671 = vsub.f32 %v2664, %v2670
        %v2672 = vmul.f32 %v2671, %v2671
        %v2673 = vsel %vm475, %v2672, 0.0
        %2674 = vadd.xlane.f32.xlu0 %v2673
        %v2675 = vpop.xlane.xlu0 %2674
        %v2676 = vmul.f32 %v2675, %v479
        %v2677 = vadd.f32 %v2676, 1e-05
        %v2678 = vrsqrt.pop %v2677
        %v2679 = vmul.f32 %v2671, %v2678
        %v2680 = vlaneseq
        %v2681 = vshrl.u32 %v2680, 7
        %v2682 = vsub.s32 0, %v2681
        %v2683 = vrot.slane %v2588, %v2682
        %v2684 = vmul.f32 %v2679, %v2683
        %v2685 = vlaneseq
        %v2686 = vshrl.u32 %v2685, 7
        %v2687 = vsub.s32 1, %v2686
        %v2688 = vrot.slane %v2588, %v2687
        %v2689 = vadd.f32 %v2684, %v2688
        %s2690 = scalar_lea.vmem %s3, 128
        %v2691 = vld [vmem:[%s2690] sm:$0xff]
        %v2692 = vld [vmem:[%s2690 + $0x8] sm:$0xff]
        %v2693 = vld [vmem:[%s2690 + $0x10] sm:$0xff]
        %v2694 = vld [vmem:[%s2690 + $0x18] sm:$0xff]
        %v2696 = vsel %vm475, %v2689, 0
        %2698 = vmatprep.subr.mxu0 0.0
        %2699 = vmatpush1.msra.mxu0 0.0
        %2700 = vmatprep.subr.mxu0 0.0
        %2701 = vmatpush1.msra.mxu0 0.0
        %2702 = vmatprep.subr.mxu0 0.0
        %2703 = vmatpush1.msra.mxu0 0.0
        %2704 = vmatprep.subr.mxu0 0.0
        %2705 = vmatpush1.msra.mxu0 0.0
        %2706 = vmatprep.subr.mxu0 0.0
        %2707 = vmatpush1.msra.mxu0 0.0
        %2708 = vmatprep.subr.mxu0 0.0
        %2709 = vmatpush1.msra.mxu0 0.0
        %2710 = vmatprep.subr.mxu0 0.0
        %2711 = vmatpush1.msra.mxu0 0.0
        %2712 = vmatprep.subr.mxu0 0.0
        %2713 = vmatpush1.msra.mxu0 0.0
        %2714 = vmatprep.subr.mxu0 0.0
        %2715 = vmatpush1.msra.mxu0 0.0
        %2716 = vmatprep.subr.mxu0 0.0
        %2717 = vmatpush1.msra.mxu0 0.0
        %2718 = vmatprep.subr.mxu0 0.0
        %2719 = vmatpush1.msra.mxu0 0.0
        %2720 = vmatprep.subr.mxu0 0.0
        %2721 = vmatpush1.msra.mxu0 0.0
        %2722 = vmatprep.subr.mxu0 0.0
        %2723 = vmatpush1.msra.mxu0 %v2694
        %2724 = vmatprep.subr.mxu0 0.0
        %2725 = vmatpush1.msra.mxu0 %v2693
        %2726 = vmatprep.subr.mxu0 0.0
        %2727 = vmatpush1.msra.mxu0 %v2692
        %2728 = vmatprep.subr.mxu0 0.0
        %2729 = vmatpush1.msra.mxu0 %v2691
        %2730 = vmatprep.subr.mxu0 0.0
        %2731 = vmatpush2.msra.mxu0 0.0
        %2732 = vmatprep.subr.mxu0 0.0
        %2733 = vmatpush2.msra.mxu0 0.0
        %2734 = vmatprep.subr.mxu0 0.0
        %2735 = vmatpush2.msra.mxu0 0.0
        %2736 = vmatprep.subr.mxu0 0.0
        %2737 = vmatpush2.msra.mxu0 0.0
        %2738 = vmatprep.subr.mxu0 0.0
        %2739 = vmatpush2.msra.mxu0 0.0
        %2740 = vmatprep.subr.mxu0 0.0
        %2741 = vmatpush2.msra.mxu0 0.0
        %2742 = vmatprep.subr.mxu0 0.0
        %2743 = vmatpush2.msra.mxu0 0.0
        %2744 = vmatprep.subr.mxu0 0.0
        %2745 = vmatpush2.msra.mxu0 0.0
        %2746 = vmatprep.subr.mxu0 0.0
        %2747 = vmatpush2.msra.mxu0 0.0
        %2748 = vmatprep.subr.mxu0 0.0
        %2749 = vmatpush2.msra.mxu0 0.0
        %2750 = vmatprep.subr.mxu0 0.0
        %2751 = vmatpush2.msra.mxu0 0.0
        %2752 = vmatprep.subr.mxu0 0.0
        %2753 = vmatpush2.msra.mxu0 0.0
        %2754 = vmatprep.subr.mxu0 0.0
        %2755 = vmatpush2.msra.mxu0 0.0
        %2756 = vmatprep.subr.mxu0 0.0
        %2757 = vmatpush2.msra.mxu0 0.0
        %2758 = vmatprep.subr.mxu0 0.0
        %2759 = vmatpush2.msra.mxu0 0.0
        %2760 = vmatprep.subr.mxu0 0.0
        %2761 = vmatpush2.msra.mxu0 0.0
        %2762 = vmatprep.mubr.f32.mxu0 0.0
        %2763 = vmatmul.mubr.f32.gmra.mxu0 %v2696
        %v2764 = vpop.f32.mrf.mxu0
        %v2765 = vadd.f32 0.0, %v2764
        %v2766 = vpop.f32.mrf.mxu0
        %2767 = vdwg.mxu0
        %s2768 = scalar_lea.vmem %s4, 128
        %v2769 = vld [vmem:[%s2768] sm:$0xff]
        %v2770 = vld [vmem:[%s2768 + $0x8] sm:$0xff]
        %v2771 = vld [vmem:[%s2768 + $0x10] sm:$0xff]
        %v2772 = vld [vmem:[%s2768 + $0x18] sm:$0xff]
        %2773 = vmatprep.subr.mxu0 0.0
        %2774 = vmatpush1.msra.mxu0 0.0
        %2775 = vmatprep.subr.mxu0 0.0
        %2776 = vmatpush1.msra.mxu0 0.0
        %2777 = vmatprep.subr.mxu0 0.0
        %2778 = vmatpush1.msra.mxu0 0.0
        %2779 = vmatprep.subr.mxu0 0.0
        %2780 = vmatpush1.msra.mxu0 0.0
        %2781 = vmatprep.subr.mxu0 0.0
        %2782 = vmatpush1.msra.mxu0 0.0
        %2783 = vmatprep.subr.mxu0 0.0
        %2784 = vmatpush1.msra.mxu0 0.0
        %2785 = vmatprep.subr.mxu0 0.0
        %2786 = vmatpush1.msra.mxu0 0.0
        %2787 = vmatprep.subr.mxu0 0.0
        %2788 = vmatpush1.msra.mxu0 0.0
        %2789 = vmatprep.subr.mxu0 0.0
        %2790 = vmatpush1.msra.mxu0 0.0
        %2791 = vmatprep.subr.mxu0 0.0
        %2792 = vmatpush1.msra.mxu0 0.0
        %2793 = vmatprep.subr.mxu0 0.0
        %2794 = vmatpush1.msra.mxu0 0.0
        %2795 = vmatprep.subr.mxu0 0.0
        %2796 = vmatpush1.msra.mxu0 0.0
        %2797 = vmatprep.subr.mxu0 0.0
        %2798 = vmatpush1.msra.mxu0 %v2772
        %2799 = vmatprep.subr.mxu0 0.0
        %2800 = vmatpush1.msra.mxu0 %v2771
        %2801 = vmatprep.subr.mxu0 0.0
        %2802 = vmatpush1.msra.mxu0 %v2770
        %2803 = vmatprep.subr.mxu0 0.0
        %2804 = vmatpush1.msra.mxu0 %v2769
        %2805 = vmatprep.subr.mxu0 0.0
        %2806 = vmatpush2.msra.mxu0 0.0
        %2807 = vmatprep.subr.mxu0 0.0
        %2808 = vmatpush2.msra.mxu0 0.0
        %2809 = vmatprep.subr.mxu0 0.0
        %2810 = vmatpush2.msra.mxu0 0.0
        %2811 = vmatprep.subr.mxu0 0.0
        %2812 = vmatpush2.msra.mxu0 0.0
        %2813 = vmatprep.subr.mxu0 0.0
        %2814 = vmatpush2.msra.mxu0 0.0
        %2815 = vmatprep.subr.mxu0 0.0
        %2816 = vmatpush2.msra.mxu0 0.0
        %2817 = vmatprep.subr.mxu0 0.0
        %2818 = vmatpush2.msra.mxu0 0.0
        %2819 = vmatprep.subr.mxu0 0.0
        %2820 = vmatpush2.msra.mxu0 0.0
        %2821 = vmatprep.subr.mxu0 0.0
        %2822 = vmatpush2.msra.mxu0 0.0
        %2823 = vmatprep.subr.mxu0 0.0
        %2824 = vmatpush2.msra.mxu0 0.0
        %2825 = vmatprep.subr.mxu0 0.0
        %2826 = vmatpush2.msra.mxu0 0.0
        %2827 = vmatprep.subr.mxu0 0.0
        %2828 = vmatpush2.msra.mxu0 0.0
        %2829 = vmatprep.subr.mxu0 0.0
        %2830 = vmatpush2.msra.mxu0 0.0
        %2831 = vmatprep.subr.mxu0 0.0
        %2832 = vmatpush2.msra.mxu0 0.0
        %2833 = vmatprep.subr.mxu0 0.0
        %2834 = vmatpush2.msra.mxu0 0.0
        %2835 = vmatprep.subr.mxu0 0.0
        %2836 = vmatpush2.msra.mxu0 0.0
        %2837 = vmatprep.mubr.f32.mxu0 0.0
        %2838 = vmatmul.mubr.f32.gmra.mxu0 %v2595
        %v2839 = vpop.f32.mrf.mxu0
        %v2840 = vadd.f32 0.0, %v2839
        %v2841 = vpop.f32.mrf.mxu0
        %2842 = vdwg.mxu0
        %s2843 = scalar_lea.vmem %s5, 128
        %v2844 = vld [vmem:[%s2843] sm:$0xff]
        %v2845 = vld [vmem:[%s2843 + $0x8] sm:$0xff]
        %v2846 = vld [vmem:[%s2843 + $0x10] sm:$0xff]
        %v2847 = vld [vmem:[%s2843 + $0x18] sm:$0xff]
        %2848 = vmatprep.subr.mxu0 0.0
        %2849 = vmatpush1.msra.mxu0 0.0
        %2850 = vmatprep.subr.mxu0 0.0
        %2851 = vmatpush1.msra.mxu0 0.0
        %2852 = vmatprep.subr.mxu0 0.0
        %2853 = vmatpush1.msra.mxu0 0.0
        %2854 = vmatprep.subr.mxu0 0.0
        %2855 = vmatpush1.msra.mxu0 0.0
        %2856 = vmatprep.subr.mxu0 0.0
        %2857 = vmatpush1.msra.mxu0 0.0
        %2858 = vmatprep.subr.mxu0 0.0
        %2859 = vmatpush1.msra.mxu0 0.0
        %2860 = vmatprep.subr.mxu0 0.0
        %2861 = vmatpush1.msra.mxu0 0.0
        %2862 = vmatprep.subr.mxu0 0.0
        %2863 = vmatpush1.msra.mxu0 0.0
        %2864 = vmatprep.subr.mxu0 0.0
        %2865 = vmatpush1.msra.mxu0 0.0
        %2866 = vmatprep.subr.mxu0 0.0
        %2867 = vmatpush1.msra.mxu0 0.0
        %2868 = vmatprep.subr.mxu0 0.0
        %2869 = vmatpush1.msra.mxu0 0.0
        %2870 = vmatprep.subr.mxu0 0.0
        %2871 = vmatpush1.msra.mxu0 0.0
        %2872 = vmatprep.subr.mxu0 0.0
        %2873 = vmatpush1.msra.mxu0 %v2847
        %2874 = vmatprep.subr.mxu0 0.0
        %2875 = vmatpush1.msra.mxu0 %v2846
        %2876 = vmatprep.subr.mxu0 0.0
        %2877 = vmatpush1.msra.mxu0 %v2845
        %2878 = vmatprep.subr.mxu0 0.0
        %2879 = vmatpush1.msra.mxu0 %v2844
        %2880 = vmatprep.subr.mxu0 0.0
        %2881 = vmatpush2.msra.mxu0 0.0
        %2882 = vmatprep.subr.mxu0 0.0
        %2883 = vmatpush2.msra.mxu0 0.0
        %2884 = vmatprep.subr.mxu0 0.0
        %2885 = vmatpush2.msra.mxu0 0.0
        %2886 = vmatprep.subr.mxu0 0.0
        %2887 = vmatpush2.msra.mxu0 0.0
        %2888 = vmatprep.subr.mxu0 0.0
        %2889 = vmatpush2.msra.mxu0 0.0
        %2890 = vmatprep.subr.mxu0 0.0
        %2891 = vmatpush2.msra.mxu0 0.0
        %2892 = vmatprep.subr.mxu0 0.0
        %2893 = vmatpush2.msra.mxu0 0.0
        %2894 = vmatprep.subr.mxu0 0.0
        %2895 = vmatpush2.msra.mxu0 0.0
        %2896 = vmatprep.subr.mxu0 0.0
        %2897 = vmatpush2.msra.mxu0 0.0
        %2898 = vmatprep.subr.mxu0 0.0
        %2899 = vmatpush2.msra.mxu0 0.0
        %2900 = vmatprep.subr.mxu0 0.0
        %2901 = vmatpush2.msra.mxu0 0.0
        %2902 = vmatprep.subr.mxu0 0.0
        %2903 = vmatpush2.msra.mxu0 0.0
        %2904 = vmatprep.subr.mxu0 0.0
        %2905 = vmatpush2.msra.mxu0 0.0
        %2906 = vmatprep.subr.mxu0 0.0
        %2907 = vmatpush2.msra.mxu0 0.0
        %2908 = vmatprep.subr.mxu0 0.0
        %2909 = vmatpush2.msra.mxu0 0.0
        %2910 = vmatprep.subr.mxu0 0.0
        %2911 = vmatpush2.msra.mxu0 0.0
        %2912 = vmatprep.mubr.f32.mxu0 0.0
        %2913 = vmatmul.mubr.f32.gmra.mxu0 %v2595
        %v2914 = vpop.f32.mrf.mxu0
        %v2915 = vadd.f32 0.0, %v2914
        %v2916 = vpop.f32.mrf.mxu0
        %2917 = vdwg.mxu0
        %v2919 = vsel %vm826, %v2765, 0
        %v2922 = vsel %vm826, %v2840, 0
        %2924 = vmatprep.subr.mxu0 0.0
        %2925 = vmatpush1.xpose.msra.mxu0 0.0
        %2926 = vmatprep.subr.mxu0 0.0
        %2927 = vmatpush1.xpose.msra.mxu0 0.0
        %2928 = vmatprep.subr.mxu0 0.0
        %2929 = vmatpush1.xpose.msra.mxu0 0.0
        %2930 = vmatprep.subr.mxu0 0.0
        %2931 = vmatpush1.xpose.msra.mxu0 0.0
        %2932 = vmatprep.subr.mxu0 0.0
        %2933 = vmatpush1.xpose.msra.mxu0 0.0
        %2934 = vmatprep.subr.mxu0 0.0
        %2935 = vmatpush1.xpose.msra.mxu0 0.0
        %2936 = vmatprep.subr.mxu0 0.0
        %2937 = vmatpush1.xpose.msra.mxu0 0.0
        %2938 = vmatprep.subr.mxu0 0.0
        %2939 = vmatpush1.xpose.msra.mxu0 0.0
        %2940 = vmatprep.subr.mxu0 0.0
        %2941 = vmatpush1.xpose.msra.mxu0 0.0
        %2942 = vmatprep.subr.mxu0 0.0
        %2943 = vmatpush1.xpose.msra.mxu0 0.0
        %2944 = vmatprep.subr.mxu0 0.0
        %2945 = vmatpush1.xpose.msra.mxu0 0.0
        %2946 = vmatprep.subr.mxu0 0.0
        %2947 = vmatpush1.xpose.msra.mxu0 0.0
        %2948 = vmatprep.subr.mxu0 0.0
        %2949 = vmatpush1.xpose.msra.mxu0 0.0
        %2950 = vmatprep.subr.mxu0 0.0
        %2951 = vmatpush1.xpose.msra.mxu0 0.0
        %2952 = vmatprep.subr.mxu0 0.0
        %2953 = vmatpush1.xpose.msra.mxu0 0.0
        %2954 = vmatprep.subr.mxu0 0.0
        %2955 = vmatpush1.xpose.msra.mxu0 %v2922
        %2956 = vmatprep.subr.mxu0 0.0
        %2957 = vmatpush2.xpose.msra.mxu0 0.0
        %2958 = vmatprep.subr.mxu0 0.0
        %2959 = vmatpush2.xpose.msra.mxu0 0.0
        %2960 = vmatprep.subr.mxu0 0.0
        %2961 = vmatpush2.xpose.msra.mxu0 0.0
        %2962 = vmatprep.subr.mxu0 0.0
        %2963 = vmatpush2.xpose.msra.mxu0 0.0
        %2964 = vmatprep.subr.mxu0 0.0
        %2965 = vmatpush2.xpose.msra.mxu0 0.0
        %2966 = vmatprep.subr.mxu0 0.0
        %2967 = vmatpush2.xpose.msra.mxu0 0.0
        %2968 = vmatprep.subr.mxu0 0.0
        %2969 = vmatpush2.xpose.msra.mxu0 0.0
        %2970 = vmatprep.subr.mxu0 0.0
        %2971 = vmatpush2.xpose.msra.mxu0 0.0
        %2972 = vmatprep.subr.mxu0 0.0
        %2973 = vmatpush2.xpose.msra.mxu0 0.0
        %2974 = vmatprep.subr.mxu0 0.0
        %2975 = vmatpush2.xpose.msra.mxu0 0.0
        %2976 = vmatprep.subr.mxu0 0.0
        %2977 = vmatpush2.xpose.msra.mxu0 0.0
        %2978 = vmatprep.subr.mxu0 0.0
        %2979 = vmatpush2.xpose.msra.mxu0 0.0
        %2980 = vmatprep.subr.mxu0 0.0
        %2981 = vmatpush2.xpose.msra.mxu0 0.0
        %2982 = vmatprep.subr.mxu0 0.0
        %2983 = vmatpush2.xpose.msra.mxu0 0.0
        %2984 = vmatprep.subr.mxu0 0.0
        %2985 = vmatpush2.xpose.msra.mxu0 0.0
        %2986 = vmatprep.subr.mxu0 0.0
        %2987 = vmatpush2.xpose.msra.mxu0 0.0
        %2988 = vmatprep.mubr.f32.mxu0 0.0
        %2989 = vmatmul.mubr.f32.gmra.mxu0 %v2919
        %v2990 = vpop.f32.mrf.mxu0
        %v2991 = vadd.f32 0.0, %v2990
        %v2992 = vpop.f32.mrf.mxu0
        %2993 = vdwg.mxu0
        %v2994 = vmul.f32 %v2991, 0.35355338
        %v2995 = vsel %vm826, %v2994, -inf
        %2996 = vmax.xlane.f32.xlu0 %v2995
        %v2997 = vpop.xlane.xlu0 %2996
        %v2998 = vsub.f32 %v2994, %v2997
        %v2999 = vmul.f32 %v2998, 1.442695
        %v3000 = vpow.pop %v2999
        %v3001 = vsel %vm826, %v3000, 0.0
        %3002 = vadd.xlane.f32.xlu0 %v3001
        %v3003 = vpop.xlane.xlu0 %3002
        %v3004 = vrcp.pop %v3003
        %v3005 = vmul.f32 %v3000, %v3004
        %v3007 = vsel %vm826, %v3005, 0
        %3009 = vmatprep.subr.mxu0 0.0
        %3010 = vmatpush1.msra.mxu0 0.0
        %3011 = vmatprep.subr.mxu0 0.0
        %3012 = vmatpush1.msra.mxu0 0.0
        %3013 = vmatprep.subr.mxu0 0.0
        %3014 = vmatpush1.msra.mxu0 0.0
        %3015 = vmatprep.subr.mxu0 0.0
        %3016 = vmatpush1.msra.mxu0 0.0
        %3017 = vmatprep.subr.mxu0 0.0
        %3018 = vmatpush1.msra.mxu0 0.0
        %3019 = vmatprep.subr.mxu0 0.0
        %3020 = vmatpush1.msra.mxu0 0.0
        %3021 = vmatprep.subr.mxu0 0.0
        %3022 = vmatpush1.msra.mxu0 0.0
        %3023 = vmatprep.subr.mxu0 0.0
        %3024 = vmatpush1.msra.mxu0 0.0
        %3025 = vmatprep.subr.mxu0 0.0
        %3026 = vmatpush1.msra.mxu0 0.0
        %3027 = vmatprep.subr.mxu0 0.0
        %3028 = vmatpush1.msra.mxu0 0.0
        %3029 = vmatprep.subr.mxu0 0.0
        %3030 = vmatpush1.msra.mxu0 0.0
        %3031 = vmatprep.subr.mxu0 0.0
        %3032 = vmatpush1.msra.mxu0 0.0
        %3033 = vmatprep.subr.mxu0 0.0
        %3034 = vmatpush1.msra.mxu0 0.0
        %3035 = vmatprep.subr.mxu0 0.0
        %3036 = vmatpush1.msra.mxu0 0.0
        %3037 = vmatprep.subr.mxu0 0.0
        %3038 = vmatpush1.msra.mxu0 0.0
        %3039 = vmatprep.subr.mxu0 0.0
        %3040 = vmatpush1.msra.mxu0 %v2915
        %3041 = vmatprep.subr.mxu0 0.0
        %3042 = vmatpush2.msra.mxu0 0.0
        %3043 = vmatprep.subr.mxu0 0.0
        %3044 = vmatpush2.msra.mxu0 0.0
        %3045 = vmatprep.subr.mxu0 0.0
        %3046 = vmatpush2.msra.mxu0 0.0
        %3047 = vmatprep.subr.mxu0 0.0
        %3048 = vmatpush2.msra.mxu0 0.0
        %3049 = vmatprep.subr.mxu0 0.0
        %3050 = vmatpush2.msra.mxu0 0.0
        %3051 = vmatprep.subr.mxu0 0.0
        %3052 = vmatpush2.msra.mxu0 0.0
        %3053 = vmatprep.subr.mxu0 0.0
        %3054 = vmatpush2.msra.mxu0 0.0
        %3055 = vmatprep.subr.mxu0 0.0
        %3056 = vmatpush2.msra.mxu0 0.0
        %3057 = vmatprep.subr.mxu0 0.0
        %3058 = vmatpush2.msra.mxu0 0.0
        %3059 = vmatprep.subr.mxu0 0.0
        %3060 = vmatpush2.msra.mxu0 0.0
        %3061 = vmatprep.subr.mxu0 0.0
        %3062 = vmatpush2.msra.mxu0 0.0
        %3063 = vmatprep.subr.mxu0 0.0
        %3064 = vmatpush2.msra.mxu0 0.0
        %3065 = vmatprep.subr.mxu0 0.0
        %3066 = vmatpush2.msra.mxu0 0.0
        %3067 = vmatprep.subr.mxu0 0.0
        %3068 = vmatpush2.msra.mxu0 0.0
        %3069 = vmatprep.subr.mxu0 0.0
        %3070 = vmatpush2.msra.mxu0 0.0
        %3071 = vmatprep.subr.mxu0 0.0
        %3072 = vmatpush2.msra.mxu0 0.0
        %3073 = vmatprep.mubr.f32.mxu0 0.0
        %3074 = vmatmul.mubr.f32.gmra.mxu0 %v3007
        %v3075 = vpop.f32.mrf.mxu0
        %v3076 = vadd.f32 0.0, %v3075
        %v3077 = vpop.f32.mrf.mxu0
        %3078 = vdwg.mxu0
        %s3079 = scalar_lea.vmem %s3, 160
        %v3080 = vld [vmem:[%s3079] sm:$0xff]
        %v3081 = vld [vmem:[%s3079 + $0x8] sm:$0xff]
        %v3082 = vld [vmem:[%s3079 + $0x10] sm:$0xff]
        %v3083 = vld [vmem:[%s3079 + $0x18] sm:$0xff]
        %3084 = vmatprep.subr.mxu0 0.0
        %3085 = vmatpush1.msra.mxu0 0.0
        %3086 = vmatprep.subr.mxu0 0.0
        %3087 = vmatpush1.msra.mxu0 0.0
        %3088 = vmatprep.subr.mxu0 0.0
        %3089 = vmatpush1.msra.mxu0 0.0
        %3090 = vmatprep.subr.mxu0 0.0
        %3091 = vmatpush1.msra.mxu0 0.0
        %3092 = vmatprep.subr.mxu0 0.0
        %3093 = vmatpush1.msra.mxu0 0.0
        %3094 = vmatprep.subr.mxu0 0.0
        %3095 = vmatpush1.msra.mxu0 0.0
        %3096 = vmatprep.subr.mxu0 0.0
        %3097 = vmatpush1.msra.mxu0 0.0
        %3098 = vmatprep.subr.mxu0 0.0
        %3099 = vmatpush1.msra.mxu0 0.0
        %3100 = vmatprep.subr.mxu0 0.0
        %3101 = vmatpush1.msra.mxu0 0.0
        %3102 = vmatprep.subr.mxu0 0.0
        %3103 = vmatpush1.msra.mxu0 0.0
        %3104 = vmatprep.subr.mxu0 0.0
        %3105 = vmatpush1.msra.mxu0 0.0
        %3106 = vmatprep.subr.mxu0 0.0
        %3107 = vmatpush1.msra.mxu0 0.0
        %3108 = vmatprep.subr.mxu0 0.0
        %3109 = vmatpush1.msra.mxu0 %v3083
        %3110 = vmatprep.subr.mxu0 0.0
        %3111 = vmatpush1.msra.mxu0 %v3082
        %3112 = vmatprep.subr.mxu0 0.0
        %3113 = vmatpush1.msra.mxu0 %v3081
        %3114 = vmatprep.subr.mxu0 0.0
        %3115 = vmatpush1.msra.mxu0 %v3080
        %3116 = vmatprep.subr.mxu0 0.0
        %3117 = vmatpush2.msra.mxu0 0.0
        %3118 = vmatprep.subr.mxu0 0.0
        %3119 = vmatpush2.msra.mxu0 0.0
        %3120 = vmatprep.subr.mxu0 0.0
        %3121 = vmatpush2.msra.mxu0 0.0
        %3122 = vmatprep.subr.mxu0 0.0
        %3123 = vmatpush2.msra.mxu0 0.0
        %3124 = vmatprep.subr.mxu0 0.0
        %3125 = vmatpush2.msra.mxu0 0.0
        %3126 = vmatprep.subr.mxu0 0.0
        %3127 = vmatpush2.msra.mxu0 0.0
        %3128 = vmatprep.subr.mxu0 0.0
        %3129 = vmatpush2.msra.mxu0 0.0
        %3130 = vmatprep.subr.mxu0 0.0
        %3131 = vmatpush2.msra.mxu0 0.0
        %3132 = vmatprep.subr.mxu0 0.0
        %3133 = vmatpush2.msra.mxu0 0.0
        %3134 = vmatprep.subr.mxu0 0.0
        %3135 = vmatpush2.msra.mxu0 0.0
        %3136 = vmatprep.subr.mxu0 0.0
        %3137 = vmatpush2.msra.mxu0 0.0
        %3138 = vmatprep.subr.mxu0 0.0
        %3139 = vmatpush2.msra.mxu0 0.0
        %3140 = vmatprep.subr.mxu0 0.0
        %3141 = vmatpush2.msra.mxu0 0.0
        %3142 = vmatprep.subr.mxu0 0.0
        %3143 = vmatpush2.msra.mxu0 0.0
        %3144 = vmatprep.subr.mxu0 0.0
        %3145 = vmatpush2.msra.mxu0 0.0
        %3146 = vmatprep.subr.mxu0 0.0
        %3147 = vmatpush2.msra.mxu0 0.0
        %3148 = vmatprep.mubr.f32.mxu0 0.0
        %3149 = vmatmul.mubr.f32.gmra.mxu0 %v2696
        %v3150 = vpop.f32.mrf.mxu0
        %v3151 = vadd.f32 0.0, %v3150
        %v3152 = vpop.f32.mrf.mxu0
        %3153 = vdwg.mxu0
        %s3154 = scalar_lea.vmem %s4, 160
        %v3155 = vld [vmem:[%s3154] sm:$0xff]
        %v3156 = vld [vmem:[%s3154 + $0x8] sm:$0xff]
        %v3157 = vld [vmem:[%s3154 + $0x10] sm:$0xff]
        %v3158 = vld [vmem:[%s3154 + $0x18] sm:$0xff]
        %3159 = vmatprep.subr.mxu0 0.0
        %3160 = vmatpush1.msra.mxu0 0.0
        %3161 = vmatprep.subr.mxu0 0.0
        %3162 = vmatpush1.msra.mxu0 0.0
        %3163 = vmatprep.subr.mxu0 0.0
        %3164 = vmatpush1.msra.mxu0 0.0
        %3165 = vmatprep.subr.mxu0 0.0
        %3166 = vmatpush1.msra.mxu0 0.0
        %3167 = vmatprep.subr.mxu0 0.0
        %3168 = vmatpush1.msra.mxu0 0.0
        %3169 = vmatprep.subr.mxu0 0.0
        %3170 = vmatpush1.msra.mxu0 0.0
        %3171 = vmatprep.subr.mxu0 0.0
        %3172 = vmatpush1.msra.mxu0 0.0
        %3173 = vmatprep.subr.mxu0 0.0
        %3174 = vmatpush1.msra.mxu0 0.0
        %3175 = vmatprep.subr.mxu0 0.0
        %3176 = vmatpush1.msra.mxu0 0.0
        %3177 = vmatprep.subr.mxu0 0.0
        %3178 = vmatpush1.msra.mxu0 0.0
        %3179 = vmatprep.subr.mxu0 0.0
        %3180 = vmatpush1.msra.mxu0 0.0
        %3181 = vmatprep.subr.mxu0 0.0
        %3182 = vmatpush1.msra.mxu0 0.0
        %3183 = vmatprep.subr.mxu0 0.0
        %3184 = vmatpush1.msra.mxu0 %v3158
        %3185 = vmatprep.subr.mxu0 0.0
        %3186 = vmatpush1.msra.mxu0 %v3157
        %3187 = vmatprep.subr.mxu0 0.0
        %3188 = vmatpush1.msra.mxu0 %v3156
        %3189 = vmatprep.subr.mxu0 0.0
        %3190 = vmatpush1.msra.mxu0 %v3155
        %3191 = vmatprep.subr.mxu0 0.0
        %3192 = vmatpush2.msra.mxu0 0.0
        %3193 = vmatprep.subr.mxu0 0.0
        %3194 = vmatpush2.msra.mxu0 0.0
        %3195 = vmatprep.subr.mxu0 0.0
        %3196 = vmatpush2.msra.mxu0 0.0
        %3197 = vmatprep.subr.mxu0 0.0
        %3198 = vmatpush2.msra.mxu0 0.0
        %3199 = vmatprep.subr.mxu0 0.0
        %3200 = vmatpush2.msra.mxu0 0.0
        %3201 = vmatprep.subr.mxu0 0.0
        %3202 = vmatpush2.msra.mxu0 0.0
        %3203 = vmatprep.subr.mxu0 0.0
        %3204 = vmatpush2.msra.mxu0 0.0
        %3205 = vmatprep.subr.mxu0 0.0
        %3206 = vmatpush2.msra.mxu0 0.0
        %3207 = vmatprep.subr.mxu0 0.0
        %3208 = vmatpush2.msra.mxu0 0.0
        %3209 = vmatprep.subr.mxu0 0.0
        %3210 = vmatpush2.msra.mxu0 0.0
        %3211 = vmatprep.subr.mxu0 0.0
        %3212 = vmatpush2.msra.mxu0 0.0
        %3213 = vmatprep.subr.mxu0 0.0
        %3214 = vmatpush2.msra.mxu0 0.0
        %3215 = vmatprep.subr.mxu0 0.0
        %3216 = vmatpush2.msra.mxu0 0.0
        %3217 = vmatprep.subr.mxu0 0.0
        %3218 = vmatpush2.msra.mxu0 0.0
        %3219 = vmatprep.subr.mxu0 0.0
        %3220 = vmatpush2.msra.mxu0 0.0
        %3221 = vmatprep.subr.mxu0 0.0
        %3222 = vmatpush2.msra.mxu0 0.0
        %3223 = vmatprep.mubr.f32.mxu0 0.0
        %3224 = vmatmul.mubr.f32.gmra.mxu0 %v2595
        %v3225 = vpop.f32.mrf.mxu0
        %v3226 = vadd.f32 0.0, %v3225
        %v3227 = vpop.f32.mrf.mxu0
        %3228 = vdwg.mxu0
        %s3229 = scalar_lea.vmem %s5, 160
        %v3230 = vld [vmem:[%s3229] sm:$0xff]
        %v3231 = vld [vmem:[%s3229 + $0x8] sm:$0xff]
        %v3232 = vld [vmem:[%s3229 + $0x10] sm:$0xff]
        %v3233 = vld [vmem:[%s3229 + $0x18] sm:$0xff]
        %3234 = vmatprep.subr.mxu0 0.0
        %3235 = vmatpush1.msra.mxu0 0.0
        %3236 = vmatprep.subr.mxu0 0.0
        %3237 = vmatpush1.msra.mxu0 0.0
        %3238 = vmatprep.subr.mxu0 0.0
        %3239 = vmatpush1.msra.mxu0 0.0
        %3240 = vmatprep.subr.mxu0 0.0
        %3241 = vmatpush1.msra.mxu0 0.0
        %3242 = vmatprep.subr.mxu0 0.0
        %3243 = vmatpush1.msra.mxu0 0.0
        %3244 = vmatprep.subr.mxu0 0.0
        %3245 = vmatpush1.msra.mxu0 0.0
        %3246 = vmatprep.subr.mxu0 0.0
        %3247 = vmatpush1.msra.mxu0 0.0
        %3248 = vmatprep.subr.mxu0 0.0
        %3249 = vmatpush1.msra.mxu0 0.0
        %3250 = vmatprep.subr.mxu0 0.0
        %3251 = vmatpush1.msra.mxu0 0.0
        %3252 = vmatprep.subr.mxu0 0.0
        %3253 = vmatpush1.msra.mxu0 0.0
        %3254 = vmatprep.subr.mxu0 0.0
        %3255 = vmatpush1.msra.mxu0 0.0
        %3256 = vmatprep.subr.mxu0 0.0
        %3257 = vmatpush1.msra.mxu0 0.0
        %3258 = vmatprep.subr.mxu0 0.0
        %3259 = vmatpush1.msra.mxu0 %v3233
        %3260 = vmatprep.subr.mxu0 0.0
        %3261 = vmatpush1.msra.mxu0 %v3232
        %3262 = vmatprep.subr.mxu0 0.0
        %3263 = vmatpush1.msra.mxu0 %v3231
        %3264 = vmatprep.subr.mxu0 0.0
        %3265 = vmatpush1.msra.mxu0 %v3230
        %3266 = vmatprep.subr.mxu0 0.0
        %3267 = vmatpush2.msra.mxu0 0.0
        %3268 = vmatprep.subr.mxu0 0.0
        %3269 = vmatpush2.msra.mxu0 0.0
        %3270 = vmatprep.subr.mxu0 0.0
        %3271 = vmatpush2.msra.mxu0 0.0
        %3272 = vmatprep.subr.mxu0 0.0
        %3273 = vmatpush2.msra.mxu0 0.0
        %3274 = vmatprep.subr.mxu0 0.0
        %3275 = vmatpush2.msra.mxu0 0.0
        %3276 = vmatprep.subr.mxu0 0.0
        %3277 = vmatpush2.msra.mxu0 0.0
        %3278 = vmatprep.subr.mxu0 0.0
        %3279 = vmatpush2.msra.mxu0 0.0
        %3280 = vmatprep.subr.mxu0 0.0
        %3281 = vmatpush2.msra.mxu0 0.0
        %3282 = vmatprep.subr.mxu0 0.0
        %3283 = vmatpush2.msra.mxu0 0.0
        %3284 = vmatprep.subr.mxu0 0.0
        %3285 = vmatpush2.msra.mxu0 0.0
        %3286 = vmatprep.subr.mxu0 0.0
        %3287 = vmatpush2.msra.mxu0 0.0
        %3288 = vmatprep.subr.mxu0 0.0
        %3289 = vmatpush2.msra.mxu0 0.0
        %3290 = vmatprep.subr.mxu0 0.0
        %3291 = vmatpush2.msra.mxu0 0.0
        %3292 = vmatprep.subr.mxu0 0.0
        %3293 = vmatpush2.msra.mxu0 0.0
        %3294 = vmatprep.subr.mxu0 0.0
        %3295 = vmatpush2.msra.mxu0 0.0
        %3296 = vmatprep.subr.mxu0 0.0
        %3297 = vmatpush2.msra.mxu0 0.0
        %3298 = vmatprep.mubr.f32.mxu0 0.0
        %3299 = vmatmul.mubr.f32.gmra.mxu0 %v2595
        %v3300 = vpop.f32.mrf.mxu0
        %v3301 = vadd.f32 0.0, %v3300
        %v3302 = vpop.f32.mrf.mxu0
        %3303 = vdwg.mxu0
        %v3305 = vsel %vm826, %v3151, 0
        %v3308 = vsel %vm826, %v3226, 0
        %3310 = vmatprep.subr.mxu0 0.0
        %3311 = vmatpush1.xpose.msra.mxu0 0.0
        %3312 = vmatprep.subr.mxu0 0.0
        %3313 = vmatpush1.xpose.msra.mxu0 0.0
        %3314 = vmatprep.subr.mxu0 0.0
        %3315 = vmatpush1.xpose.msra.mxu0 0.0
        %3316 = vmatprep.subr.mxu0 0.0
        %3317 = vmatpush1.xpose.msra.mxu0 0.0
        %3318 = vmatprep.subr.mxu0 0.0
        %3319 = vmatpush1.xpose.msra.mxu0 0.0
        %3320 = vmatprep.subr.mxu0 0.0
        %3321 = vmatpush1.xpose.msra.mxu0 0.0
        %3322 = vmatprep.subr.mxu0 0.0
        %3323 = vmatpush1.xpose.msra.mxu0 0.0
        %3324 = vmatprep.subr.mxu0 0.0
        %3325 = vmatpush1.xpose.msra.mxu0 0.0
        %3326 = vmatprep.subr.mxu0 0.0
        %3327 = vmatpush1.xpose.msra.mxu0 0.0
        %3328 = vmatprep.subr.mxu0 0.0
        %3329 = vmatpush1.xpose.msra.mxu0 0.0
        %3330 = vmatprep.subr.mxu0 0.0
        %3331 = vmatpush1.xpose.msra.mxu0 0.0
        %3332 = vmatprep.subr.mxu0 0.0
        %3333 = vmatpush1.xpose.msra.mxu0 0.0
        %3334 = vmatprep.subr.mxu0 0.0
        %3335 = vmatpush1.xpose.msra.mxu0 0.0
        %3336 = vmatprep.subr.mxu0 0.0
        %3337 = vmatpush1.xpose.msra.mxu0 0.0
        %3338 = vmatprep.subr.mxu0 0.0
        %3339 = vmatpush1.xpose.msra.mxu0 0.0
        %3340 = vmatprep.subr.mxu0 0.0
        %3341 = vmatpush1.xpose.msra.mxu0 %v3308
        %3342 = vmatprep.subr.mxu0 0.0
        %3343 = vmatpush2.xpose.msra.mxu0 0.0
        %3344 = vmatprep.subr.mxu0 0.0
        %3345 = vmatpush2.xpose.msra.mxu0 0.0
        %3346 = vmatprep.subr.mxu0 0.0
        %3347 = vmatpush2.xpose.msra.mxu0 0.0
        %3348 = vmatprep.subr.mxu0 0.0
        %3349 = vmatpush2.xpose.msra.mxu0 0.0
        %3350 = vmatprep.subr.mxu0 0.0
        %3351 = vmatpush2.xpose.msra.mxu0 0.0
        %3352 = vmatprep.subr.mxu0 0.0
        %3353 = vmatpush2.xpose.msra.mxu0 0.0
        %3354 = vmatprep.subr.mxu0 0.0
        %3355 = vmatpush2.xpose.msra.mxu0 0.0
        %3356 = vmatprep.subr.mxu0 0.0
        %3357 = vmatpush2.xpose.msra.mxu0 0.0
        %3358 = vmatprep.subr.mxu0 0.0
        %3359 = vmatpush2.xpose.msra.mxu0 0.0
        %3360 = vmatprep.subr.mxu0 0.0
        %3361 = vmatpush2.xpose.msra.mxu0 0.0
        %3362 = vmatprep.subr.mxu0 0.0
        %3363 = vmatpush2.xpose.msra.mxu0 0.0
        %3364 = vmatprep.subr.mxu0 0.0
        %3365 = vmatpush2.xpose.msra.mxu0 0.0
        %3366 = vmatprep.subr.mxu0 0.0
        %3367 = vmatpush2.xpose.msra.mxu0 0.0
        %3368 = vmatprep.subr.mxu0 0.0
        %3369 = vmatpush2.xpose.msra.mxu0 0.0
        %3370 = vmatprep.subr.mxu0 0.0
        %3371 = vmatpush2.xpose.msra.mxu0 0.0
        %3372 = vmatprep.subr.mxu0 0.0
        %3373 = vmatpush2.xpose.msra.mxu0 0.0
        %3374 = vmatprep.mubr.f32.mxu0 0.0
        %3375 = vmatmul.mubr.f32.gmra.mxu0 %v3305
        %v3376 = vpop.f32.mrf.mxu0
        %v3377 = vadd.f32 0.0, %v3376
        %v3378 = vpop.f32.mrf.mxu0
        %3379 = vdwg.mxu0
        %v3380 = vmul.f32 %v3377, 0.35355338
        %v3381 = vsel %vm826, %v3380, -inf
        %3382 = vmax.xlane.f32.xlu0 %v3381
        %v3383 = vpop.xlane.xlu0 %3382
        %v3384 = vsub.f32 %v3380, %v3383
        %v3385 = vmul.f32 %v3384, 1.442695
        %v3386 = vpow.pop %v3385
        %v3387 = vsel %vm826, %v3386, 0.0
        %3388 = vadd.xlane.f32.xlu0 %v3387
        %v3389 = vpop.xlane.xlu0 %3388
        %v3390 = vrcp.pop %v3389
        %v3391 = vmul.f32 %v3386, %v3390
        %v3393 = vsel %vm826, %v3391, 0
        %3395 = vmatprep.subr.mxu0 0.0
        %3396 = vmatpush1.msra.mxu0 0.0
        %3397 = vmatprep.subr.mxu0 0.0
        %3398 = vmatpush1.msra.mxu0 0.0
        %3399 = vmatprep.subr.mxu0 0.0
        %3400 = vmatpush1.msra.mxu0 0.0
        %3401 = vmatprep.subr.mxu0 0.0
        %3402 = vmatpush1.msra.mxu0 0.0
        %3403 = vmatprep.subr.mxu0 0.0
        %3404 = vmatpush1.msra.mxu0 0.0
        %3405 = vmatprep.subr.mxu0 0.0
        %3406 = vmatpush1.msra.mxu0 0.0
        %3407 = vmatprep.subr.mxu0 0.0
        %3408 = vmatpush1.msra.mxu0 0.0
        %3409 = vmatprep.subr.mxu0 0.0
        %3410 = vmatpush1.msra.mxu0 0.0
        %3411 = vmatprep.subr.mxu0 0.0
        %3412 = vmatpush1.msra.mxu0 0.0
        %3413 = vmatprep.subr.mxu0 0.0
        %3414 = vmatpush1.msra.mxu0 0.0
        %3415 = vmatprep.subr.mxu0 0.0
        %3416 = vmatpush1.msra.mxu0 0.0
        %3417 = vmatprep.subr.mxu0 0.0
        %3418 = vmatpush1.msra.mxu0 0.0
        %3419 = vmatprep.subr.mxu0 0.0
        %3420 = vmatpush1.msra.mxu0 0.0
        %3421 = vmatprep.subr.mxu0 0.0
        %3422 = vmatpush1.msra.mxu0 0.0
        %3423 = vmatprep.subr.mxu0 0.0
        %3424 = vmatpush1.msra.mxu0 0.0
        %3425 = vmatprep.subr.mxu0 0.0
        %3426 = vmatpush1.msra.mxu0 %v3301
        %3427 = vmatprep.subr.mxu0 0.0
        %3428 = vmatpush2.msra.mxu0 0.0
        %3429 = vmatprep.subr.mxu0 0.0
        %3430 = vmatpush2.msra.mxu0 0.0
        %3431 = vmatprep.subr.mxu0 0.0
        %3432 = vmatpush2.msra.mxu0 0.0
        %3433 = vmatprep.subr.mxu0 0.0
        %3434 = vmatpush2.msra.mxu0 0.0
        %3435 = vmatprep.subr.mxu0 0.0
        %3436 = vmatpush2.msra.mxu0 0.0
        %3437 = vmatprep.subr.mxu0 0.0
        %3438 = vmatpush2.msra.mxu0 0.0
        %3439 = vmatprep.subr.mxu0 0.0
        %3440 = vmatpush2.msra.mxu0 0.0
        %3441 = vmatprep.subr.mxu0 0.0
        %3442 = vmatpush2.msra.mxu0 0.0
        %3443 = vmatprep.subr.mxu0 0.0
        %3444 = vmatpush2.msra.mxu0 0.0
        %3445 = vmatprep.subr.mxu0 0.0
        %3446 = vmatpush2.msra.mxu0 0.0
        %3447 = vmatprep.subr.mxu0 0.0
        %3448 = vmatpush2.msra.mxu0 0.0
        %3449 = vmatprep.subr.mxu0 0.0
        %3450 = vmatpush2.msra.mxu0 0.0
        %3451 = vmatprep.subr.mxu0 0.0
        %3452 = vmatpush2.msra.mxu0 0.0
        %3453 = vmatprep.subr.mxu0 0.0
        %3454 = vmatpush2.msra.mxu0 0.0
        %3455 = vmatprep.subr.mxu0 0.0
        %3456 = vmatpush2.msra.mxu0 0.0
        %3457 = vmatprep.subr.mxu0 0.0
        %3458 = vmatpush2.msra.mxu0 0.0
        %3459 = vmatprep.mubr.f32.mxu0 0.0
        %3460 = vmatmul.mubr.f32.gmra.mxu0 %v3393
        %v3461 = vpop.f32.mrf.mxu0
        %v3462 = vadd.f32 0.0, %v3461
        %v3463 = vpop.f32.mrf.mxu0
        %3464 = vdwg.mxu0
        %s3465 = scalar_lea.vmem %s3, 192
        %v3466 = vld [vmem:[%s3465] sm:$0xff]
        %v3467 = vld [vmem:[%s3465 + $0x8] sm:$0xff]
        %v3468 = vld [vmem:[%s3465 + $0x10] sm:$0xff]
        %v3469 = vld [vmem:[%s3465 + $0x18] sm:$0xff]
        %3470 = vmatprep.subr.mxu0 0.0
        %3471 = vmatpush1.msra.mxu0 0.0
        %3472 = vmatprep.subr.mxu0 0.0
        %3473 = vmatpush1.msra.mxu0 0.0
        %3474 = vmatprep.subr.mxu0 0.0
        %3475 = vmatpush1.msra.mxu0 0.0
        %3476 = vmatprep.subr.mxu0 0.0
        %3477 = vmatpush1.msra.mxu0 0.0
        %3478 = vmatprep.subr.mxu0 0.0
        %3479 = vmatpush1.msra.mxu0 0.0
        %3480 = vmatprep.subr.mxu0 0.0
        %3481 = vmatpush1.msra.mxu0 0.0
        %3482 = vmatprep.subr.mxu0 0.0
        %3483 = vmatpush1.msra.mxu0 0.0
        %3484 = vmatprep.subr.mxu0 0.0
        %3485 = vmatpush1.msra.mxu0 0.0
        %3486 = vmatprep.subr.mxu0 0.0
        %3487 = vmatpush1.msra.mxu0 0.0
        %3488 = vmatprep.subr.mxu0 0.0
        %3489 = vmatpush1.msra.mxu0 0.0
        %3490 = vmatprep.subr.mxu0 0.0
        %3491 = vmatpush1.msra.mxu0 0.0
        %3492 = vmatprep.subr.mxu0 0.0
        %3493 = vmatpush1.msra.mxu0 0.0
        %3494 = vmatprep.subr.mxu0 0.0
        %3495 = vmatpush1.msra.mxu0 %v3469
        %3496 = vmatprep.subr.mxu0 0.0
        %3497 = vmatpush1.msra.mxu0 %v3468
        %3498 = vmatprep.subr.mxu0 0.0
        %3499 = vmatpush1.msra.mxu0 %v3467
        %3500 = vmatprep.subr.mxu0 0.0
        %3501 = vmatpush1.msra.mxu0 %v3466
        %3502 = vmatprep.subr.mxu0 0.0
        %3503 = vmatpush2.msra.mxu0 0.0
        %3504 = vmatprep.subr.mxu0 0.0
        %3505 = vmatpush2.msra.mxu0 0.0
        %3506 = vmatprep.subr.mxu0 0.0
        %3507 = vmatpush2.msra.mxu0 0.0
        %3508 = vmatprep.subr.mxu0 0.0
        %3509 = vmatpush2.msra.mxu0 0.0
        %3510 = vmatprep.subr.mxu0 0.0
        %3511 = vmatpush2.msra.mxu0 0.0
        %3512 = vmatprep.subr.mxu0 0.0
        %3513 = vmatpush2.msra.mxu0 0.0
        %3514 = vmatprep.subr.mxu0 0.0
        %3515 = vmatpush2.msra.mxu0 0.0
        %3516 = vmatprep.subr.mxu0 0.0
        %3517 = vmatpush2.msra.mxu0 0.0
        %3518 = vmatprep.subr.mxu0 0.0
        %3519 = vmatpush2.msra.mxu0 0.0
        %3520 = vmatprep.subr.mxu0 0.0
        %3521 = vmatpush2.msra.mxu0 0.0
        %3522 = vmatprep.subr.mxu0 0.0
        %3523 = vmatpush2.msra.mxu0 0.0
        %3524 = vmatprep.subr.mxu0 0.0
        %3525 = vmatpush2.msra.mxu0 0.0
        %3526 = vmatprep.subr.mxu0 0.0
        %3527 = vmatpush2.msra.mxu0 0.0
        %3528 = vmatprep.subr.mxu0 0.0
        %3529 = vmatpush2.msra.mxu0 0.0
        %3530 = vmatprep.subr.mxu0 0.0
        %3531 = vmatpush2.msra.mxu0 0.0
        %3532 = vmatprep.subr.mxu0 0.0
        %3533 = vmatpush2.msra.mxu0 0.0
        %3534 = vmatprep.mubr.f32.mxu0 0.0
        %3535 = vmatmul.mubr.f32.gmra.mxu0 %v2696
        %v3536 = vpop.f32.mrf.mxu0
        %v3537 = vadd.f32 0.0, %v3536
        %v3538 = vpop.f32.mrf.mxu0
        %3539 = vdwg.mxu0
        %s3540 = scalar_lea.vmem %s4, 192
        %v3541 = vld [vmem:[%s3540] sm:$0xff]
        %v3542 = vld [vmem:[%s3540 + $0x8] sm:$0xff]
        %v3543 = vld [vmem:[%s3540 + $0x10] sm:$0xff]
        %v3544 = vld [vmem:[%s3540 + $0x18] sm:$0xff]
        %3545 = vmatprep.subr.mxu0 0.0
        %3546 = vmatpush1.msra.mxu0 0.0
        %3547 = vmatprep.subr.mxu0 0.0
        %3548 = vmatpush1.msra.mxu0 0.0
        %3549 = vmatprep.subr.mxu0 0.0
        %3550 = vmatpush1.msra.mxu0 0.0
        %3551 = vmatprep.subr.mxu0 0.0
        %3552 = vmatpush1.msra.mxu0 0.0
        %3553 = vmatprep.subr.mxu0 0.0
        %3554 = vmatpush1.msra.mxu0 0.0
        %3555 = vmatprep.subr.mxu0 0.0
        %3556 = vmatpush1.msra.mxu0 0.0
        %3557 = vmatprep.subr.mxu0 0.0
        %3558 = vmatpush1.msra.mxu0 0.0
        %3559 = vmatprep.subr.mxu0 0.0
        %3560 = vmatpush1.msra.mxu0 0.0
        %3561 = vmatprep.subr.mxu0 0.0
        %3562 = vmatpush1.msra.mxu0 0.0
        %3563 = vmatprep.subr.mxu0 0.0
        %3564 = vmatpush1.msra.mxu0 0.0
        %3565 = vmatprep.subr.mxu0 0.0
        %3566 = vmatpush1.msra.mxu0 0.0
        %3567 = vmatprep.subr.mxu0 0.0
        %3568 = vmatpush1.msra.mxu0 0.0
        %3569 = vmatprep.subr.mxu0 0.0
        %3570 = vmatpush1.msra.mxu0 %v3544
        %3571 = vmatprep.subr.mxu0 0.0
        %3572 = vmatpush1.msra.mxu0 %v3543
        %3573 = vmatprep.subr.mxu0 0.0
        %3574 = vmatpush1.msra.mxu0 %v3542
        %3575 = vmatprep.subr.mxu0 0.0
        %3576 = vmatpush1.msra.mxu0 %v3541
        %3577 = vmatprep.subr.mxu0 0.0
        %3578 = vmatpush2.msra.mxu0 0.0
        %3579 = vmatprep.subr.mxu0 0.0
        %3580 = vmatpush2.msra.mxu0 0.0
        %3581 = vmatprep.subr.mxu0 0.0
        %3582 = vmatpush2.msra.mxu0 0.0
        %3583 = vmatprep.subr.mxu0 0.0
        %3584 = vmatpush2.msra.mxu0 0.0
        %3585 = vmatprep.subr.mxu0 0.0
        %3586 = vmatpush2.msra.mxu0 0.0
        %3587 = vmatprep.subr.mxu0 0.0
        %3588 = vmatpush2.msra.mxu0 0.0
        %3589 = vmatprep.subr.mxu0 0.0
        %3590 = vmatpush2.msra.mxu0 0.0
        %3591 = vmatprep.subr.mxu0 0.0
        %3592 = vmatpush2.msra.mxu0 0.0
        %3593 = vmatprep.subr.mxu0 0.0
        %3594 = vmatpush2.msra.mxu0 0.0
        %3595 = vmatprep.subr.mxu0 0.0
        %3596 = vmatpush2.msra.mxu0 0.0
        %3597 = vmatprep.subr.mxu0 0.0
        %3598 = vmatpush2.msra.mxu0 0.0
        %3599 = vmatprep.subr.mxu0 0.0
        %3600 = vmatpush2.msra.mxu0 0.0
        %3601 = vmatprep.subr.mxu0 0.0
        %3602 = vmatpush2.msra.mxu0 0.0
        %3603 = vmatprep.subr.mxu0 0.0
        %3604 = vmatpush2.msra.mxu0 0.0
        %3605 = vmatprep.subr.mxu0 0.0
        %3606 = vmatpush2.msra.mxu0 0.0
        %3607 = vmatprep.subr.mxu0 0.0
        %3608 = vmatpush2.msra.mxu0 0.0
        %3609 = vmatprep.mubr.f32.mxu0 0.0
        %3610 = vmatmul.mubr.f32.gmra.mxu0 %v2595
        %v3611 = vpop.f32.mrf.mxu0
        %v3612 = vadd.f32 0.0, %v3611
        %v3613 = vpop.f32.mrf.mxu0
        %3614 = vdwg.mxu0
        %s3615 = scalar_lea.vmem %s5, 192
        %v3616 = vld [vmem:[%s3615] sm:$0xff]
        %v3617 = vld [vmem:[%s3615 + $0x8] sm:$0xff]
        %v3618 = vld [vmem:[%s3615 + $0x10] sm:$0xff]
        %v3619 = vld [vmem:[%s3615 + $0x18] sm:$0xff]
        %3620 = vmatprep.subr.mxu0 0.0
        %3621 = vmatpush1.msra.mxu0 0.0
        %3622 = vmatprep.subr.mxu0 0.0
        %3623 = vmatpush1.msra.mxu0 0.0
        %3624 = vmatprep.subr.mxu0 0.0
        %3625 = vmatpush1.msra.mxu0 0.0
        %3626 = vmatprep.subr.mxu0 0.0
        %3627 = vmatpush1.msra.mxu0 0.0
        %3628 = vmatprep.subr.mxu0 0.0
        %3629 = vmatpush1.msra.mxu0 0.0
        %3630 = vmatprep.subr.mxu0 0.0
        %3631 = vmatpush1.msra.mxu0 0.0
        %3632 = vmatprep.subr.mxu0 0.0
        %3633 = vmatpush1.msra.mxu0 0.0
        %3634 = vmatprep.subr.mxu0 0.0
        %3635 = vmatpush1.msra.mxu0 0.0
        %3636 = vmatprep.subr.mxu0 0.0
        %3637 = vmatpush1.msra.mxu0 0.0
        %3638 = vmatprep.subr.mxu0 0.0
        %3639 = vmatpush1.msra.mxu0 0.0
        %3640 = vmatprep.subr.mxu0 0.0
        %3641 = vmatpush1.msra.mxu0 0.0
        %3642 = vmatprep.subr.mxu0 0.0
        %3643 = vmatpush1.msra.mxu0 0.0
        %3644 = vmatprep.subr.mxu0 0.0
        %3645 = vmatpush1.msra.mxu0 %v3619
        %3646 = vmatprep.subr.mxu0 0.0
        %3647 = vmatpush1.msra.mxu0 %v3618
        %3648 = vmatprep.subr.mxu0 0.0
        %3649 = vmatpush1.msra.mxu0 %v3617
        %3650 = vmatprep.subr.mxu0 0.0
        %3651 = vmatpush1.msra.mxu0 %v3616
        %3652 = vmatprep.subr.mxu0 0.0
        %3653 = vmatpush2.msra.mxu0 0.0
        %3654 = vmatprep.subr.mxu0 0.0
        %3655 = vmatpush2.msra.mxu0 0.0
        %3656 = vmatprep.subr.mxu0 0.0
        %3657 = vmatpush2.msra.mxu0 0.0
        %3658 = vmatprep.subr.mxu0 0.0
        %3659 = vmatpush2.msra.mxu0 0.0
        %3660 = vmatprep.subr.mxu0 0.0
        %3661 = vmatpush2.msra.mxu0 0.0
        %3662 = vmatprep.subr.mxu0 0.0
        %3663 = vmatpush2.msra.mxu0 0.0
        %3664 = vmatprep.subr.mxu0 0.0
        %3665 = vmatpush2.msra.mxu0 0.0
        %3666 = vmatprep.subr.mxu0 0.0
        %3667 = vmatpush2.msra.mxu0 0.0
        %3668 = vmatprep.subr.mxu0 0.0
        %3669 = vmatpush2.msra.mxu0 0.0
        %3670 = vmatprep.subr.mxu0 0.0
        %3671 = vmatpush2.msra.mxu0 0.0
        %3672 = vmatprep.subr.mxu0 0.0
        %3673 = vmatpush2.msra.mxu0 0.0
        %3674 = vmatprep.subr.mxu0 0.0
        %3675 = vmatpush2.msra.mxu0 0.0
        %3676 = vmatprep.subr.mxu0 0.0
        %3677 = vmatpush2.msra.mxu0 0.0
        %3678 = vmatprep.subr.mxu0 0.0
        %3679 = vmatpush2.msra.mxu0 0.0
        %3680 = vmatprep.subr.mxu0 0.0
        %3681 = vmatpush2.msra.mxu0 0.0
        %3682 = vmatprep.subr.mxu0 0.0
        %3683 = vmatpush2.msra.mxu0 0.0
        %3684 = vmatprep.mubr.f32.mxu0 0.0
        %3685 = vmatmul.mubr.f32.gmra.mxu0 %v2595
        %v3686 = vpop.f32.mrf.mxu0
        %v3687 = vadd.f32 0.0, %v3686
        %v3688 = vpop.f32.mrf.mxu0
        %3689 = vdwg.mxu0
        %v3691 = vsel %vm826, %v3537, 0
        %v3694 = vsel %vm826, %v3612, 0
        %3696 = vmatprep.subr.mxu0 0.0
        %3697 = vmatpush1.xpose.msra.mxu0 0.0
        %3698 = vmatprep.subr.mxu0 0.0
        %3699 = vmatpush1.xpose.msra.mxu0 0.0
        %3700 = vmatprep.subr.mxu0 0.0
        %3701 = vmatpush1.xpose.msra.mxu0 0.0
        %3702 = vmatprep.subr.mxu0 0.0
        %3703 = vmatpush1.xpose.msra.mxu0 0.0
        %3704 = vmatprep.subr.mxu0 0.0
        %3705 = vmatpush1.xpose.msra.mxu0 0.0
        %3706 = vmatprep.subr.mxu0 0.0
        %3707 = vmatpush1.xpose.msra.mxu0 0.0
        %3708 = vmatprep.subr.mxu0 0.0
        %3709 = vmatpush1.xpose.msra.mxu0 0.0
        %3710 = vmatprep.subr.mxu0 0.0
        %3711 = vmatpush1.xpose.msra.mxu0 0.0
        %3712 = vmatprep.subr.mxu0 0.0
        %3713 = vmatpush1.xpose.msra.mxu0 0.0
        %3714 = vmatprep.subr.mxu0 0.0
        %3715 = vmatpush1.xpose.msra.mxu0 0.0
        %3716 = vmatprep.subr.mxu0 0.0
        %3717 = vmatpush1.xpose.msra.mxu0 0.0
        %3718 = vmatprep.subr.mxu0 0.0
        %3719 = vmatpush1.xpose.msra.mxu0 0.0
        %3720 = vmatprep.subr.mxu0 0.0
        %3721 = vmatpush1.xpose.msra.mxu0 0.0
        %3722 = vmatprep.subr.mxu0 0.0
        %3723 = vmatpush1.xpose.msra.mxu0 0.0
        %3724 = vmatprep.subr.mxu0 0.0
        %3725 = vmatpush1.xpose.msra.mxu0 0.0
        %3726 = vmatprep.subr.mxu0 0.0
        %3727 = vmatpush1.xpose.msra.mxu0 %v3694
        %3728 = vmatprep.subr.mxu0 0.0
        %3729 = vmatpush2.xpose.msra.mxu0 0.0
        %3730 = vmatprep.subr.mxu0 0.0
        %3731 = vmatpush2.xpose.msra.mxu0 0.0
        %3732 = vmatprep.subr.mxu0 0.0
        %3733 = vmatpush2.xpose.msra.mxu0 0.0
        %3734 = vmatprep.subr.mxu0 0.0
        %3735 = vmatpush2.xpose.msra.mxu0 0.0
        %3736 = vmatprep.subr.mxu0 0.0
        %3737 = vmatpush2.xpose.msra.mxu0 0.0
        %3738 = vmatprep.subr.mxu0 0.0
        %3739 = vmatpush2.xpose.msra.mxu0 0.0
        %3740 = vmatprep.subr.mxu0 0.0
        %3741 = vmatpush2.xpose.msra.mxu0 0.0
        %3742 = vmatprep.subr.mxu0 0.0
        %3743 = vmatpush2.xpose.msra.mxu0 0.0
        %3744 = vmatprep.subr.mxu0 0.0
        %3745 = vmatpush2.xpose.msra.mxu0 0.0
        %3746 = vmatprep.subr.mxu0 0.0
        %3747 = vmatpush2.xpose.msra.mxu0 0.0
        %3748 = vmatprep.subr.mxu0 0.0
        %3749 = vmatpush2.xpose.msra.mxu0 0.0
        %3750 = vmatprep.subr.mxu0 0.0
        %3751 = vmatpush2.xpose.msra.mxu0 0.0
        %3752 = vmatprep.subr.mxu0 0.0
        %3753 = vmatpush2.xpose.msra.mxu0 0.0
        %3754 = vmatprep.subr.mxu0 0.0
        %3755 = vmatpush2.xpose.msra.mxu0 0.0
        %3756 = vmatprep.subr.mxu0 0.0
        %3757 = vmatpush2.xpose.msra.mxu0 0.0
        %3758 = vmatprep.subr.mxu0 0.0
        %3759 = vmatpush2.xpose.msra.mxu0 0.0
        %3760 = vmatprep.mubr.f32.mxu0 0.0
        %3761 = vmatmul.mubr.f32.gmra.mxu0 %v3691
        %v3762 = vpop.f32.mrf.mxu0
        %v3763 = vadd.f32 0.0, %v3762
        %v3764 = vpop.f32.mrf.mxu0
        %3765 = vdwg.mxu0
        %v3766 = vmul.f32 %v3763, 0.35355338
        %v3767 = vsel %vm826, %v3766, -inf
        %3768 = vmax.xlane.f32.xlu0 %v3767
        %v3769 = vpop.xlane.xlu0 %3768
        %v3770 = vsub.f32 %v3766, %v3769
        %v3771 = vmul.f32 %v3770, 1.442695
        %v3772 = vpow.pop %v3771
        %v3773 = vsel %vm826, %v3772, 0.0
        %3774 = vadd.xlane.f32.xlu0 %v3773
        %v3775 = vpop.xlane.xlu0 %3774
        %v3776 = vrcp.pop %v3775
        %v3777 = vmul.f32 %v3772, %v3776
        %v3779 = vsel %vm826, %v3777, 0
        %3781 = vmatprep.subr.mxu0 0.0
        %3782 = vmatpush1.msra.mxu0 0.0
        %3783 = vmatprep.subr.mxu0 0.0
        %3784 = vmatpush1.msra.mxu0 0.0
        %3785 = vmatprep.subr.mxu0 0.0
        %3786 = vmatpush1.msra.mxu0 0.0
        %3787 = vmatprep.subr.mxu0 0.0
        %3788 = vmatpush1.msra.mxu0 0.0
        %3789 = vmatprep.subr.mxu0 0.0
        %3790 = vmatpush1.msra.mxu0 0.0
        %3791 = vmatprep.subr.mxu0 0.0
        %3792 = vmatpush1.msra.mxu0 0.0
        %3793 = vmatprep.subr.mxu0 0.0
        %3794 = vmatpush1.msra.mxu0 0.0
        %3795 = vmatprep.subr.mxu0 0.0
        %3796 = vmatpush1.msra.mxu0 0.0
        %3797 = vmatprep.subr.mxu0 0.0
        %3798 = vmatpush1.msra.mxu0 0.0
        %3799 = vmatprep.subr.mxu0 0.0
        %3800 = vmatpush1.msra.mxu0 0.0
        %3801 = vmatprep.subr.mxu0 0.0
        %3802 = vmatpush1.msra.mxu0 0.0
        %3803 = vmatprep.subr.mxu0 0.0
        %3804 = vmatpush1.msra.mxu0 0.0
        %3805 = vmatprep.subr.mxu0 0.0
        %3806 = vmatpush1.msra.mxu0 0.0
        %3807 = vmatprep.subr.mxu0 0.0
        %3808 = vmatpush1.msra.mxu0 0.0
        %3809 = vmatprep.subr.mxu0 0.0
        %3810 = vmatpush1.msra.mxu0 0.0
        %3811 = vmatprep.subr.mxu0 0.0
        %3812 = vmatpush1.msra.mxu0 %v3687
        %3813 = vmatprep.subr.mxu0 0.0
        %3814 = vmatpush2.msra.mxu0 0.0
        %3815 = vmatprep.subr.mxu0 0.0
        %3816 = vmatpush2.msra.mxu0 0.0
        %3817 = vmatprep.subr.mxu0 0.0
        %3818 = vmatpush2.msra.mxu0 0.0
        %3819 = vmatprep.subr.mxu0 0.0
        %3820 = vmatpush2.msra.mxu0 0.0
        %3821 = vmatprep.subr.mxu0 0.0
        %3822 = vmatpush2.msra.mxu0 0.0
        %3823 = vmatprep.subr.mxu0 0.0
        %3824 = vmatpush2.msra.mxu0 0.0
        %3825 = vmatprep.subr.mxu0 0.0
        %3826 = vmatpush2.msra.mxu0 0.0
        %3827 = vmatprep.subr.mxu0 0.0
        %3828 = vmatpush2.msra.mxu0 0.0
        %3829 = vmatprep.subr.mxu0 0.0
        %3830 = vmatpush2.msra.mxu0 0.0
        %3831 = vmatprep.subr.mxu0 0.0
        %3832 = vmatpush2.msra.mxu0 0.0
        %3833 = vmatprep.subr.mxu0 0.0
        %3834 = vmatpush2.msra.mxu0 0.0
        %3835 = vmatprep.subr.mxu0 0.0
        %3836 = vmatpush2.msra.mxu0 0.0
        %3837 = vmatprep.subr.mxu0 0.0
        %3838 = vmatpush2.msra.mxu0 0.0
        %3839 = vmatprep.subr.mxu0 0.0
        %3840 = vmatpush2.msra.mxu0 0.0
        %3841 = vmatprep.subr.mxu0 0.0
        %3842 = vmatpush2.msra.mxu0 0.0
        %3843 = vmatprep.subr.mxu0 0.0
        %3844 = vmatpush2.msra.mxu0 0.0
        %3845 = vmatprep.mubr.f32.mxu0 0.0
        %3846 = vmatmul.mubr.f32.gmra.mxu0 %v3779
        %v3847 = vpop.f32.mrf.mxu0
        %v3848 = vadd.f32 0.0, %v3847
        %v3849 = vpop.f32.mrf.mxu0
        %3850 = vdwg.mxu0
        %s3851 = scalar_lea.vmem %s3, 224
        %v3852 = vld [vmem:[%s3851] sm:$0xff]
        %v3853 = vld [vmem:[%s3851 + $0x8] sm:$0xff]
        %v3854 = vld [vmem:[%s3851 + $0x10] sm:$0xff]
        %v3855 = vld [vmem:[%s3851 + $0x18] sm:$0xff]
        %3856 = vmatprep.subr.mxu0 0.0
        %3857 = vmatpush1.msra.mxu0 0.0
        %3858 = vmatprep.subr.mxu0 0.0
        %3859 = vmatpush1.msra.mxu0 0.0
        %3860 = vmatprep.subr.mxu0 0.0
        %3861 = vmatpush1.msra.mxu0 0.0
        %3862 = vmatprep.subr.mxu0 0.0
        %3863 = vmatpush1.msra.mxu0 0.0
        %3864 = vmatprep.subr.mxu0 0.0
        %3865 = vmatpush1.msra.mxu0 0.0
        %3866 = vmatprep.subr.mxu0 0.0
        %3867 = vmatpush1.msra.mxu0 0.0
        %3868 = vmatprep.subr.mxu0 0.0
        %3869 = vmatpush1.msra.mxu0 0.0
        %3870 = vmatprep.subr.mxu0 0.0
        %3871 = vmatpush1.msra.mxu0 0.0
        %3872 = vmatprep.subr.mxu0 0.0
        %3873 = vmatpush1.msra.mxu0 0.0
        %3874 = vmatprep.subr.mxu0 0.0
        %3875 = vmatpush1.msra.mxu0 0.0
        %3876 = vmatprep.subr.mxu0 0.0
        %3877 = vmatpush1.msra.mxu0 0.0
        %3878 = vmatprep.subr.mxu0 0.0
        %3879 = vmatpush1.msra.mxu0 0.0
        %3880 = vmatprep.subr.mxu0 0.0
        %3881 = vmatpush1.msra.mxu0 %v3855
        %3882 = vmatprep.subr.mxu0 0.0
        %3883 = vmatpush1.msra.mxu0 %v3854
        %3884 = vmatprep.subr.mxu0 0.0
        %3885 = vmatpush1.msra.mxu0 %v3853
        %3886 = vmatprep.subr.mxu0 0.0
        %3887 = vmatpush1.msra.mxu0 %v3852
        %3888 = vmatprep.subr.mxu0 0.0
        %3889 = vmatpush2.msra.mxu0 0.0
        %3890 = vmatprep.subr.mxu0 0.0
        %3891 = vmatpush2.msra.mxu0 0.0
        %3892 = vmatprep.subr.mxu0 0.0
        %3893 = vmatpush2.msra.mxu0 0.0
        %3894 = vmatprep.subr.mxu0 0.0
        %3895 = vmatpush2.msra.mxu0 0.0
        %3896 = vmatprep.subr.mxu0 0.0
        %3897 = vmatpush2.msra.mxu0 0.0
        %3898 = vmatprep.subr.mxu0 0.0
        %3899 = vmatpush2.msra.mxu0 0.0
        %3900 = vmatprep.subr.mxu0 0.0
        %3901 = vmatpush2.msra.mxu0 0.0
        %3902 = vmatprep.subr.mxu0 0.0
        %3903 = vmatpush2.msra.mxu0 0.0
        %3904 = vmatprep.subr.mxu0 0.0
        %3905 = vmatpush2.msra.mxu0 0.0
        %3906 = vmatprep.subr.mxu0 0.0
        %3907 = vmatpush2.msra.mxu0 0.0
        %3908 = vmatprep.subr.mxu0 0.0
        %3909 = vmatpush2.msra.mxu0 0.0
        %3910 = vmatprep.subr.mxu0 0.0
        %3911 = vmatpush2.msra.mxu0 0.0
        %3912 = vmatprep.subr.mxu0 0.0
        %3913 = vmatpush2.msra.mxu0 0.0
        %3914 = vmatprep.subr.mxu0 0.0
        %3915 = vmatpush2.msra.mxu0 0.0
        %3916 = vmatprep.subr.mxu0 0.0
        %3917 = vmatpush2.msra.mxu0 0.0
        %3918 = vmatprep.subr.mxu0 0.0
        %3919 = vmatpush2.msra.mxu0 0.0
        %3920 = vmatprep.mubr.f32.mxu0 0.0
        %3921 = vmatmul.mubr.f32.gmra.mxu0 %v2696
        %v3922 = vpop.f32.mrf.mxu0
        %v3923 = vadd.f32 0.0, %v3922
        %v3924 = vpop.f32.mrf.mxu0
        %3925 = vdwg.mxu0
        %s3926 = scalar_lea.vmem %s4, 224
        %v3927 = vld [vmem:[%s3926] sm:$0xff]
        %v3928 = vld [vmem:[%s3926 + $0x8] sm:$0xff]
        %v3929 = vld [vmem:[%s3926 + $0x10] sm:$0xff]
        %v3930 = vld [vmem:[%s3926 + $0x18] sm:$0xff]
        %3931 = vmatprep.subr.mxu0 0.0
        %3932 = vmatpush1.msra.mxu0 0.0
        %3933 = vmatprep.subr.mxu0 0.0
        %3934 = vmatpush1.msra.mxu0 0.0
        %3935 = vmatprep.subr.mxu0 0.0
        %3936 = vmatpush1.msra.mxu0 0.0
        %3937 = vmatprep.subr.mxu0 0.0
        %3938 = vmatpush1.msra.mxu0 0.0
        %3939 = vmatprep.subr.mxu0 0.0
        %3940 = vmatpush1.msra.mxu0 0.0
        %3941 = vmatprep.subr.mxu0 0.0
        %3942 = vmatpush1.msra.mxu0 0.0
        %3943 = vmatprep.subr.mxu0 0.0
        %3944 = vmatpush1.msra.mxu0 0.0
        %3945 = vmatprep.subr.mxu0 0.0
        %3946 = vmatpush1.msra.mxu0 0.0
        %3947 = vmatprep.subr.mxu0 0.0
        %3948 = vmatpush1.msra.mxu0 0.0
        %3949 = vmatprep.subr.mxu0 0.0
        %3950 = vmatpush1.msra.mxu0 0.0
        %3951 = vmatprep.subr.mxu0 0.0
        %3952 = vmatpush1.msra.mxu0 0.0
        %3953 = vmatprep.subr.mxu0 0.0
        %3954 = vmatpush1.msra.mxu0 0.0
        %3955 = vmatprep.subr.mxu0 0.0
        %3956 = vmatpush1.msra.mxu0 %v3930
        %3957 = vmatprep.subr.mxu0 0.0
        %3958 = vmatpush1.msra.mxu0 %v3929
        %3959 = vmatprep.subr.mxu0 0.0
        %3960 = vmatpush1.msra.mxu0 %v3928
        %3961 = vmatprep.subr.mxu0 0.0
        %3962 = vmatpush1.msra.mxu0 %v3927
        %3963 = vmatprep.subr.mxu0 0.0
        %3964 = vmatpush2.msra.mxu0 0.0
        %3965 = vmatprep.subr.mxu0 0.0
        %3966 = vmatpush2.msra.mxu0 0.0
        %3967 = vmatprep.subr.mxu0 0.0
        %3968 = vmatpush2.msra.mxu0 0.0
        %3969 = vmatprep.subr.mxu0 0.0
        %3970 = vmatpush2.msra.mxu0 0.0
        %3971 = vmatprep.subr.mxu0 0.0
        %3972 = vmatpush2.msra.mxu0 0.0
        %3973 = vmatprep.subr.mxu0 0.0
        %3974 = vmatpush2.msra.mxu0 0.0
        %3975 = vmatprep.subr.mxu0 0.0
        %3976 = vmatpush2.msra.mxu0 0.0
        %3977 = vmatprep.subr.mxu0 0.0
        %3978 = vmatpush2.msra.mxu0 0.0
        %3979 = vmatprep.subr.mxu0 0.0
        %3980 = vmatpush2.msra.mxu0 0.0
        %3981 = vmatprep.subr.mxu0 0.0
        %3982 = vmatpush2.msra.mxu0 0.0
        %3983 = vmatprep.subr.mxu0 0.0
        %3984 = vmatpush2.msra.mxu0 0.0
        %3985 = vmatprep.subr.mxu0 0.0
        %3986 = vmatpush2.msra.mxu0 0.0
        %3987 = vmatprep.subr.mxu0 0.0
        %3988 = vmatpush2.msra.mxu0 0.0
        %3989 = vmatprep.subr.mxu0 0.0
        %3990 = vmatpush2.msra.mxu0 0.0
        %3991 = vmatprep.subr.mxu0 0.0
        %3992 = vmatpush2.msra.mxu0 0.0
        %3993 = vmatprep.subr.mxu0 0.0
        %3994 = vmatpush2.msra.mxu0 0.0
        %3995 = vmatprep.mubr.f32.mxu0 0.0
        %3996 = vmatmul.mubr.f32.gmra.mxu0 %v2595
        %v3997 = vpop.f32.mrf.mxu0
        %v3998 = vadd.f32 0.0, %v3997
        %v3999 = vpop.f32.mrf.mxu0
        %4000 = vdwg.mxu0
        %s4001 = scalar_lea.vmem %s5, 224
        %v4002 = vld [vmem:[%s4001] sm:$0xff]
        %v4003 = vld [vmem:[%s4001 + $0x8] sm:$0xff]
        %v4004 = vld [vmem:[%s4001 + $0x10] sm:$0xff]
        %v4005 = vld [vmem:[%s4001 + $0x18] sm:$0xff]
        %4006 = vmatprep.subr.mxu0 0.0
        %4007 = vmatpush1.msra.mxu0 0.0
        %4008 = vmatprep.subr.mxu0 0.0
        %4009 = vmatpush1.msra.mxu0 0.0
        %4010 = vmatprep.subr.mxu0 0.0
        %4011 = vmatpush1.msra.mxu0 0.0
        %4012 = vmatprep.subr.mxu0 0.0
        %4013 = vmatpush1.msra.mxu0 0.0
        %4014 = vmatprep.subr.mxu0 0.0
        %4015 = vmatpush1.msra.mxu0 0.0
        %4016 = vmatprep.subr.mxu0 0.0
        %4017 = vmatpush1.msra.mxu0 0.0
        %4018 = vmatprep.subr.mxu0 0.0
        %4019 = vmatpush1.msra.mxu0 0.0
        %4020 = vmatprep.subr.mxu0 0.0
        %4021 = vmatpush1.msra.mxu0 0.0
        %4022 = vmatprep.subr.mxu0 0.0
        %4023 = vmatpush1.msra.mxu0 0.0
        %4024 = vmatprep.subr.mxu0 0.0
        %4025 = vmatpush1.msra.mxu0 0.0
        %4026 = vmatprep.subr.mxu0 0.0
        %4027 = vmatpush1.msra.mxu0 0.0
        %4028 = vmatprep.subr.mxu0 0.0
        %4029 = vmatpush1.msra.mxu0 0.0
        %4030 = vmatprep.subr.mxu0 0.0
        %4031 = vmatpush1.msra.mxu0 %v4005
        %4032 = vmatprep.subr.mxu0 0.0
        %4033 = vmatpush1.msra.mxu0 %v4004
        %4034 = vmatprep.subr.mxu0 0.0
        %4035 = vmatpush1.msra.mxu0 %v4003
        %4036 = vmatprep.subr.mxu0 0.0
        %4037 = vmatpush1.msra.mxu0 %v4002
        %4038 = vmatprep.subr.mxu0 0.0
        %4039 = vmatpush2.msra.mxu0 0.0
        %4040 = vmatprep.subr.mxu0 0.0
        %4041 = vmatpush2.msra.mxu0 0.0
        %4042 = vmatprep.subr.mxu0 0.0
        %4043 = vmatpush2.msra.mxu0 0.0
        %4044 = vmatprep.subr.mxu0 0.0
        %4045 = vmatpush2.msra.mxu0 0.0
        %4046 = vmatprep.subr.mxu0 0.0
        %4047 = vmatpush2.msra.mxu0 0.0
        %4048 = vmatprep.subr.mxu0 0.0
        %4049 = vmatpush2.msra.mxu0 0.0
        %4050 = vmatprep.subr.mxu0 0.0
        %4051 = vmatpush2.msra.mxu0 0.0
        %4052 = vmatprep.subr.mxu0 0.0
        %4053 = vmatpush2.msra.mxu0 0.0
        %4054 = vmatprep.subr.mxu0 0.0
        %4055 = vmatpush2.msra.mxu0 0.0
        %4056 = vmatprep.subr.mxu0 0.0
        %4057 = vmatpush2.msra.mxu0 0.0
        %4058 = vmatprep.subr.mxu0 0.0
        %4059 = vmatpush2.msra.mxu0 0.0
        %4060 = vmatprep.subr.mxu0 0.0
        %4061 = vmatpush2.msra.mxu0 0.0
        %4062 = vmatprep.subr.mxu0 0.0
        %4063 = vmatpush2.msra.mxu0 0.0
        %4064 = vmatprep.subr.mxu0 0.0
        %4065 = vmatpush2.msra.mxu0 0.0
        %4066 = vmatprep.subr.mxu0 0.0
        %4067 = vmatpush2.msra.mxu0 0.0
        %4068 = vmatprep.subr.mxu0 0.0
        %4069 = vmatpush2.msra.mxu0 0.0
        %4070 = vmatprep.mubr.f32.mxu0 0.0
        %4071 = vmatmul.mubr.f32.gmra.mxu0 %v2595
        %v4072 = vpop.f32.mrf.mxu0
        %v4073 = vadd.f32 0.0, %v4072
        %v4074 = vpop.f32.mrf.mxu0
        %4075 = vdwg.mxu0
        %v4077 = vsel %vm826, %v3923, 0
        %v4080 = vsel %vm826, %v3998, 0
        %4082 = vmatprep.subr.mxu0 0.0
        %4083 = vmatpush1.xpose.msra.mxu0 0.0
        %4084 = vmatprep.subr.mxu0 0.0
        %4085 = vmatpush1.xpose.msra.mxu0 0.0
        %4086 = vmatprep.subr.mxu0 0.0
        %4087 = vmatpush1.xpose.msra.mxu0 0.0
        %4088 = vmatprep.subr.mxu0 0.0
        %4089 = vmatpush1.xpose.msra.mxu0 0.0
        %4090 = vmatprep.subr.mxu0 0.0
        %4091 = vmatpush1.xpose.msra.mxu0 0.0
        %4092 = vmatprep.subr.mxu0 0.0
        %4093 = vmatpush1.xpose.msra.mxu0 0.0
        %4094 = vmatprep.subr.mxu0 0.0
        %4095 = vmatpush1.xpose.msra.mxu0 0.0
        %4096 = vmatprep.subr.mxu0 0.0
        %4097 = vmatpush1.xpose.msra.mxu0 0.0
        %4098 = vmatprep.subr.mxu0 0.0
        %4099 = vmatpush1.xpose.msra.mxu0 0.0
        %4100 = vmatprep.subr.mxu0 0.0
        %4101 = vmatpush1.xpose.msra.mxu0 0.0
        %4102 = vmatprep.subr.mxu0 0.0
        %4103 = vmatpush1.xpose.msra.mxu0 0.0
        %4104 = vmatprep.subr.mxu0 0.0
        %4105 = vmatpush1.xpose.msra.mxu0 0.0
        %4106 = vmatprep.subr.mxu0 0.0
        %4107 = vmatpush1.xpose.msra.mxu0 0.0
        %4108 = vmatprep.subr.mxu0 0.0
        %4109 = vmatpush1.xpose.msra.mxu0 0.0
        %4110 = vmatprep.subr.mxu0 0.0
        %4111 = vmatpush1.xpose.msra.mxu0 0.0
        %4112 = vmatprep.subr.mxu0 0.0
        %4113 = vmatpush1.xpose.msra.mxu0 %v4080
        %4114 = vmatprep.subr.mxu0 0.0
        %4115 = vmatpush2.xpose.msra.mxu0 0.0
        %4116 = vmatprep.subr.mxu0 0.0
        %4117 = vmatpush2.xpose.msra.mxu0 0.0
        %4118 = vmatprep.subr.mxu0 0.0
        %4119 = vmatpush2.xpose.msra.mxu0 0.0
        %4120 = vmatprep.subr.mxu0 0.0
        %4121 = vmatpush2.xpose.msra.mxu0 0.0
        %4122 = vmatprep.subr.mxu0 0.0
        %4123 = vmatpush2.xpose.msra.mxu0 0.0
        %4124 = vmatprep.subr.mxu0 0.0
        %4125 = vmatpush2.xpose.msra.mxu0 0.0
        %4126 = vmatprep.subr.mxu0 0.0
        %4127 = vmatpush2.xpose.msra.mxu0 0.0
        %4128 = vmatprep.subr.mxu0 0.0
        %4129 = vmatpush2.xpose.msra.mxu0 0.0
        %4130 = vmatprep.subr.mxu0 0.0
        %4131 = vmatpush2.xpose.msra.mxu0 0.0
        %4132 = vmatprep.subr.mxu0 0.0
        %4133 = vmatpush2.xpose.msra.mxu0 0.0
        %4134 = vmatprep.subr.mxu0 0.0
        %4135 = vmatpush2.xpose.msra.mxu0 0.0
        %4136 = vmatprep.subr.mxu0 0.0
        %4137 = vmatpush2.xpose.msra.mxu0 0.0
        %4138 = vmatprep.subr.mxu0 0.0
        %4139 = vmatpush2.xpose.msra.mxu0 0.0
        %4140 = vmatprep.subr.mxu0 0.0
        %4141 = vmatpush2.xpose.msra.mxu0 0.0
        %4142 = vmatprep.subr.mxu0 0.0
        %4143 = vmatpush2.xpose.msra.mxu0 0.0
        %4144 = vmatprep.subr.mxu0 0.0
        %4145 = vmatpush2.xpose.msra.mxu0 0.0
        %4146 = vmatprep.mubr.f32.mxu0 0.0
        %4147 = vmatmul.mubr.f32.gmra.mxu0 %v4077
        %v4148 = vpop.f32.mrf.mxu0
        %v4149 = vadd.f32 0.0, %v4148
        %v4150 = vpop.f32.mrf.mxu0
        %4151 = vdwg.mxu0
        %v4152 = vmul.f32 %v4149, 0.35355338
        %v4153 = vsel %vm826, %v4152, -inf
        %4154 = vmax.xlane.f32.xlu0 %v4153
        %v4155 = vpop.xlane.xlu0 %4154
        %v4156 = vsub.f32 %v4152, %v4155
        %v4157 = vmul.f32 %v4156, 1.442695
        %v4158 = vpow.pop %v4157
        %v4159 = vsel %vm826, %v4158, 0.0
        %4160 = vadd.xlane.f32.xlu0 %v4159
        %v4161 = vpop.xlane.xlu0 %4160
        %v4162 = vrcp.pop %v4161
        %v4163 = vmul.f32 %v4158, %v4162
        %v4165 = vsel %vm826, %v4163, 0
        %4167 = vmatprep.subr.mxu0 0.0
        %4168 = vmatpush1.msra.mxu0 0.0
        %4169 = vmatprep.subr.mxu0 0.0
        %4170 = vmatpush1.msra.mxu0 0.0
        %4171 = vmatprep.subr.mxu0 0.0
        %4172 = vmatpush1.msra.mxu0 0.0
        %4173 = vmatprep.subr.mxu0 0.0
        %4174 = vmatpush1.msra.mxu0 0.0
        %4175 = vmatprep.subr.mxu0 0.0
        %4176 = vmatpush1.msra.mxu0 0.0
        %4177 = vmatprep.subr.mxu0 0.0
        %4178 = vmatpush1.msra.mxu0 0.0
        %4179 = vmatprep.subr.mxu0 0.0
        %4180 = vmatpush1.msra.mxu0 0.0
        %4181 = vmatprep.subr.mxu0 0.0
        %4182 = vmatpush1.msra.mxu0 0.0
        %4183 = vmatprep.subr.mxu0 0.0
        %4184 = vmatpush1.msra.mxu0 0.0
        %4185 = vmatprep.subr.mxu0 0.0
        %4186 = vmatpush1.msra.mxu0 0.0
        %4187 = vmatprep.subr.mxu0 0.0
        %4188 = vmatpush1.msra.mxu0 0.0
        %4189 = vmatprep.subr.mxu0 0.0
        %4190 = vmatpush1.msra.mxu0 0.0
        %4191 = vmatprep.subr.mxu0 0.0
        %4192 = vmatpush1.msra.mxu0 0.0
        %4193 = vmatprep.subr.mxu0 0.0
        %4194 = vmatpush1.msra.mxu0 0.0
        %4195 = vmatprep.subr.mxu0 0.0
        %4196 = vmatpush1.msra.mxu0 0.0
        %4197 = vmatprep.subr.mxu0 0.0
        %4198 = vmatpush1.msra.mxu0 %v4073
        %4199 = vmatprep.subr.mxu0 0.0
        %4200 = vmatpush2.msra.mxu0 0.0
        %4201 = vmatprep.subr.mxu0 0.0
        %4202 = vmatpush2.msra.mxu0 0.0
        %4203 = vmatprep.subr.mxu0 0.0
        %4204 = vmatpush2.msra.mxu0 0.0
        %4205 = vmatprep.subr.mxu0 0.0
        %4206 = vmatpush2.msra.mxu0 0.0
        %4207 = vmatprep.subr.mxu0 0.0
        %4208 = vmatpush2.msra.mxu0 0.0
        %4209 = vmatprep.subr.mxu0 0.0
        %4210 = vmatpush2.msra.mxu0 0.0
        %4211 = vmatprep.subr.mxu0 0.0
        %4212 = vmatpush2.msra.mxu0 0.0
        %4213 = vmatprep.subr.mxu0 0.0
        %4214 = vmatpush2.msra.mxu0 0.0
        %4215 = vmatprep.subr.mxu0 0.0
        %4216 = vmatpush2.msra.mxu0 0.0
        %4217 = vmatprep.subr.mxu0 0.0
        %4218 = vmatpush2.msra.mxu0 0.0
        %4219 = vmatprep.subr.mxu0 0.0
        %4220 = vmatpush2.msra.mxu0 0.0
        %4221 = vmatprep.subr.mxu0 0.0
        %4222 = vmatpush2.msra.mxu0 0.0
        %4223 = vmatprep.subr.mxu0 0.0
        %4224 = vmatpush2.msra.mxu0 0.0
        %4225 = vmatprep.subr.mxu0 0.0
        %4226 = vmatpush2.msra.mxu0 0.0
        %4227 = vmatprep.subr.mxu0 0.0
        %4228 = vmatpush2.msra.mxu0 0.0
        %4229 = vmatprep.subr.mxu0 0.0
        %4230 = vmatpush2.msra.mxu0 0.0
        %4231 = vmatprep.mubr.f32.mxu0 0.0
        %4232 = vmatmul.mubr.f32.gmra.mxu0 %v4165
        %v4233 = vpop.f32.mrf.mxu0
        %v4234 = vadd.f32 0.0, %v4233
        %v4235 = vpop.f32.mrf.mxu0
        %4236 = vdwg.mxu0
        %4238 = vrot.lane.b32.xlu0 %v3462, 8
        %v4239 = vpop.permute.xlu0 %4238
        %4242 = vrot.lane.b32.xlu0 %v3848, 16
        %v4243 = vpop.permute.xlu0 %4242
        %4246 = vrot.lane.b32.xlu0 %v4234, 24
        %v4247 = vpop.permute.xlu0 %4246
        %v4249 = vsel %vm826, %v3076, %v4239
        %v4250 = vsel %vm2159, %v4249, %v4243
        %v4251 = vsel %vm2161, %v4250, %v4247
        %s4252 = scalar_lea.vmem %s6, 32
        %v4253 = vld [vmem:[%s4252] sm:$0xff]
        %v4254 = vld [vmem:[%s4252 + $0x8] sm:$0xff]
        %v4255 = vld [vmem:[%s4252 + $0x10] sm:$0xff]
        %v4256 = vld [vmem:[%s4252 + $0x18] sm:$0xff]
        %v4258 = vsel %vm475, %v4251, 0
        %4260 = vmatprep.subr.mxu0 0.0
        %4261 = vmatpush1.msra.mxu0 0.0
        %4262 = vmatprep.subr.mxu0 0.0
        %4263 = vmatpush1.msra.mxu0 0.0
        %4264 = vmatprep.subr.mxu0 0.0
        %4265 = vmatpush1.msra.mxu0 0.0
        %4266 = vmatprep.subr.mxu0 0.0
        %4267 = vmatpush1.msra.mxu0 0.0
        %4268 = vmatprep.subr.mxu0 0.0
        %4269 = vmatpush1.msra.mxu0 0.0
        %4270 = vmatprep.subr.mxu0 0.0
        %4271 = vmatpush1.msra.mxu0 0.0
        %4272 = vmatprep.subr.mxu0 0.0
        %4273 = vmatpush1.msra.mxu0 0.0
        %4274 = vmatprep.subr.mxu0 0.0
        %4275 = vmatpush1.msra.mxu0 0.0
        %4276 = vmatprep.subr.mxu0 0.0
        %4277 = vmatpush1.msra.mxu0 0.0
        %4278 = vmatprep.subr.mxu0 0.0
        %4279 = vmatpush1.msra.mxu0 0.0
        %4280 = vmatprep.subr.mxu0 0.0
        %4281 = vmatpush1.msra.mxu0 0.0
        %4282 = vmatprep.subr.mxu0 0.0
        %4283 = vmatpush1.msra.mxu0 0.0
        %4284 = vmatprep.subr.mxu0 0.0
        %4285 = vmatpush1.msra.mxu0 %v4256
        %4286 = vmatprep.subr.mxu0 0.0
        %4287 = vmatpush1.msra.mxu0 %v4255
        %4288 = vmatprep.subr.mxu0 0.0
        %4289 = vmatpush1.msra.mxu0 %v4254
        %4290 = vmatprep.subr.mxu0 0.0
        %4291 = vmatpush1.msra.mxu0 %v4253
        %4292 = vmatprep.subr.mxu0 0.0
        %4293 = vmatpush2.msra.mxu0 0.0
        %4294 = vmatprep.subr.mxu0 0.0
        %4295 = vmatpush2.msra.mxu0 0.0
        %4296 = vmatprep.subr.mxu0 0.0
        %4297 = vmatpush2.msra.mxu0 0.0
        %4298 = vmatprep.subr.mxu0 0.0
        %4299 = vmatpush2.msra.mxu0 0.0
        %4300 = vmatprep.subr.mxu0 0.0
        %4301 = vmatpush2.msra.mxu0 0.0
        %4302 = vmatprep.subr.mxu0 0.0
        %4303 = vmatpush2.msra.mxu0 0.0
        %4304 = vmatprep.subr.mxu0 0.0
        %4305 = vmatpush2.msra.mxu0 0.0
        %4306 = vmatprep.subr.mxu0 0.0
        %4307 = vmatpush2.msra.mxu0 0.0
        %4308 = vmatprep.subr.mxu0 0.0
        %4309 = vmatpush2.msra.mxu0 0.0
        %4310 = vmatprep.subr.mxu0 0.0
        %4311 = vmatpush2.msra.mxu0 0.0
        %4312 = vmatprep.subr.mxu0 0.0
        %4313 = vmatpush2.msra.mxu0 0.0
        %4314 = vmatprep.subr.mxu0 0.0
        %4315 = vmatpush2.msra.mxu0 0.0
        %4316 = vmatprep.subr.mxu0 0.0
        %4317 = vmatpush2.msra.mxu0 0.0
        %4318 = vmatprep.subr.mxu0 0.0
        %4319 = vmatpush2.msra.mxu0 0.0
        %4320 = vmatprep.subr.mxu0 0.0
        %4321 = vmatpush2.msra.mxu0 0.0
        %4322 = vmatprep.subr.mxu0 0.0
        %4323 = vmatpush2.msra.mxu0 0.0
        %4324 = vmatprep.mubr.f32.mxu0 0.0
        %4325 = vmatmul.mubr.f32.gmra.mxu0 %v4258
        %v4326 = vpop.f32.mrf.mxu0
        %v4327 = vadd.f32 %v2689, %v4326
        %v4328 = vpop.f32.mrf.mxu0
        %4329 = vdwg.mxu0
        %v4330 = vsel %vm475, %v4327, 0.0
        %4331 = vadd.xlane.f32.xlu0 %v4330
        %v4332 = vpop.xlane.xlu0 %4331
        %v4333 = vmul.f32 %v4332, %v479
        %v4334 = vsub.f32 %v4327, %v4333
        %v4335 = vmul.f32 %v4334, %v4334
        %v4336 = vsel %vm475, %v4335, 0.0
        %4337 = vadd.xlane.f32.xlu0 %v4336
        %v4338 = vpop.xlane.xlu0 %4337
        %v4339 = vmul.f32 %v4338, %v479
        %v4340 = vadd.f32 %v4339, 1e-05
        %v4341 = vrsqrt.pop %v4340
        %v4342 = vmul.f32 %v4334, %v4341
        %v4343 = vlaneseq
        %v4344 = vshrl.u32 %v4343, 7
        %v4345 = vsub.s32 2, %v4344
        %v4346 = vrot.slane %v2588, %v4345
        %v4347 = vmul.f32 %v4342, %v4346
        %v4348 = vlaneseq
        %v4349 = vshrl.u32 %v4348, 7
        %v4350 = vsub.s32 3, %v4349
        %v4351 = vrot.slane %v2588, %v4350
        %v4352 = vadd.f32 %v4347, %v4351
        %s4353 = scalar_lea.vmem %s7, 32
        %v4354 = vld [vmem:[%s4353] sm:$0xff]
        %v4355 = vld [vmem:[%s4353 + $0x8] sm:$0xff]
        %v4356 = vld [vmem:[%s4353 + $0x10] sm:$0xff]
        %v4357 = vld [vmem:[%s4353 + $0x18] sm:$0xff]
        %v4359 = vsel %vm475, %v4352, 0
        %4361 = vmatprep.subr.mxu0 0.0
        %4362 = vmatpush1.msra.mxu0 0.0
        %4363 = vmatprep.subr.mxu0 0.0
        %4364 = vmatpush1.msra.mxu0 0.0
        %4365 = vmatprep.subr.mxu0 0.0
        %4366 = vmatpush1.msra.mxu0 0.0
        %4367 = vmatprep.subr.mxu0 0.0
        %4368 = vmatpush1.msra.mxu0 0.0
        %4369 = vmatprep.subr.mxu0 0.0
        %4370 = vmatpush1.msra.mxu0 0.0
        %4371 = vmatprep.subr.mxu0 0.0
        %4372 = vmatpush1.msra.mxu0 0.0
        %4373 = vmatprep.subr.mxu0 0.0
        %4374 = vmatpush1.msra.mxu0 0.0
        %4375 = vmatprep.subr.mxu0 0.0
        %4376 = vmatpush1.msra.mxu0 0.0
        %4377 = vmatprep.subr.mxu0 0.0
        %4378 = vmatpush1.msra.mxu0 0.0
        %4379 = vmatprep.subr.mxu0 0.0
        %4380 = vmatpush1.msra.mxu0 0.0
        %4381 = vmatprep.subr.mxu0 0.0
        %4382 = vmatpush1.msra.mxu0 0.0
        %4383 = vmatprep.subr.mxu0 0.0
        %4384 = vmatpush1.msra.mxu0 0.0
        %4385 = vmatprep.subr.mxu0 0.0
        %4386 = vmatpush1.msra.mxu0 %v4357
        %4387 = vmatprep.subr.mxu0 0.0
        %4388 = vmatpush1.msra.mxu0 %v4356
        %4389 = vmatprep.subr.mxu0 0.0
        %4390 = vmatpush1.msra.mxu0 %v4355
        %4391 = vmatprep.subr.mxu0 0.0
        %4392 = vmatpush1.msra.mxu0 %v4354
        %4393 = vmatprep.subr.mxu0 0.0
        %4394 = vmatpush2.msra.mxu0 0.0
        %4395 = vmatprep.subr.mxu0 0.0
        %4396 = vmatpush2.msra.mxu0 0.0
        %4397 = vmatprep.subr.mxu0 0.0
        %4398 = vmatpush2.msra.mxu0 0.0
        %4399 = vmatprep.subr.mxu0 0.0
        %4400 = vmatpush2.msra.mxu0 0.0
        %4401 = vmatprep.subr.mxu0 0.0
        %4402 = vmatpush2.msra.mxu0 0.0
        %4403 = vmatprep.subr.mxu0 0.0
        %4404 = vmatpush2.msra.mxu0 0.0
        %4405 = vmatprep.subr.mxu0 0.0
        %4406 = vmatpush2.msra.mxu0 0.0
        %4407 = vmatprep.subr.mxu0 0.0
        %4408 = vmatpush2.msra.mxu0 0.0
        %4409 = vmatprep.subr.mxu0 0.0
        %4410 = vmatpush2.msra.mxu0 0.0
        %4411 = vmatprep.subr.mxu0 0.0
        %4412 = vmatpush2.msra.mxu0 0.0
        %4413 = vmatprep.subr.mxu0 0.0
        %4414 = vmatpush2.msra.mxu0 0.0
        %4415 = vmatprep.subr.mxu0 0.0
        %4416 = vmatpush2.msra.mxu0 0.0
        %4417 = vmatprep.subr.mxu0 0.0
        %4418 = vmatpush2.msra.mxu0 0.0
        %4419 = vmatprep.subr.mxu0 0.0
        %4420 = vmatpush2.msra.mxu0 0.0
        %4421 = vmatprep.subr.mxu0 0.0
        %4422 = vmatpush2.msra.mxu0 0.0
        %4423 = vmatprep.subr.mxu0 0.0
        %4424 = vmatpush2.msra.mxu0 0.0
        %4425 = vmatprep.mubr.f32.mxu0 0.0
        %4426 = vmatmul.mubr.f32.gmra.mxu0 %v4359
        %v4427 = vpop.f32.mrf.mxu0
        %v4428 = vadd.f32 0.0, %v4427
        %v4429 = vpop.f32.mrf.mxu0
        %4430 = vdwg.mxu0
        %v4431 = vadd.f32 %v4428, %v4352
        %v4432 = vsel %vm475, %v4431, 0.0
        %4433 = vadd.xlane.f32.xlu0 %v4432
        %v4434 = vpop.xlane.xlu0 %4433
        %v4435 = vmul.f32 %v4434, %v479
        %v4436 = vsub.f32 %v4431, %v4435
        %v4437 = vmul.f32 %v4436, %v4436
        %v4438 = vsel %vm475, %v4437, 0.0
        %4439 = vadd.xlane.f32.xlu0 %v4438
        %v4440 = vpop.xlane.xlu0 %4439
        %v4441 = vmul.f32 %v4440, %v479
        %v4442 = vadd.f32 %v4441, 1e-05
        %v4443 = vrsqrt.pop %v4442
        %v4444 = vmul.f32 %v4436, %v4443
        %v4445 = vlaneseq
        %v4446 = vshrl.u32 %v4445, 7
        %v4447 = vsub.s32 4, %v4446
        %v4448 = vrot.slane %v2588, %v4447
        %v4449 = vmul.f32 %v4444, %v4448
        %v4450 = vlaneseq
        %v4451 = vshrl.u32 %v4450, 7
        %v4452 = vsub.s32 5, %v4451
        %v4453 = vrot.slane %v2588, %v4452
        %v4454 = vadd.f32 %v4449, %v4453
        %s4455 = scalar_lea.vmem %s9, 32
        %v4456 = vld [vmem:[%s4455] sm:$0xff]
        %v4457 = vld [vmem:[%s4455 + $0x8] sm:$0xff]
        %v4458 = vld [vmem:[%s4455 + $0x10] sm:$0xff]
        %v4459 = vld [vmem:[%s4455 + $0x18] sm:$0xff]
        %s4460 = scalar_lea.vmem %s10, 1
        %v4461 = vld [vmem:[%s4460] sm:$0x1]
        %v4463 = vlaneseq
        %v4464 = vshrl.u32 %v4463, 7
        %v4465 = vsub.s32 0, %v4464
        %v4466 = vrot.slane %v4461, %v4465
        %v4469 = vsel %vm475, %v4454, 0
        %4471 = vmatprep.subr.mxu0 0.0
        %4472 = vmatpush1.msra.mxu0 0.0
        %4473 = vmatprep.subr.mxu0 0.0
        %4474 = vmatpush1.msra.mxu0 0.0
        %4475 = vmatprep.subr.mxu0 0.0
        %4476 = vmatpush1.msra.mxu0 0.0
        %4477 = vmatprep.subr.mxu0 0.0
        %4478 = vmatpush1.msra.mxu0 0.0
        %4479 = vmatprep.subr.mxu0 0.0
        %4480 = vmatpush1.msra.mxu0 0.0
        %4481 = vmatprep.subr.mxu0 0.0
        %4482 = vmatpush1.msra.mxu0 0.0
        %4483 = vmatprep.subr.mxu0 0.0
        %4484 = vmatpush1.msra.mxu0 0.0
        %4485 = vmatprep.subr.mxu0 0.0
        %4486 = vmatpush1.msra.mxu0 0.0
        %4487 = vmatprep.subr.mxu0 0.0
        %4488 = vmatpush1.msra.mxu0 0.0
        %4489 = vmatprep.subr.mxu0 0.0
        %4490 = vmatpush1.msra.mxu0 0.0
        %4491 = vmatprep.subr.mxu0 0.0
        %4492 = vmatpush1.msra.mxu0 0.0
        %4493 = vmatprep.subr.mxu0 0.0
        %4494 = vmatpush1.msra.mxu0 0.0
        %4495 = vmatprep.subr.mxu0 0.0
        %4496 = vmatpush1.msra.mxu0 %v4459
        %4497 = vmatprep.subr.mxu0 0.0
        %4498 = vmatpush1.msra.mxu0 %v4458
        %4499 = vmatprep.subr.mxu0 0.0
        %4500 = vmatpush1.msra.mxu0 %v4457
        %4501 = vmatprep.subr.mxu0 0.0
        %4502 = vmatpush1.msra.mxu0 %v4456
        %4503 = vmatprep.subr.mxu0 0.0
        %4504 = vmatpush2.msra.mxu0 0.0
        %4505 = vmatprep.subr.mxu0 0.0
        %4506 = vmatpush2.msra.mxu0 0.0
        %4507 = vmatprep.subr.mxu0 0.0
        %4508 = vmatpush2.msra.mxu0 0.0
        %4509 = vmatprep.subr.mxu0 0.0
        %4510 = vmatpush2.msra.mxu0 0.0
        %4511 = vmatprep.subr.mxu0 0.0
        %4512 = vmatpush2.msra.mxu0 0.0
        %4513 = vmatprep.subr.mxu0 0.0
        %4514 = vmatpush2.msra.mxu0 0.0
        %4515 = vmatprep.subr.mxu0 0.0
        %4516 = vmatpush2.msra.mxu0 0.0
        %4517 = vmatprep.subr.mxu0 0.0
        %4518 = vmatpush2.msra.mxu0 0.0
        %4519 = vmatprep.subr.mxu0 0.0
        %4520 = vmatpush2.msra.mxu0 0.0
        %4521 = vmatprep.subr.mxu0 0.0
        %4522 = vmatpush2.msra.mxu0 0.0
        %4523 = vmatprep.subr.mxu0 0.0
        %4524 = vmatpush2.msra.mxu0 0.0
        %4525 = vmatprep.subr.mxu0 0.0
        %4526 = vmatpush2.msra.mxu0 0.0
        %4527 = vmatprep.subr.mxu0 0.0
        %4528 = vmatpush2.msra.mxu0 0.0
        %4529 = vmatprep.subr.mxu0 0.0
        %4530 = vmatpush2.msra.mxu0 0.0
        %4531 = vmatprep.subr.mxu0 0.0
        %4532 = vmatpush2.msra.mxu0 0.0
        %4533 = vmatprep.subr.mxu0 0.0
        %4534 = vmatpush2.msra.mxu0 0.0
        %4535 = vmatprep.mubr.f32.mxu0 0.0
        %4536 = vmatmul.mubr.f32.gmra.mxu0 %v4469
        %v4537 = vpop.f32.mrf.mxu0
        %v4538 = vadd.f32 %v4466, %v4537
        %v4539 = vpop.f32.mrf.mxu0
        %4540 = vdwg.mxu0
        %v4541 = vmul.f32 %v4538, 0.5
        %v4542 = vmul.f32 %v4538, 0.70710677
        %vm4543 = vcmp.ge.f32.partialorder %v4542, 0.0
        %v4544 = vsel %vm4543, 1.0, -1.0
        %v4545 = vand.u32 2147483647, %v4542
        %v4546 = vmul.f32 %v4545, 0.3275911
        %v4547 = vadd.f32 %v4546, 1.0
        %v4548 = vrcp.pop %v4547
        %v4549 = vmul.f32 1.0, %v4548
        %v4550 = vmul.f32 %v4549, 1.0614054
        %v4551 = vadd.f32 %v4550, -1.4531521
        %v4552 = vmul.f32 %v4551, %v4549
        %v4553 = vadd.f32 %v4552, 1.4214138
        %v4554 = vmul.f32 %v4553, %v4549
        %v4555 = vadd.f32 %v4554, -0.28449672
        %v4556 = vmul.f32 %v4555, %v4549
        %v4557 = vadd.f32 %v4556, 0.2548296
        %v4558 = vmul.f32 %v4557, %v4549
        %v4559 = vsub.f32 0.0, %v4545
        %v4560 = vmul.f32 %v4559, %v4545
        %v4561 = vmul.f32 %v4560, 1.442695
        %v4562 = vpow.pop %v4561
        %v4563 = vmul.f32 %v4558, %v4562
        %v4564 = vsub.f32 1.0, %v4563
        %v4565 = vmul.f32 %v4544, %v4564
        %v4566 = vadd.f32 %v4565, 1.0
        %v4567 = vmul.f32 %v4541, %v4566
        %s4568 = scalar_lea.vmem %s11, 64
        %v4569 = vld [vmem:[%s4568] sm:$0xff]
        %v4570 = vld [vmem:[%s4568 + $0x8] sm:$0xff]
        %v4571 = vld [vmem:[%s4568 + $0x10] sm:$0xff]
        %v4572 = vld [vmem:[%s4568 + $0x18] sm:$0xff]
        %v4573 = vld [vmem:[%s4568 + $0x20] sm:$0xff]
        %v4574 = vld [vmem:[%s4568 + $0x28] sm:$0xff]
        %v4575 = vld [vmem:[%s4568 + $0x30] sm:$0xff]
        %v4576 = vld [vmem:[%s4568 + $0x38] sm:$0xff]
        %s4577 = scalar_lea.vmem %s12, 1
        %v4578 = vld [vmem:[%s4577] sm:$0x1]
        %v4580 = vlaneseq
        %v4581 = vshrl.u32 %v4580, 7
        %v4582 = vsub.s32 0, %v4581
        %v4583 = vrot.slane %v4578, %v4582
        %v4586 = vsel %vm2489, %v4567, 0
        %4588 = vmatprep.subr.mxu0 0.0
        %4589 = vmatpush1.msra.mxu0 0.0
        %4590 = vmatprep.subr.mxu0 0.0
        %4591 = vmatpush1.msra.mxu0 0.0
        %4592 = vmatprep.subr.mxu0 0.0
        %4593 = vmatpush1.msra.mxu0 0.0
        %4594 = vmatprep.subr.mxu0 0.0
        %4595 = vmatpush1.msra.mxu0 0.0
        %4596 = vmatprep.subr.mxu0 0.0
        %4597 = vmatpush1.msra.mxu0 0.0
        %4598 = vmatprep.subr.mxu0 0.0
        %4599 = vmatpush1.msra.mxu0 0.0
        %4600 = vmatprep.subr.mxu0 0.0
        %4601 = vmatpush1.msra.mxu0 0.0
        %4602 = vmatprep.subr.mxu0 0.0
        %4603 = vmatpush1.msra.mxu0 0.0
        %4604 = vmatprep.subr.mxu0 0.0
        %4605 = vmatpush1.msra.mxu0 %v4576
        %4606 = vmatprep.subr.mxu0 0.0
        %4607 = vmatpush1.msra.mxu0 %v4575
        %4608 = vmatprep.subr.mxu0 0.0
        %4609 = vmatpush1.msra.mxu0 %v4574
        %4610 = vmatprep.subr.mxu0 0.0
        %4611 = vmatpush1.msra.mxu0 %v4573
        %4612 = vmatprep.subr.mxu0 0.0
        %4613 = vmatpush1.msra.mxu0 %v4572
        %4614 = vmatprep.subr.mxu0 0.0
        %4615 = vmatpush1.msra.mxu0 %v4571
        %4616 = vmatprep.subr.mxu0 0.0
        %4617 = vmatpush1.msra.mxu0 %v4570
        %4618 = vmatprep.subr.mxu0 0.0
        %4619 = vmatpush1.msra.mxu0 %v4569
        %4620 = vmatprep.subr.mxu0 0.0
        %4621 = vmatpush2.msra.mxu0 0.0
        %4622 = vmatprep.subr.mxu0 0.0
        %4623 = vmatpush2.msra.mxu0 0.0
        %4624 = vmatprep.subr.mxu0 0.0
        %4625 = vmatpush2.msra.mxu0 0.0
        %4626 = vmatprep.subr.mxu0 0.0
        %4627 = vmatpush2.msra.mxu0 0.0
        %4628 = vmatprep.subr.mxu0 0.0
        %4629 = vmatpush2.msra.mxu0 0.0
        %4630 = vmatprep.subr.mxu0 0.0
        %4631 = vmatpush2.msra.mxu0 0.0
        %4632 = vmatprep.subr.mxu0 0.0
        %4633 = vmatpush2.msra.mxu0 0.0
        %4634 = vmatprep.subr.mxu0 0.0
        %4635 = vmatpush2.msra.mxu0 0.0
        %4636 = vmatprep.subr.mxu0 0.0
        %4637 = vmatpush2.msra.mxu0 0.0
        %4638 = vmatprep.subr.mxu0 0.0
        %4639 = vmatpush2.msra.mxu0 0.0
        %4640 = vmatprep.subr.mxu0 0.0
        %4641 = vmatpush2.msra.mxu0 0.0
        %4642 = vmatprep.subr.mxu0 0.0
        %4643 = vmatpush2.msra.mxu0 0.0
        %4644 = vmatprep.subr.mxu0 0.0
        %4645 = vmatpush2.msra.mxu0 0.0
        %4646 = vmatprep.subr.mxu0 0.0
        %4647 = vmatpush2.msra.mxu0 0.0
        %4648 = vmatprep.subr.mxu0 0.0
        %4649 = vmatpush2.msra.mxu0 0.0
        %4650 = vmatprep.subr.mxu0 0.0
        %4651 = vmatpush2.msra.mxu0 0.0
        %4652 = vmatprep.mubr.f32.mxu0 0.0
        %4653 = vmatmul.mubr.f32.gmra.mxu0 %v4586
        %v4654 = vpop.f32.mrf.mxu0
        %v4655 = vadd.f32 %v4583, %v4654
        %v4656 = vpop.f32.mrf.mxu0
        %4657 = vdwg.mxu0
        %v4658 = vadd.f32 %v4655, %v4454
        %v4659 = vsel %vm475, %v4658, 0.0
        %4660 = vadd.xlane.f32.xlu0 %v4659
        %v4661 = vpop.xlane.xlu0 %4660
        %v4662 = vmul.f32 %v4661, %v479
        %v4663 = vsub.f32 %v4658, %v4662
        %v4664 = vmul.f32 %v4663, %v4663
        %v4665 = vsel %vm475, %v4664, 0.0
        %4666 = vadd.xlane.f32.xlu0 %v4665
        %v4667 = vpop.xlane.xlu0 %4666
        %v4668 = vmul.f32 %v4667, %v479
        %v4669 = vadd.f32 %v4668, 1e-05
        %v4670 = vrsqrt.pop %v4669
        %v4671 = vmul.f32 %v4663, %v4670
        %v4672 = vlaneseq
        %v4673 = vshrl.u32 %v4672, 7
        %v4674 = vsub.s32 6, %v4673
        %v4675 = vrot.slane %v2588, %v4674
        %v4676 = vmul.f32 %v4671, %v4675
        %v4677 = vlaneseq
        %v4678 = vshrl.u32 %v4677, 7
        %v4679 = vsub.s32 7, %v4678
        %v4680 = vrot.slane %v2588, %v4679
        %v4681 = vadd.f32 %v4676, %v4680
        %vm4682 = vcmask 261127
        %4683 = vst.msk [vmem:[%s468 - $0x7] sm:$0x80] %vm4682, %v4428
        %4684 = vst.msk [vmem:[%s462] sm:$0xff] %vm475, %v4681
        %s4685 = sand.u32 %s318, 1
        %s4686 = scalar_lea.sflag [#allocation3], %s4685
        %s4687 = sand.u32 %s318, 1
        %s4688 = smul.addr %s4687, 8
        %s4689 = scalar_lea.vmem [#allocation2], %s4688
        %s4690 = sand.u32 %s344, 1
        %s4691 = scalar_lea.sflag [#allocation5], %s4690
        %s4692 = sand.u32 %s344, 1
        %s4693 = scalar_lea.vmem [#allocation4], %s4692
        // Predicated region
        $region73: #{fwd.1} parent=71 // pred_check
          %p4694 = pneg %p328
        $region74: #{fwd.1} parent=71 // pred_check_branch
          %4696 = sbr.rel (%p4694) target = $region76
        $region75: #{fwd.1} parent=71 // pred_region
          %s4698 = ssub.s32 128, 128
          %4699 = vsyncadd %s4686, %s4698
          %s4700 = smul.addr %s32, 128
          %s4701 = scalar_lea.hbm %s13, %s4700
          %s4703 = sshll.u32 %s4689, 4
          %s4704 = int_to_ptr.vmem [resolvable:$true] %s4703
          %4706 = dma.vmem_to_hbm [thread:$0]  %s4704, 128, %s4701, %s4686
        $region76: #{fwd.1} parent=71 // pred_fallthru
          _
        // Predicated region
        $region77: #{fwd.1} parent=71 // pred_check
          %p4707 = pneg %p354
        $region78: #{fwd.1} parent=71 // pred_check_branch
          %4709 = sbr.rel (%p4707) target = $region80
        $region79: #{fwd.1} parent=71 // pred_region
          %s4711 = ssub.s32 16, 16
          %4712 = vsyncadd %s4691, %s4711
          %s4713 = smul.addr %s32, 16
          %s4714 = scalar_lea.hbm %s14, %s4713
          %s4716 = sshll.u32 %s4693, 4
          %s4717 = int_to_ptr.vmem [resolvable:$true] %s4716
          %4719 = dma.vmem_to_hbm [thread:$0]  %s4717, 16, %s4714, %s4691
        $region80: #{fwd.1} parent=71 // pred_fallthru
          _
      $region72: #{fwd.1} parent=5 // pred_fallthru
        _
      %p4720 = scmp.le.s32.totalorder 2, %s27
      // Predicated region
      $region81: #{fwd.1} parent=5 // pred_check
        %p4721 = pneg %p4720
      $region82: #{fwd.1} parent=5 // pred_check_branch
        %4723 = sbr.rel (%p4721) target = $region84
      $region83: #{fwd.1} parent=5 // pred_region
        %s4724 = ssub.s32 %s27, 2
        // Predicated region
        $region85: #{fwd.1} parent=83 // pred_check
          %p4725 = pneg %p334
        $region86: #{fwd.1} parent=83 // pred_check_branch
          %4727 = sbr.rel (%p4725) target = $region88
        $region87: #{fwd.1} parent=83 // pred_region
          %s4728 = sand.u32 %s319, 1
          %s4729 = scalar_lea.sflag [#allocation3], %s4728
          %s4730 = sand.u32 %s319, 1
          %s4731 = smul.addr %s4730, 8
          %s4732 = scalar_lea.vmem [#allocation2], %s4731
          %4733 = dma.done %s4729, 128
        $region88: #{fwd.1} parent=83 // pred_fallthru
          _
        // Predicated region
        $region89: #{fwd.1} parent=83 // pred_check
          %p4734 = pneg %p360
        $region90: #{fwd.1} parent=83 // pred_check_branch
          %4736 = sbr.rel (%p4734) target = $region92
        $region91: #{fwd.1} parent=83 // pred_region
          %s4737 = sand.u32 %s345, 1
          %s4738 = scalar_lea.sflag [#allocation5], %s4737
          %s4739 = sand.u32 %s345, 1
          %s4740 = scalar_lea.vmem [#allocation4], %s4739
          %4741 = dma.done %s4738, 16
        $region92: #{fwd.1} parent=83 // pred_fallthru
          _
      $region84: #{fwd.1} parent=5 // pred_fallthru
        _
    $region6: #{fwd.1} parent=1 // loop_footer
      %s31 = sadd.s32 1, %s27
    $region7: #{fwd.1} parent=1 // loop_footer_branch
      %26 = sbr.rel target = $region3
    $region8: #{fwd.1} parent=1 // loop_exit
      _
    %4742 = vsyncpa [#allocation3], 1
    %s4743 = scalar_lea.sflag [#allocation3], 1
    %4744 = vsyncpa %s4743, 1
    %4745 = vsyncpa [#allocation5], 1
    %s4746 = scalar_lea.sflag [#allocation5], 1
    %4747 = vsyncpa %s4746, 1

</llo_original>
